<compile_context>
chip_gen: v6e
topology: v6e:2x2x1
jax: 0.10.0
libtpu: 0.0.40
codegen_flags: <defaults>
</compile_context>

<pallas_src>
import functools

import jax
import jax.numpy as jnp
import numpy as np
from jax.experimental import pallas as pl
from jax.experimental.pallas import tpu as pltpu

EPS = 1e-5
_VMEM_LIMIT = 32 * 1024 * 1024  # safe on v5e/v6e (128 MiB) and v7x (64 MiB physical)


# --------------------------------------------------------------------------- #
#                                   kernels                                   #
# --------------------------------------------------------------------------- #
def _conv3x3_stage_kernel(core_ref, halo_ref, w_ref, scale_ref, shift_ref,
                          y_ref, stats_ref, slab_ref, *, apply_input_bn_relu):
    """One row-band of: [optional BN+ReLU of input] -> 3x3 conv -> partial stats.

    core_ref : (1, band_h, W, Cin)   rows of this band
    halo_ref : (1, 2, W, Cin)        row above / row below the band
    w_ref    : (9*Cin, Cout)  bf16   conv weights, tap-major (dy, dx, ci)
    scale_ref: (1, Cin)              folded BN scale of the *previous* stage
    shift_ref: (1, Cin)              folded BN shift of the *previous* stage
    y_ref    : (1, band_h, W, Cout)  pre-BN conv output of this stage
    stats_ref: (1, 1, 2, Cout)       [sum, sum-of-squares] over this band
    slab_ref : (band_h+2, W+2, Cin)  VMEM scratch: zero-padded input slab
    """
    _, band_h, W, cin = core_ref.shape
    cout = y_ref.shape[-1]

    top = halo_ref[0, 0:1]          # (1, W, cin)
    mid = core_ref[0]               # (band_h, W, cin)
    bot = halo_ref[0, 1:2]          # (1, W, cin)

    if apply_input_bn_relu:
        # Fused BatchNorm (precomputed per-channel scale/shift) + ReLU of the
        # previous stage, applied in f32.  Halo rows that fall outside the
        # image must end up as exact zero padding -> zero them via a scalar
        # predicate on the band index.
        scale = scale_ref[...]
        shift = shift_ref[...]
        b = pl.program_id(1)
        nb = pl.num_programs(1)
        top = jnp.maximum(top * scale + shift, 0.0) * jnp.where(b == 0, 0.0, 1.0)
        mid = jnp.maximum(mid * scale + shift, 0.0)
        bot = jnp.maximum(bot * scale + shift, 0.0) * jnp.where(b == nb - 1, 0.0, 1.0)

    # Assemble the zero-padded (band_h+2, W+2, Cin) slab once in VMEM scratch.
    zcol = jnp.zeros((band_h + 2, 1, cin), jnp.float32)
    slab_ref[:, 0:1, :] = zcol
    slab_ref[:, W + 1:W + 2, :] = zcol
    slab_ref[0:1, 1:W + 1, :] = top
    slab_ref[1:band_h + 1, 1:W + 1, :] = mid
    slab_ref[band_h + 1:band_h + 2, 1:W + 1, :] = bot

    # im2col: one (band_h*W, 9*Cin) operand -> a single MXU matmul (K = 9*Cin)
    cols = []
    for dy in range(3):
        for dx in range(3):
            win = slab_ref[dy:dy + band_h, dx:dx + W, :]      # (band_h, W, cin)
            cols.append(win.reshape(band_h * W, cin))
    patches = jnp.concatenate(cols, axis=1).astype(jnp.bfloat16)

    acc = jnp.dot(patches, w_ref[...],
                  preferred_element_type=jnp.float32)          # (band_h*W, cout)

    # Per-(batch, band) partial BN statistics; combined in the wrapper.
    ssum = jnp.sum(acc, axis=0, keepdims=True)                 # (1, cout)
    ssq = jnp.sum(acc * acc, axis=0, keepdims=True)            # (1, cout)
    stats_ref[0, 0] = jnp.concatenate([ssum, ssq], axis=0)     # (2, cout)

    y_ref[0] = acc.reshape(band_h, W, cout)


def _bn_relu_kernel(y_ref, scale_ref, shift_ref, out_ref):
    """Final BN(+ReLU) normalize: out = relu(y * scale + shift)."""
    out_ref[0] = jnp.maximum(y_ref[0] * scale_ref[...] + shift_ref[...], 0.0)


# --------------------------------------------------------------------------- #
#                              pallas_call wrappers                            #
# --------------------------------------------------------------------------- #
def _conv3x3_stage(core, halo, w_mat, scale, shift, cout, *, band_h,
                   apply_input_bn_relu):
    N, H, W, cin = core.shape
    assert H % band_h == 0, (H, band_h)
    nb = H // band_h

    kern = functools.partial(_conv3x3_stage_kernel,
                             apply_input_bn_relu=apply_input_bn_relu)
    flops = 2 * N * H * W * 9 * cin * cout
    bytes_accessed = (core.size * 4 + halo.size * 4 + w_mat.size * 2
                      + N * H * W * cout * 4 + N * nb * 2 * cout * 4)

    y, stats = pl.pallas_call(
        kern,
        out_shape=(jax.ShapeDtypeStruct((N, H, W, cout), jnp.float32),
                   jax.ShapeDtypeStruct((N, nb, 2, cout), jnp.float32)),
        grid=(N, nb),
        in_specs=[
            pl.BlockSpec((1, band_h, W, cin), lambda n, b: (n, b, 0, 0)),
            pl.BlockSpec((1, 2, W, cin), lambda n, b: (n, b, 0, 0)),
            pl.BlockSpec((9 * cin, cout), lambda n, b: (0, 0)),
            pl.BlockSpec((1, cin), lambda n, b: (0, 0)),
            pl.BlockSpec((1, cin), lambda n, b: (0, 0)),
        ],
        out_specs=(
            pl.BlockSpec((1, band_h, W, cout), lambda n, b: (n, b, 0, 0)),
            pl.BlockSpec((1, 1, 2, cout), lambda n, b: (n, b, 0, 0)),
        ),
        scratch_shapes=[pltpu.VMEM((band_h + 2, W + 2, cin), jnp.float32)],
        compiler_params=pltpu.CompilerParams(
            dimension_semantics=("parallel", "parallel"),
            vmem_limit_bytes=_VMEM_LIMIT),
        cost_estimate=pl.CostEstimate(flops=flops, transcendentals=0,
                                      bytes_accessed=bytes_accessed),
    )(core, halo, w_mat, scale, shift)
    return y, stats


def _bn_relu_stage(y, scale, shift, *, band_h):
    N, H, W, C = y.shape
    nb = H // band_h
    return pl.pallas_call(
        _bn_relu_kernel,
        out_shape=jax.ShapeDtypeStruct((N, H, W, C), jnp.float32),
        grid=(N, nb),
        in_specs=[pl.BlockSpec((1, band_h, W, C), lambda n, b: (n, b, 0, 0)),
                  pl.BlockSpec((1, C), lambda n, b: (0, 0)),
                  pl.BlockSpec((1, C), lambda n, b: (0, 0))],
        out_specs=pl.BlockSpec((1, band_h, W, C), lambda n, b: (n, b, 0, 0)),
        compiler_params=pltpu.CompilerParams(
            dimension_semantics=("parallel", "parallel"),
            vmem_limit_bytes=_VMEM_LIMIT),
        cost_estimate=pl.CostEstimate(flops=2 * N * H * W * C, transcendentals=0,
                                      bytes_accessed=2 * N * H * W * C * 4),
    )(y, scale, shift)


# --------------------------------------------------------------------------- #
#                              wrapper-side helpers                            #
# --------------------------------------------------------------------------- #
def _pick_band_h(H, W, cin, cout, vmem_budget_bytes=8 * 1024 * 1024):
    """Largest divisor of H whose per-step working set fits a conservative
    VMEM budget (kept well under 32 MiB so the same tiling is safe on v7x's
    64 MiB physical VMEM as well as v5e/v6e)."""
    best = 1
    for bh in range(1, H + 1):
        if H % bh:
            continue
        slab = (bh + 2) * (W + 2) * cin * 4
        im2col = bh * W * 9 * cin * (2 + 4)                  # bf16 + f32 staging
        blocks = 2 * ((bh + 2) * W * cin * 4 + bh * W * cout * 4)  # double-buffered
        if slab + im2col + blocks <= vmem_budget_bytes:
            best = bh
    return best


def _build_halo(x, band_h):
    """Rows just above / below each row band (zeros at the image boundary).

    x: (N, H, W, C) -> (N, 2*num_bands, W, C); entry 2b is the row above band b,
    entry 2b+1 the row below.  Only 2/band_h of the tensor is duplicated.
    """
    N, H, W, C = x.shape
    nb = H // band_h
    xp = jnp.pad(x, ((0, 0), (1, 1), (0, 0), (0, 0)))
    rows = []
    for b in range(nb):
        rows.append(b * band_h)                 # padded row above band b
        rows.append(b * band_h + band_h + 1)    # padded row below band b
    return xp[:, np.asarray(rows), :, :]


def _bn_scale_shift(stats, gamma, beta, count):
    """Fold batch statistics + BN affine into one per-channel scale/shift FMA."""
    s = jnp.sum(stats, axis=(0, 1))                  # (2, C)
    mean = s[0] / count
    var = s[1] / count - mean * mean                 # biased variance (training fwd)
    scale = gamma * jax.lax.rsqrt(var + EPS)
    shift = beta - mean * scale
    return scale.reshape(1, -1), shift.reshape(1, -1)


# --------------------------------------------------------------------------- #
#                               parameters / forward                           #
# --------------------------------------------------------------------------- #
def init_conv_block_params(key, num_channels, num_filters):
    """Deterministic parameter init mimicking conv_block.__init__ shapes."""
    ks = jax.random.split(key, 8)

    def conv_init(kw, kb, cin, cout):
        fan_in = cin * 9
        bound = 1.0 / np.sqrt(fan_in)
        w = jax.random.uniform(kw, (3, 3, cin, cout), jnp.float32, -bound, bound)
        b = jax.random.uniform(kb, (cout,), jnp.float32, -bound, bound)
        return w, b

    w1, b1 = conv_init(ks[0], ks[1], num_channels, num_filters)
    w2, b2 = conv_init(ks[2], ks[3], num_filters, num_filters)
    g1 = 1.0 + 0.1 * jax.random.normal(ks[4], (num_filters,), jnp.float32)
    be1 = 0.1 * jax.random.normal(ks[5], (num_filters,), jnp.float32)
    g2 = 1.0 + 0.1 * jax.random.normal(ks[6], (num_filters,), jnp.float32)
    be2 = 0.1 * jax.random.normal(ks[7], (num_filters,), jnp.float32)
    return dict(w1=w1, b1=b1, g1=g1, be1=be1, w2=w2, b2=b2, g2=g2, be2=be2)


@functools.partial(jax.jit, static_argnames=("band_h",))
def conv_block_forward(x_nchw, params, band_h=None):
    """Full conv_block forward.  Input / output are PyTorch-style NCHW."""
    x = jnp.transpose(x_nchw, (0, 2, 3, 1)).astype(jnp.float32)   # NCHW -> NHWC
    N, H, W, cin = x.shape
    c1 = params["w1"].shape[-1]
    c2 = params["w2"].shape[-1]
    if band_h is None:
        band_h = _pick_band_h(H, W, max(cin, c1), max(c1, c2))
    count = N * H * W

    # Weights as (9*Cin, Cout) bf16, tap-major -> single im2col matmul operand.
    w1m = params["w1"].reshape(9 * cin, c1).astype(jnp.bfloat16)
    w2m = params["w2"].reshape(9 * c1, c2).astype(jnp.bfloat16)

    # ---- pass 1: conv1 + per-band BN statistics ----
    halo1 = _build_halo(x, band_h)
    ones = jnp.ones((1, cin), jnp.float32)
    zeros = jnp.zeros((1, cin), jnp.float32)
    y1, stats1 = _conv3x3_stage(x, halo1, w1m, ones, zeros, c1,
                                band_h=band_h, apply_input_bn_relu=False)
    # Conv biases b1/b2 cancel exactly under training-mode BatchNorm (the batch
    # mean removes them), so they are folded away here.
    scale1, shift1 = _bn_scale_shift(stats1, params["g1"], params["be1"], count)

    # ---- pass 2: BN1 + ReLU fused into conv2, + per-band BN statistics ----
    halo2 = _build_halo(y1, band_h)
    y2, stats2 = _conv3x3_stage(y1, halo2, w2m, scale1, shift1, c2,
                                band_h=band_h, apply_input_bn_relu=True)
    scale2, shift2 = _bn_scale_shift(stats2, params["g2"], params["be2"], count)

    # ---- pass 3: BN2 + ReLU ----
    out = _bn_relu_stage(y2, scale2, shift2, band_h=band_h)
    return jnp.transpose(out, (0, 3, 1, 2))                        # NHWC -> NCHW


# ----------------------------- pure-JAX reference ----------------------------- #
def _ref_stage(x_nhwc, w_hwio, b, gamma, beta):
    y = jax.lax.conv_general_dilated(
        x_nhwc.astype(jnp.bfloat16), w_hwio.astype(jnp.bfloat16),
        window_strides=(1, 1), padding="SAME",
        dimension_numbers=("NHWC", "HWIO", "NHWC"),
        preferred_element_type=jnp.float32)
    y = y + b
    mean = jnp.mean(y, axis=(0, 1, 2), keepdims=True)
    var = jnp.mean((y - mean) ** 2, axis=(0, 1, 2), keepdims=True)
    y = (y - mean) / jnp.sqrt(var + EPS)
    return jnp.maximum(y * gamma + beta, 0.0)


@jax.jit
def conv_block_reference(x_nchw, params):
    x = jnp.transpose(x_nchw, (0, 2, 3, 1))
    h = _ref_stage(x, params["w1"], params["b1"], params["g1"], params["be1"])
    h = _ref_stage(h, params["w2"], params["b2"], params["g2"], params["be2"])
    return jnp.transpose(h, (0, 3, 1, 2))


if __name__ == "__main__":
    num_channels, num_filters = 4, 8
    N, H, W = 2, 16, 16

    key = jax.random.PRNGKey(0)
    kx, kp = jax.random.split(key)
    x = jax.random.normal(kx, (N, num_channels, H, W), jnp.float32)   # NCHW input
    params = init_conv_block_params(kp, num_channels, num_filters)

    # band_h=8 -> grid (N=2, bands=2): exercises inter-band halos and megacore
    # parallelism; band_h=None auto-sizes from a VMEM budget for large images.
    out = jax.block_until_ready(conv_block_forward(x, params, band_h=8))
    ref = jax.block_until_ready(conv_block_reference(x, params))

    assert out.shape == (N, num_filters, H, W), out.shape
    np.testing.assert_allclose(np.asarray(out), np.asarray(ref), rtol=1e-2, atol=1e-2)

    print("KERNEL_OK")
</pallas_src>

<mosaic_0001>
module attributes {stable_mosaic.version = 11 : i64} {
  func.func @_conv3x3_stage_kernel(%arg0: i32, %arg1: i32, %arg2: memref<1x8x16x4xf32, #tpu.memory_space<vmem>>, %arg3: memref<1x2x16x4xf32, #tpu.memory_space<vmem>>, %arg4: memref<36x8xbf16, #tpu.memory_space<vmem>>, %arg5: memref<1x4xf32, #tpu.memory_space<vmem>>, %arg6: memref<1x4xf32, #tpu.memory_space<vmem>>, %arg7: memref<1x8x16x8xf32, #tpu.memory_space<vmem>>, %arg8: memref<1x1x2x8xf32, #tpu.memory_space<vmem>>, %arg9: memref<10x18x4xf32, #tpu.memory_space<vmem>>) attributes {dimension_semantics = [#tpu.dimension_semantics<parallel>, #tpu.dimension_semantics<parallel>], iteration_bounds = array<i64: 2, 2>, scalar_prefetch = 0 : i64, scratch_operands = 1 : i64, tpu.core_type = #tpu.core_type<tc>, window_params = [{transform_indices = @transform_0, window_bounds = array<i64: 1, 8, 16, 4>}, {transform_indices = @transform_1, window_bounds = array<i64: 1, 2, 16, 4>}, {pipeline_mode = #tpu.pipeline_mode<synchronous>, transform_indices = @transform_2, window_bounds = array<i64: 36, 8>}, {pipeline_mode = #tpu.pipeline_mode<synchronous>, transform_indices = @transform_3, window_bounds = array<i64: 1, 4>}, {pipeline_mode = #tpu.pipeline_mode<synchronous>, transform_indices = @transform_4, window_bounds = array<i64: 1, 4>}, {transform_indices = @transform_5, window_bounds = array<i64: 1, 8, 16, 8>}, {transform_indices = @transform_6, window_bounds = array<i64: 1, 1, 2, 8>}]} {
    %c0 = arith.constant 0 : index
    %c0_0 = arith.constant 0 : index
    %c0_1 = arith.constant 0 : index
    %c0_2 = arith.constant 0 : index
    %0 = vector.load %arg3[%c0, %c0_0, %c0_1, %c0_2] : memref<1x2x16x4xf32, #tpu.memory_space<vmem>>, vector<1x1x16x4xf32>
    %1 = vector.shape_cast %0 : vector<1x1x16x4xf32> to vector<1x16x4xf32>
    %c0_3 = arith.constant 0 : index
    %c0_4 = arith.constant 0 : index
    %c0_5 = arith.constant 0 : index
    %c0_6 = arith.constant 0 : index
    %2 = vector.load %arg2[%c0_3, %c0_4, %c0_5, %c0_6] : memref<1x8x16x4xf32, #tpu.memory_space<vmem>>, vector<1x8x16x4xf32>
    %3 = vector.shape_cast %2 : vector<1x8x16x4xf32> to vector<8x16x4xf32>
    %c0_7 = arith.constant 0 : index
    %c1 = arith.constant 1 : index
    %c0_8 = arith.constant 0 : index
    %c0_9 = arith.constant 0 : index
    %4 = vector.load %arg3[%c0_7, %c1, %c0_8, %c0_9] : memref<1x2x16x4xf32, #tpu.memory_space<vmem>>, vector<1x1x16x4xf32>
    %5 = vector.shape_cast %4 : vector<1x1x16x4xf32> to vector<1x16x4xf32>
    %cst = arith.constant 0.000000e+00 : f32
    %6 = vector.broadcast %cst : f32 to vector<10x1x4xf32>
    %c0_10 = arith.constant 0 : index
    %c0_11 = arith.constant 0 : index
    %c0_12 = arith.constant 0 : index
    %7 = vector.load %arg9[%c0_10, %c0_11, %c0_12] : memref<10x18x4xf32, #tpu.memory_space<vmem>>, vector<10x1x4xf32>
    tpu.vector_store %arg9[%c0_10, %c0_11, %c0_12], %6 {strides = array<i32>} : memref<10x18x4xf32, #tpu.memory_space<vmem>>, vector<10x1x4xf32>,
    %c0_13 = arith.constant 0 : index
    %c17 = arith.constant 17 : index
    %c0_14 = arith.constant 0 : index
    %8 = vector.load %arg9[%c0_13, %c17, %c0_14] : memref<10x18x4xf32, #tpu.memory_space<vmem>>, vector<10x1x4xf32>
    tpu.vector_store %arg9[%c0_13, %c17, %c0_14], %6 {strides = array<i32>} : memref<10x18x4xf32, #tpu.memory_space<vmem>>, vector<10x1x4xf32>,
    %c0_15 = arith.constant 0 : index
    %c1_16 = arith.constant 1 : index
    %c0_17 = arith.constant 0 : index
    %9 = vector.load %arg9[%c0_15, %c1_16, %c0_17] : memref<10x18x4xf32, #tpu.memory_space<vmem>>, vector<1x16x4xf32>
    tpu.vector_store %arg9[%c0_15, %c1_16, %c0_17], %1 {strides = array<i32>} : memref<10x18x4xf32, #tpu.memory_space<vmem>>, vector<1x16x4xf32>,
    %c1_18 = arith.constant 1 : index
    %c1_19 = arith.constant 1 : index
    %c0_20 = arith.constant 0 : index
    %10 = vector.load %arg9[%c1_18, %c1_19, %c0_20] : memref<10x18x4xf32, #tpu.memory_space<vmem>>, vector<8x16x4xf32>
    tpu.vector_store %arg9[%c1_18, %c1_19, %c0_20], %3 {strides = array<i32>} : memref<10x18x4xf32, #tpu.memory_space<vmem>>, vector<8x16x4xf32>,
    %c9 = arith.constant 9 : index
    %c1_21 = arith.constant 1 : index
    %c0_22 = arith.constant 0 : index
    %11 = vector.load %arg9[%c9, %c1_21, %c0_22] : memref<10x18x4xf32, #tpu.memory_space<vmem>>, vector<1x16x4xf32>
    tpu.vector_store %arg9[%c9, %c1_21, %c0_22], %5 {strides = array<i32>} : memref<10x18x4xf32, #tpu.memory_space<vmem>>, vector<1x16x4xf32>,
    %c0_23 = arith.constant 0 : index
    %c0_24 = arith.constant 0 : index
    %c0_25 = arith.constant 0 : index
    %12 = vector.load %arg9[%c0_23, %c0_24, %c0_25] : memref<10x18x4xf32, #tpu.memory_space<vmem>>, vector<8x16x4xf32>
    %13 = vector.shape_cast %12 : vector<8x16x4xf32> to vector<128x4xf32>
    %c0_26 = arith.constant 0 : index
    %c1_27 = arith.constant 1 : index
    %c0_28 = arith.constant 0 : index
    %14 = vector.load %arg9[%c0_26, %c1_27, %c0_28] : memref<10x18x4xf32, #tpu.memory_space<vmem>>, vector<8x16x4xf32>
    %15 = vector.shape_cast %14 : vector<8x16x4xf32> to vector<128x4xf32>
    %c0_29 = arith.constant 0 : index
    %c2 = arith.constant 2 : index
    %c0_30 = arith.constant 0 : index
    %16 = vector.load %arg9[%c0_29, %c2, %c0_30] : memref<10x18x4xf32, #tpu.memory_space<vmem>>, vector<8x16x4xf32>
    %17 = vector.shape_cast %16 : vector<8x16x4xf32> to vector<128x4xf32>
    %c1_31 = arith.constant 1 : index
    %c0_32 = arith.constant 0 : index
    %c0_33 = arith.constant 0 : index
    %18 = vector.load %arg9[%c1_31, %c0_32, %c0_33] : memref<10x18x4xf32, #tpu.memory_space<vmem>>, vector<8x16x4xf32>
    %19 = vector.shape_cast %18 : vector<8x16x4xf32> to vector<128x4xf32>
    %c1_34 = arith.constant 1 : index
    %c1_35 = arith.constant 1 : index
    %c0_36 = arith.constant 0 : index
    %20 = vector.load %arg9[%c1_34, %c1_35, %c0_36] : memref<10x18x4xf32, #tpu.memory_space<vmem>>, vector<8x16x4xf32>
    %21 = vector.shape_cast %20 : vector<8x16x4xf32> to vector<128x4xf32>
    %c1_37 = arith.constant 1 : index
    %c2_38 = arith.constant 2 : index
    %c0_39 = arith.constant 0 : index
    %22 = vector.load %arg9[%c1_37, %c2_38, %c0_39] : memref<10x18x4xf32, #tpu.memory_space<vmem>>, vector<8x16x4xf32>
    %23 = vector.shape_cast %22 : vector<8x16x4xf32> to vector<128x4xf32>
    %c2_40 = arith.constant 2 : index
    %c0_41 = arith.constant 0 : index
    %c0_42 = arith.constant 0 : index
    %24 = vector.load %arg9[%c2_40, %c0_41, %c0_42] : memref<10x18x4xf32, #tpu.memory_space<vmem>>, vector<8x16x4xf32>
    %25 = vector.shape_cast %24 : vector<8x16x4xf32> to vector<128x4xf32>
    %c2_43 = arith.constant 2 : index
    %c1_44 = arith.constant 1 : index
    %c0_45 = arith.constant 0 : index
    %26 = vector.load %arg9[%c2_43, %c1_44, %c0_45] : memref<10x18x4xf32, #tpu.memory_space<vmem>>, vector<8x16x4xf32>
    %27 = vector.shape_cast %26 : vector<8x16x4xf32> to vector<128x4xf32>
    %c2_46 = arith.constant 2 : index
    %c2_47 = arith.constant 2 : index
    %c0_48 = arith.constant 0 : index
    %28 = vector.load %arg9[%c2_46, %c2_47, %c0_48] : memref<10x18x4xf32, #tpu.memory_space<vmem>>, vector<8x16x4xf32>
    %29 = vector.shape_cast %28 : vector<8x16x4xf32> to vector<128x4xf32>
    %30 = tpu.concatenate %13, %15, %17, %19, %21, %23, %25, %27, %29 in 1 : vector<128x4xf32>, vector<128x4xf32>, vector<128x4xf32>, vector<128x4xf32>, vector<128x4xf32>, vector<128x4xf32>, vector<128x4xf32>, vector<128x4xf32>, vector<128x4xf32> -> vector<128x36xf32>
    %31 = arith.truncf %30 : vector<128x36xf32> to vector<128x36xbf16>
    %c0_49 = arith.constant 0 : index
    %c0_50 = arith.constant 0 : index
    %32 = vector.load %arg4[%c0_49, %c0_50] : memref<36x8xbf16, #tpu.memory_space<vmem>>, vector<36x8xbf16>
    %cst_51 = arith.constant dense<0.000000e+00> : vector<128x8xf32>
    %33 = tpu.matmul %31, %32, %cst_51 {dimension_numbers = #tpu.dot_dimension_numbers<[1], [0], [0], [1], [0, 0, 1, 1], [], []>} : vector<128x36xbf16>, vector<36x8xbf16>, vector<128x8xf32> -> vector<128x8xf32>
    %cst_52 = arith.constant dense<0.000000e+00> : vector<8xf32>
    %34 = vector.multi_reduction <add>, %33, %cst_52 [0] : vector<128x8xf32> to vector<8xf32>
    %35 = vector.shape_cast %34 : vector<8xf32> to vector<1x8xf32>
    %36 = arith.mulf %33, %33 : vector<128x8xf32>
    %cst_53 = arith.constant dense<0.000000e+00> : vector<8xf32>
    %37 = vector.multi_reduction <add>, %36, %cst_53 [0] : vector<128x8xf32> to vector<8xf32>
    %38 = vector.shape_cast %37 : vector<8xf32> to vector<1x8xf32>
    %39 = tpu.concatenate %35, %38 in 0 : vector<1x8xf32>, vector<1x8xf32> -> vector<2x8xf32>
    %c0_54 = arith.constant 0 : index
    %c0_55 = arith.constant 0 : index
    %c0_56 = arith.constant 0 : index
    %c0_57 = arith.constant 0 : index
    %40 = vector.load %arg8[%c0_54, %c0_55, %c0_56, %c0_57] : memref<1x1x2x8xf32, #tpu.memory_space<vmem>>, vector<1x1x2x8xf32>
    %41 = vector.shape_cast %40 : vector<1x1x2x8xf32> to vector<2x8xf32>
    %42 = vector.shape_cast %39 : vector<2x8xf32> to vector<1x1x2x8xf32>
    tpu.vector_store %arg8[%c0_54, %c0_55, %c0_56, %c0_57], %42 {strides = array<i32>} : memref<1x1x2x8xf32, #tpu.memory_space<vmem>>, vector<1x1x2x8xf32>,
    %43 = vector.shape_cast %33 : vector<128x8xf32> to vector<8x16x8xf32>
    %c0_58 = arith.constant 0 : index
    %c0_59 = arith.constant 0 : index
    %c0_60 = arith.constant 0 : index
    %c0_61 = arith.constant 0 : index
    %44 = vector.load %arg7[%c0_58, %c0_59, %c0_60, %c0_61] : memref<1x8x16x8xf32, #tpu.memory_space<vmem>>, vector<1x8x16x8xf32>
    %45 = vector.shape_cast %44 : vector<1x8x16x8xf32> to vector<8x16x8xf32>
    %46 = vector.shape_cast %43 : vector<8x16x8xf32> to vector<1x8x16x8xf32>
    tpu.vector_store %arg7[%c0_58, %c0_59, %c0_60, %c0_61], %46 {strides = array<i32>} : memref<1x8x16x8xf32, #tpu.memory_space<vmem>>, vector<1x8x16x8xf32>,
    return
  }
  func.func @transform_0(%arg0: i32, %arg1: i32) -> (i32, i32, i32, i32) {
    %c0_i32 = arith.constant 0 : i32
    %c0_i32_0 = arith.constant 0 : i32
    %c0_i32_1 = arith.constant 0 : i32
    return %arg0, %arg1, %c0_i32, %c0_i32_0 : i32, i32, i32, i32
  }
  func.func @transform_1(%arg0: i32, %arg1: i32) -> (i32, i32, i32, i32) {
    %c0_i32 = arith.constant 0 : i32
    %c0_i32_0 = arith.constant 0 : i32
    %c0_i32_1 = arith.constant 0 : i32
    return %arg0, %arg1, %c0_i32, %c0_i32_0 : i32, i32, i32, i32
  }
  func.func @transform_2(%arg0: i32, %arg1: i32) -> (i32, i32) {
    %c0_i32 = arith.constant 0 : i32
    %c0_i32_0 = arith.constant 0 : i32
    %c0_i32_1 = arith.constant 0 : i32
    return %c0_i32, %c0_i32_0 : i32, i32
  }
  func.func @transform_3(%arg0: i32, %arg1: i32) -> (i32, i32) {
    %c0_i32 = arith.constant 0 : i32
    %c0_i32_0 = arith.constant 0 : i32
    %c0_i32_1 = arith.constant 0 : i32
    return %c0_i32, %c0_i32_0 : i32, i32
  }
  func.func @transform_4(%arg0: i32, %arg1: i32) -> (i32, i32) {
    %c0_i32 = arith.constant 0 : i32
    %c0_i32_0 = arith.constant 0 : i32
    %c0_i32_1 = arith.constant 0 : i32
    return %c0_i32, %c0_i32_0 : i32, i32
  }
  func.func @transform_5(%arg0: i32, %arg1: i32) -> (i32, i32, i32, i32) {
    %c0_i32 = arith.constant 0 : i32
    %c0_i32_0 = arith.constant 0 : i32
    %c0_i32_1 = arith.constant 0 : i32
    return %arg0, %arg1, %c0_i32, %c0_i32_0 : i32, i32, i32, i32
  }
  func.func @transform_6(%arg0: i32, %arg1: i32) -> (i32, i32, i32, i32) {
    %c0_i32 = arith.constant 0 : i32
    %c0_i32_0 = arith.constant 0 : i32
    %c0_i32_1 = arith.constant 0 : i32
    return %arg0, %arg1, %c0_i32, %c0_i32_0 : i32, i32, i32, i32
  }
}

module attributes {stable_mosaic.version = 11 : i64} {
  func.func @_conv3x3_stage_kernel(%arg0: i32, %arg1: i32, %arg2: memref<1x8x16x8xf32, #tpu.memory_space<vmem>>, %arg3: memref<1x2x16x8xf32, #tpu.memory_space<vmem>>, %arg4: memref<72x8xbf16, #tpu.memory_space<vmem>>, %arg5: memref<1x8xf32, #tpu.memory_space<vmem>>, %arg6: memref<1x8xf32, #tpu.memory_space<vmem>>, %arg7: memref<1x8x16x8xf32, #tpu.memory_space<vmem>>, %arg8: memref<1x1x2x8xf32, #tpu.memory_space<vmem>>, %arg9: memref<10x18x8xf32, #tpu.memory_space<vmem>>) attributes {dimension_semantics = [#tpu.dimension_semantics<parallel>, #tpu.dimension_semantics<parallel>], iteration_bounds = array<i64: 2, 2>, scalar_prefetch = 0 : i64, scratch_operands = 1 : i64, tpu.core_type = #tpu.core_type<tc>, window_params = [{transform_indices = @transform_0, window_bounds = array<i64: 1, 8, 16, 8>}, {transform_indices = @transform_1, window_bounds = array<i64: 1, 2, 16, 8>}, {pipeline_mode = #tpu.pipeline_mode<synchronous>, transform_indices = @transform_2, window_bounds = array<i64: 72, 8>}, {pipeline_mode = #tpu.pipeline_mode<synchronous>, transform_indices = @transform_3, window_bounds = array<i64: 1, 8>}, {pipeline_mode = #tpu.pipeline_mode<synchronous>, transform_indices = @transform_4, window_bounds = array<i64: 1, 8>}, {transform_indices = @transform_5, window_bounds = array<i64: 1, 8, 16, 8>}, {transform_indices = @transform_6, window_bounds = array<i64: 1, 1, 2, 8>}]} {
    %c0 = arith.constant 0 : index
    %c0_0 = arith.constant 0 : index
    %c0_1 = arith.constant 0 : index
    %c0_2 = arith.constant 0 : index
    %0 = vector.load %arg3[%c0, %c0_0, %c0_1, %c0_2] : memref<1x2x16x8xf32, #tpu.memory_space<vmem>>, vector<1x1x16x8xf32>
    %1 = vector.shape_cast %0 : vector<1x1x16x8xf32> to vector<1x16x8xf32>
    %c0_3 = arith.constant 0 : index
    %c0_4 = arith.constant 0 : index
    %c0_5 = arith.constant 0 : index
    %c0_6 = arith.constant 0 : index
    %2 = vector.load %arg2[%c0_3, %c0_4, %c0_5, %c0_6] : memref<1x8x16x8xf32, #tpu.memory_space<vmem>>, vector<1x8x16x8xf32>
    %3 = vector.shape_cast %2 : vector<1x8x16x8xf32> to vector<8x16x8xf32>
    %c0_7 = arith.constant 0 : index
    %c1 = arith.constant 1 : index
    %c0_8 = arith.constant 0 : index
    %c0_9 = arith.constant 0 : index
    %4 = vector.load %arg3[%c0_7, %c1, %c0_8, %c0_9] : memref<1x2x16x8xf32, #tpu.memory_space<vmem>>, vector<1x1x16x8xf32>
    %5 = vector.shape_cast %4 : vector<1x1x16x8xf32> to vector<1x16x8xf32>
    %c0_10 = arith.constant 0 : index
    %c0_11 = arith.constant 0 : index
    %6 = vector.load %arg5[%c0_10, %c0_11] : memref<1x8xf32, #tpu.memory_space<vmem>>, vector<1x8xf32>
    %c0_12 = arith.constant 0 : index
    %c0_13 = arith.constant 0 : index
    %7 = vector.load %arg6[%c0_12, %c0_13] : memref<1x8xf32, #tpu.memory_space<vmem>>, vector<1x8xf32>
    %8 = vector.shape_cast %6 : vector<1x8xf32> to vector<1x1x8xf32>
    %9 = vector.broadcast %8 : vector<1x1x8xf32> to vector<1x16x8xf32>
    %10 = arith.mulf %1, %9 : vector<1x16x8xf32>
    %11 = vector.shape_cast %7 : vector<1x8xf32> to vector<1x1x8xf32>
    %12 = vector.broadcast %11 : vector<1x1x8xf32> to vector<1x16x8xf32>
    %13 = arith.addf %10, %12 : vector<1x16x8xf32>
    %cst = arith.constant 0.000000e+00 : f32
    %14 = vector.broadcast %cst : f32 to vector<1x16x8xf32>
    %15 = arith.maximumf %13, %14 : vector<1x16x8xf32>
    %c0_i32 = arith.constant 0 : i32
    %16 = arith.cmpi eq, %arg1, %c0_i32 : i32
    %cst_14 = arith.constant 0.000000e+00 : f32
    %cst_15 = arith.constant 1.000000e+00 : f32
    %17 = arith.select %16, %cst_14, %cst_15 : f32
    %18 = vector.broadcast %17 : f32 to vector<1x16x8xf32>
    %19 = arith.mulf %15, %18 : vector<1x16x8xf32>
    %20 = vector.shape_cast %6 : vector<1x8xf32> to vector<1x1x8xf32>
    %21 = vector.broadcast %20 : vector<1x1x8xf32> to vector<8x16x8xf32>
    %22 = arith.mulf %3, %21 : vector<8x16x8xf32>
    %23 = vector.shape_cast %7 : vector<1x8xf32> to vector<1x1x8xf32>
    %24 = vector.broadcast %23 : vector<1x1x8xf32> to vector<8x16x8xf32>
    %25 = arith.addf %22, %24 : vector<8x16x8xf32>
    %cst_16 = arith.constant 0.000000e+00 : f32
    %26 = vector.broadcast %cst_16 : f32 to vector<8x16x8xf32>
    %27 = arith.maximumf %25, %26 : vector<8x16x8xf32>
    %28 = vector.shape_cast %6 : vector<1x8xf32> to vector<1x1x8xf32>
    %29 = vector.broadcast %28 : vector<1x1x8xf32> to vector<1x16x8xf32>
    %30 = arith.mulf %5, %29 : vector<1x16x8xf32>
    %31 = vector.shape_cast %7 : vector<1x8xf32> to vector<1x1x8xf32>
    %32 = vector.broadcast %31 : vector<1x1x8xf32> to vector<1x16x8xf32>
    %33 = arith.addf %30, %32 : vector<1x16x8xf32>
    %cst_17 = arith.constant 0.000000e+00 : f32
    %34 = vector.broadcast %cst_17 : f32 to vector<1x16x8xf32>
    %35 = arith.maximumf %33, %34 : vector<1x16x8xf32>
    %c1_i32 = arith.constant 1 : i32
    %36 = arith.cmpi eq, %arg1, %c1_i32 : i32
    %cst_18 = arith.constant 0.000000e+00 : f32
    %cst_19 = arith.constant 1.000000e+00 : f32
    %37 = arith.select %36, %cst_18, %cst_19 : f32
    %38 = vector.broadcast %37 : f32 to vector<1x16x8xf32>
    %39 = arith.mulf %35, %38 : vector<1x16x8xf32>
    %cst_20 = arith.constant 0.000000e+00 : f32
    %40 = vector.broadcast %cst_20 : f32 to vector<10x1x8xf32>
    %c0_21 = arith.constant 0 : index
    %c0_22 = arith.constant 0 : index
    %c0_23 = arith.constant 0 : index
    %41 = vector.load %arg9[%c0_21, %c0_22, %c0_23] : memref<10x18x8xf32, #tpu.memory_space<vmem>>, vector<10x1x8xf32>
    tpu.vector_store %arg9[%c0_21, %c0_22, %c0_23], %40 {strides = array<i32>} : memref<10x18x8xf32, #tpu.memory_space<vmem>>, vector<10x1x8xf32>,
    %c0_24 = arith.constant 0 : index
    %c17 = arith.constant 17 : index
    %c0_25 = arith.constant 0 : index
    %42 = vector.load %arg9[%c0_24, %c17, %c0_25] : memref<10x18x8xf32, #tpu.memory_space<vmem>>, vector<10x1x8xf32>
    tpu.vector_store %arg9[%c0_24, %c17, %c0_25], %40 {strides = array<i32>} : memref<10x18x8xf32, #tpu.memory_space<vmem>>, vector<10x1x8xf32>,
    %c0_26 = arith.constant 0 : index
    %c1_27 = arith.constant 1 : index
    %c0_28 = arith.constant 0 : index
    %43 = vector.load %arg9[%c0_26, %c1_27, %c0_28] : memref<10x18x8xf32, #tpu.memory_space<vmem>>, vector<1x16x8xf32>
    tpu.vector_store %arg9[%c0_26, %c1_27, %c0_28], %19 {strides = array<i32>} : memref<10x18x8xf32, #tpu.memory_space<vmem>>, vector<1x16x8xf32>,
    %c1_29 = arith.constant 1 : index
    %c1_30 = arith.constant 1 : index
    %c0_31 = arith.constant 0 : index
    %44 = vector.load %arg9[%c1_29, %c1_30, %c0_31] : memref<10x18x8xf32, #tpu.memory_space<vmem>>, vector<8x16x8xf32>
    tpu.vector_store %arg9[%c1_29, %c1_30, %c0_31], %27 {strides = array<i32>} : memref<10x18x8xf32, #tpu.memory_space<vmem>>, vector<8x16x8xf32>,
    %c9 = arith.constant 9 : index
    %c1_32 = arith.constant 1 : index
    %c0_33 = arith.constant 0 : index
    %45 = vector.load %arg9[%c9, %c1_32, %c0_33] : memref<10x18x8xf32, #tpu.memory_space<vmem>>, vector<1x16x8xf32>
    tpu.vector_store %arg9[%c9, %c1_32, %c0_33], %39 {strides = array<i32>} : memref<10x18x8xf32, #tpu.memory_space<vmem>>, vector<1x16x8xf32>,
    %c0_34 = arith.constant 0 : index
    %c0_35 = arith.constant 0 : index
    %c0_36 = arith.constant 0 : index
    %46 = vector.load %arg9[%c0_34, %c0_35, %c0_36] : memref<10x18x8xf32, #tpu.memory_space<vmem>>, vector<8x16x8xf32>
    %47 = vector.shape_cast %46 : vector<8x16x8xf32> to vector<128x8xf32>
    %c0_37 = arith.constant 0 : index
    %c1_38 = arith.constant 1 : index
    %c0_39 = arith.constant 0 : index
    %48 = vector.load %arg9[%c0_37, %c1_38, %c0_39] : memref<10x18x8xf32, #tpu.memory_space<vmem>>, vector<8x16x8xf32>
    %49 = vector.shape_cast %48 : vector<8x16x8xf32> to vector<128x8xf32>
    %c0_40 = arith.constant 0 : index
    %c2 = arith.constant 2 : index
    %c0_41 = arith.constant 0 : index
    %50 = vector.load %arg9[%c0_40, %c2, %c0_41] : memref<10x18x8xf32, #tpu.memory_space<vmem>>, vector<8x16x8xf32>
    %51 = vector.shape_cast %50 : vector<8x16x8xf32> to vector<128x8xf32>
    %c1_42 = arith.constant 1 : index
    %c0_43 = arith.constant 0 : index
    %c0_44 = arith.constant 0 : index
    %52 = vector.load %arg9[%c1_42, %c0_43, %c0_44] : memref<10x18x8xf32, #tpu.memory_space<vmem>>, vector<8x16x8xf32>
    %53 = vector.shape_cast %52 : vector<8x16x8xf32> to vector<128x8xf32>
    %c1_45 = arith.constant 1 : index
    %c1_46 = arith.constant 1 : index
    %c0_47 = arith.constant 0 : index
    %54 = vector.load %arg9[%c1_45, %c1_46, %c0_47] : memref<10x18x8xf32, #tpu.memory_space<vmem>>, vector<8x16x8xf32>
    %55 = vector.shape_cast %54 : vector<8x16x8xf32> to vector<128x8xf32>
    %c1_48 = arith.constant 1 : index
    %c2_49 = arith.constant 2 : index
    %c0_50 = arith.constant 0 : index
    %56 = vector.load %arg9[%c1_48, %c2_49, %c0_50] : memref<10x18x8xf32, #tpu.memory_space<vmem>>, vector<8x16x8xf32>
    %57 = vector.shape_cast %56 : vector<8x16x8xf32> to vector<128x8xf32>
    %c2_51 = arith.constant 2 : index
    %c0_52 = arith.constant 0 : index
    %c0_53 = arith.constant 0 : index
    %58 = vector.load %arg9[%c2_51, %c0_52, %c0_53] : memref<10x18x8xf32, #tpu.memory_space<vmem>>, vector<8x16x8xf32>
    %59 = vector.shape_cast %58 : vector<8x16x8xf32> to vector<128x8xf32>
    %c2_54 = arith.constant 2 : index
    %c1_55 = arith.constant 1 : index
    %c0_56 = arith.constant 0 : index
    %60 = vector.load %arg9[%c2_54, %c1_55, %c0_56] : memref<10x18x8xf32, #tpu.memory_space<vmem>>, vector<8x16x8xf32>
    %61 = vector.shape_cast %60 : vector<8x16x8xf32> to vector<128x8xf32>
    %c2_57 = arith.constant 2 : index
    %c2_58 = arith.constant 2 : index
    %c0_59 = arith.constant 0 : index
    %62 = vector.load %arg9[%c2_57, %c2_58, %c0_59] : memref<10x18x8xf32, #tpu.memory_space<vmem>>, vector<8x16x8xf32>
    %63 = vector.shape_cast %62 : vector<8x16x8xf32> to vector<128x8xf32>
    %64 = tpu.concatenate %47, %49, %51, %53, %55, %57, %59, %61, %63 in 1 : vector<128x8xf32>, vector<128x8xf32>, vector<128x8xf32>, vector<128x8xf32>, vector<128x8xf32>, vector<128x8xf32>, vector<128x8xf32>, vector<128x8xf32>, vector<128x8xf32> -> vector<128x72xf32>
    %65 = arith.truncf %64 : vector<128x72xf32> to vector<128x72xbf16>
    %c0_60 = arith.constant 0 : index
    %c0_61 = arith.constant 0 : index
    %66 = vector.load %arg4[%c0_60, %c0_61] : memref<72x8xbf16, #tpu.memory_space<vmem>>, vector<72x8xbf16>
    %cst_62 = arith.constant dense<0.000000e+00> : vector<128x8xf32>
    %67 = tpu.matmul %65, %66, %cst_62 {dimension_numbers = #tpu.dot_dimension_numbers<[1], [0], [0], [1], [0, 0, 1, 1], [], []>} : vector<128x72xbf16>, vector<72x8xbf16>, vector<128x8xf32> -> vector<128x8xf32>
    %cst_63 = arith.constant dense<0.000000e+00> : vector<8xf32>
    %68 = vector.multi_reduction <add>, %67, %cst_63 [0] : vector<128x8xf32> to vector<8xf32>
    %69 = vector.shape_cast %68 : vector<8xf32> to vector<1x8xf32>
    %70 = arith.mulf %67, %67 : vector<128x8xf32>
    %cst_64 = arith.constant dense<0.000000e+00> : vector<8xf32>
    %71 = vector.multi_reduction <add>, %70, %cst_64 [0] : vector<128x8xf32> to vector<8xf32>
    %72 = vector.shape_cast %71 : vector<8xf32> to vector<1x8xf32>
    %73 = tpu.concatenate %69, %72 in 0 : vector<1x8xf32>, vector<1x8xf32> -> vector<2x8xf32>
    %c0_65 = arith.constant 0 : index
    %c0_66 = arith.constant 0 : index
    %c0_67 = arith.constant 0 : index
    %c0_68 = arith.constant 0 : index
    %74 = vector.load %arg8[%c0_65, %c0_66, %c0_67, %c0_68] : memref<1x1x2x8xf32, #tpu.memory_space<vmem>>, vector<1x1x2x8xf32>
    %75 = vector.shape_cast %74 : vector<1x1x2x8xf32> to vector<2x8xf32>
    %76 = vector.shape_cast %73 : vector<2x8xf32> to vector<1x1x2x8xf32>
    tpu.vector_store %arg8[%c0_65, %c0_66, %c0_67, %c0_68], %76 {strides = array<i32>} : memref<1x1x2x8xf32, #tpu.memory_space<vmem>>, vector<1x1x2x8xf32>,
    %77 = vector.shape_cast %67 : vector<128x8xf32> to vector<8x16x8xf32>
    %c0_69 = arith.constant 0 : index
    %c0_70 = arith.constant 0 : index
    %c0_71 = arith.constant 0 : index
    %c0_72 = arith.constant 0 : index
    %78 = vector.load %arg7[%c0_69, %c0_70, %c0_71, %c0_72] : memref<1x8x16x8xf32, #tpu.memory_space<vmem>>, vector<1x8x16x8xf32>
    %79 = vector.shape_cast %78 : vector<1x8x16x8xf32> to vector<8x16x8xf32>
    %80 = vector.shape_cast %77 : vector<8x16x8xf32> to vector<1x8x16x8xf32>
    tpu.vector_store %arg7[%c0_69, %c0_70, %c0_71, %c0_72], %80 {strides = array<i32>} : memref<1x8x16x8xf32, #tpu.memory_space<vmem>>, vector<1x8x16x8xf32>,
    return
  }
  func.func @transform_0(%arg0: i32, %arg1: i32) -> (i32, i32, i32, i32) {
    %c0_i32 = arith.constant 0 : i32
    %c0_i32_0 = arith.constant 0 : i32
    %c0_i32_1 = arith.constant 0 : i32
    return %arg0, %arg1, %c0_i32, %c0_i32_0 : i32, i32, i32, i32
  }
  func.func @transform_1(%arg0: i32, %arg1: i32) -> (i32, i32, i32, i32) {
    %c0_i32 = arith.constant 0 : i32
    %c0_i32_0 = arith.constant 0 : i32
    %c0_i32_1 = arith.constant 0 : i32
    return %arg0, %arg1, %c0_i32, %c0_i32_0 : i32, i32, i32, i32
  }
  func.func @transform_2(%arg0: i32, %arg1: i32) -> (i32, i32) {
    %c0_i32 = arith.constant 0 : i32
    %c0_i32_0 = arith.constant 0 : i32
    %c0_i32_1 = arith.constant 0 : i32
    return %c0_i32, %c0_i32_0 : i32, i32
  }
  func.func @transform_3(%arg0: i32, %arg1: i32) -> (i32, i32) {
    %c0_i32 = arith.constant 0 : i32
    %c0_i32_0 = arith.constant 0 : i32
    %c0_i32_1 = arith.constant 0 : i32
    return %c0_i32, %c0_i32_0 : i32, i32
  }
  func.func @transform_4(%arg0: i32, %arg1: i32) -> (i32, i32) {
    %c0_i32 = arith.constant 0 : i32
    %c0_i32_0 = arith.constant 0 : i32
    %c0_i32_1 = arith.constant 0 : i32
    return %c0_i32, %c0_i32_0 : i32, i32
  }
  func.func @transform_5(%arg0: i32, %arg1: i32) -> (i32, i32, i32, i32) {
    %c0_i32 = arith.constant 0 : i32
    %c0_i32_0 = arith.constant 0 : i32
    %c0_i32_1 = arith.constant 0 : i32
    return %arg0, %arg1, %c0_i32, %c0_i32_0 : i32, i32, i32, i32
  }
  func.func @transform_6(%arg0: i32, %arg1: i32) -> (i32, i32, i32, i32) {
    %c0_i32 = arith.constant 0 : i32
    %c0_i32_0 = arith.constant 0 : i32
    %c0_i32_1 = arith.constant 0 : i32
    return %arg0, %arg1, %c0_i32, %c0_i32_0 : i32, i32, i32, i32
  }
}

module attributes {stable_mosaic.version = 11 : i64} {
  func.func @_bn_relu_kernel(%arg0: i32, %arg1: i32, %arg2: memref<1x8x16x8xf32, #tpu.memory_space<vmem>>, %arg3: memref<1x8xf32, #tpu.memory_space<vmem>>, %arg4: memref<1x8xf32, #tpu.memory_space<vmem>>, %arg5: memref<1x8x16x8xf32, #tpu.memory_space<vmem>>) attributes {dimension_semantics = [#tpu.dimension_semantics<parallel>, #tpu.dimension_semantics<parallel>], iteration_bounds = array<i64: 2, 2>, scalar_prefetch = 0 : i64, scratch_operands = 0 : i64, tpu.core_type = #tpu.core_type<tc>, window_params = [{transform_indices = @transform_0, window_bounds = array<i64: 1, 8, 16, 8>}, {pipeline_mode = #tpu.pipeline_mode<synchronous>, transform_indices = @transform_1, window_bounds = array<i64: 1, 8>}, {pipeline_mode = #tpu.pipeline_mode<synchronous>, transform_indices = @transform_2, window_bounds = array<i64: 1, 8>}, {transform_indices = @transform_3, window_bounds = array<i64: 1, 8, 16, 8>}]} {
    %c0 = arith.constant 0 : index
    %c0_0 = arith.constant 0 : index
    %c0_1 = arith.constant 0 : index
    %c0_2 = arith.constant 0 : index
    %0 = vector.load %arg2[%c0, %c0_0, %c0_1, %c0_2] : memref<1x8x16x8xf32, #tpu.memory_space<vmem>>, vector<1x8x16x8xf32>
    %1 = vector.shape_cast %0 : vector<1x8x16x8xf32> to vector<8x16x8xf32>
    %c0_3 = arith.constant 0 : index
    %c0_4 = arith.constant 0 : index
    %2 = vector.load %arg3[%c0_3, %c0_4] : memref<1x8xf32, #tpu.memory_space<vmem>>, vector<1x8xf32>
    %3 = vector.shape_cast %2 : vector<1x8xf32> to vector<1x1x8xf32>
    %4 = vector.broadcast %3 : vector<1x1x8xf32> to vector<8x16x8xf32>
    %5 = arith.mulf %1, %4 : vector<8x16x8xf32>
    %c0_5 = arith.constant 0 : index
    %c0_6 = arith.constant 0 : index
    %6 = vector.load %arg4[%c0_5, %c0_6] : memref<1x8xf32, #tpu.memory_space<vmem>>, vector<1x8xf32>
    %7 = vector.shape_cast %6 : vector<1x8xf32> to vector<1x1x8xf32>
    %8 = vector.broadcast %7 : vector<1x1x8xf32> to vector<8x16x8xf32>
    %9 = arith.addf %5, %8 : vector<8x16x8xf32>
    %cst = arith.constant 0.000000e+00 : f32
    %10 = vector.broadcast %cst : f32 to vector<8x16x8xf32>
    %11 = arith.maximumf %9, %10 : vector<8x16x8xf32>
    %c0_7 = arith.constant 0 : index
    %c0_8 = arith.constant 0 : index
    %c0_9 = arith.constant 0 : index
    %c0_10 = arith.constant 0 : index
    %12 = vector.load %arg5[%c0_7, %c0_8, %c0_9, %c0_10] : memref<1x8x16x8xf32, #tpu.memory_space<vmem>>, vector<1x8x16x8xf32>
    %13 = vector.shape_cast %12 : vector<1x8x16x8xf32> to vector<8x16x8xf32>
    %14 = vector.shape_cast %11 : vector<8x16x8xf32> to vector<1x8x16x8xf32>
    tpu.vector_store %arg5[%c0_7, %c0_8, %c0_9, %c0_10], %14 {strides = array<i32>} : memref<1x8x16x8xf32, #tpu.memory_space<vmem>>, vector<1x8x16x8xf32>,
    return
  }
  func.func @transform_0(%arg0: i32, %arg1: i32) -> (i32, i32, i32, i32) {
    %c0_i32 = arith.constant 0 : i32
    %c0_i32_0 = arith.constant 0 : i32
    %c0_i32_1 = arith.constant 0 : i32
    return %arg0, %arg1, %c0_i32, %c0_i32_0 : i32, i32, i32, i32
  }
  func.func @transform_1(%arg0: i32, %arg1: i32) -> (i32, i32) {
    %c0_i32 = arith.constant 0 : i32
    %c0_i32_0 = arith.constant 0 : i32
    %c0_i32_1 = arith.constant 0 : i32
    return %c0_i32, %c0_i32_0 : i32, i32
  }
  func.func @transform_2(%arg0: i32, %arg1: i32) -> (i32, i32) {
    %c0_i32 = arith.constant 0 : i32
    %c0_i32_0 = arith.constant 0 : i32
    %c0_i32_1 = arith.constant 0 : i32
    return %c0_i32, %c0_i32_0 : i32, i32
  }
  func.func @transform_3(%arg0: i32, %arg1: i32) -> (i32, i32, i32, i32) {
    %c0_i32 = arith.constant 0 : i32
    %c0_i32_0 = arith.constant 0 : i32
    %c0_i32_1 = arith.constant 0 : i32
    return %arg0, %arg1, %c0_i32, %c0_i32_0 : i32, i32, i32, i32
  }
}

</mosaic_0001>

<llo_original>
// kernel: conv_block_forward.5
$region0: #{conv_block_forward.5}
  #allocation0 [shape = 'u32[]', space=smem, size = 0x4, offset = 0x4, fixed_abs, tag = 'smem constant byte address 0x4 - core index']
  #allocation1 [shape = 'u32[144,128]{1,0:T(1,128)}', space=vmem, size = 0x12000, scoped, tag = 'internal scratch']
  %s0 = inlined_call_operand.vmem [shape: f32[2,16,16,8], index: 0, kind: input, shape index: {}]
  %s1 = inlined_call_operand.vmem [shape: f32[1,8], index: 1, kind: input, shape index: {}]
  %s2 = inlined_call_operand.vmem [shape: f32[1,8], index: 2, kind: input, shape index: {}]
  %s3 = inlined_call_operand.vmem [shape: f32[2,16,16,8], index: 3, kind: output, shape index: {}]
  %s4 = sld [smem:[#allocation0]]
  $region45: #{conv_block_forward.5} parent=0
    _
  %s6 = ssub.s32 1, %s4
  %s7 = scalar_select 0, %s6, %s4
  loop: start=0, step=1, limit=6
  $region2: #{conv_block_forward.5} parent=0 // loop_pre_header
    _
  $region3: #{conv_block_forward.5} parent=0 // loop_header
    %s9 = sphi 0, %s13
    %p10 = scmp.ge.s32.totalorder %s9, 6
    %s16 = sphi 0, %s28
    %s17 = sphi 0, %s24
    %s18 = sphi 0, %s16
    %s19 = sphi 0, %s17
    %s20 = sphi 0, %s18
    %s21 = sphi 0, %s19
    %s33 = sphi 0, %s35
    %s36 = sphi 0, %s33
    %s37 = sphi 0, %s36
    %s53 = sphi 0, %s37
    %s57 = sphi 0, %s57
    %s59 = sphi 0, %s57
    %s60 = sphi 0, %s59
    %s74 = sphi 0, %s60
    %s78 = sphi 0, %s78
    %s80 = sphi 0, %s78
    %s81 = sphi 0, %s80
    %s95 = sphi 0, %s81
    %s103 = sphi 0, %s105
    %s106 = sphi 0, %s103
    %s107 = sphi 0, %s106
    %s123 = sphi 0, %s107
  $region4: #{conv_block_forward.5} parent=0 // loop_header_branch
    %12 = sbr.rel (%p10) target = $region8
  $region5: #{conv_block_forward.5} parent=0 // loop_body
    %s14 = ssub.s32 %s9, 1
    %s15 = ssub.s32 %s9, 2
    %s22 = sadd.s32 1, %s17
    %p23 = scmp.ge.s32.totalorder %s22, 2
    %s24 = scalar_select %p23, 0, %s22
    %s25 = sadd.s32 1, %s16
    %s26 = scalar_select %p23, %s25, %s16
    %p27 = scmp.ge.s32.totalorder %s26, 2
    %s28 = scalar_select %p27, 0, %s26
    %s29 = ssub.s32 %s16, %s28
    %s30 = ssub.s32 %s17, %s24
    %s31 = sor.u32 %s29, %s30
    %p32 = scmp.eq.s32.totalorder %s31, 0
    %s34 = sadd.s32 %s33, 1
    %s35 = scalar_select %p32, %s33, %s34
    %p38 = pneg %p32
    %p39 = scmp.eq.s32.totalorder %s9, 3
    %p40 = por %p38, %p39
    %p41 = scmp.ne.s32.totalorder %s33, %s36
    %p42 = scmp.eq.s32.totalorder %s9, 0
    %p43 = por %p41, %p42
    %p44 = scmp.ne.s32.totalorder %s33, %s36
    %p45 = scmp.eq.s32.totalorder %s14, 3
    %p46 = por %p44, %p45
    %p47 = scmp.ne.s32.totalorder %s36, %s37
    %p48 = scmp.eq.s32.totalorder %s14, 0
    %p49 = por %p47, %p48
    %p50 = scmp.ne.s32.totalorder %s36, %s37
    %p51 = scmp.eq.s32.totalorder %s15, 3
    %p52 = por %p50, %p51
    %p54 = scmp.ne.s32.totalorder %s37, %s53
    %p55 = scmp.eq.s32.totalorder %s15, 0
    %p56 = por %p54, %p55
    %s58 = sadd.s32 %s57, 1
    %p61 = scmp.eq.s32.totalorder %s9, 3
    %p62 = scmp.ne.s32.totalorder %s57, %s59
    %p63 = scmp.eq.s32.totalorder %s9, 0
    %p64 = por %p62, %p63
    %p65 = scmp.ne.s32.totalorder %s57, %s59
    %p66 = scmp.eq.s32.totalorder %s14, 3
    %p67 = por %p65, %p66
    %p68 = scmp.ne.s32.totalorder %s59, %s60
    %p69 = scmp.eq.s32.totalorder %s14, 0
    %p70 = por %p68, %p69
    %p71 = scmp.ne.s32.totalorder %s59, %s60
    %p72 = scmp.eq.s32.totalorder %s15, 3
    %p73 = por %p71, %p72
    %p75 = scmp.ne.s32.totalorder %s60, %s74
    %p76 = scmp.eq.s32.totalorder %s15, 0
    %p77 = por %p75, %p76
    %s79 = sadd.s32 %s78, 1
    %p82 = scmp.eq.s32.totalorder %s9, 3
    %p83 = scmp.ne.s32.totalorder %s78, %s80
    %p84 = scmp.eq.s32.totalorder %s9, 0
    %p85 = por %p83, %p84
    %p86 = scmp.ne.s32.totalorder %s78, %s80
    %p87 = scmp.eq.s32.totalorder %s14, 3
    %p88 = por %p86, %p87
    %p89 = scmp.ne.s32.totalorder %s80, %s81
    %p90 = scmp.eq.s32.totalorder %s14, 0
    %p91 = por %p89, %p90
    %p92 = scmp.ne.s32.totalorder %s80, %s81
    %p93 = scmp.eq.s32.totalorder %s15, 3
    %p94 = por %p92, %p93
    %p96 = scmp.ne.s32.totalorder %s81, %s95
    %p97 = scmp.eq.s32.totalorder %s15, 0
    %p98 = por %p96, %p97
    %s99 = ssub.s32 %s16, %s28
    %s100 = ssub.s32 %s17, %s24
    %s101 = sor.u32 %s99, %s100
    %p102 = scmp.eq.s32.totalorder %s101, 0
    %s104 = sadd.s32 %s103, 1
    %s105 = scalar_select %p102, %s103, %s104
    %p108 = pneg %p102
    %p109 = scmp.eq.s32.totalorder %s9, 3
    %p110 = por %p108, %p109
    %p111 = scmp.ne.s32.totalorder %s103, %s106
    %p112 = scmp.eq.s32.totalorder %s9, 0
    %p113 = por %p111, %p112
    %p114 = scmp.ne.s32.totalorder %s103, %s106
    %p115 = scmp.eq.s32.totalorder %s14, 3
    %p116 = por %p114, %p115
    %p117 = scmp.ne.s32.totalorder %s106, %s107
    %p118 = scmp.eq.s32.totalorder %s14, 0
    %p119 = por %p117, %p118
    %p120 = scmp.ne.s32.totalorder %s106, %s107
    %p121 = scmp.eq.s32.totalorder %s15, 3
    %p122 = por %p120, %p121
    %p124 = scmp.ne.s32.totalorder %s107, %s123
    %p125 = scmp.eq.s32.totalorder %s15, 0
    %p126 = por %p124, %p125
    %p127 = scmp.le.s32.totalorder 1, %s9
    %p128 = scmp.lt.s32.totalorder %s9, 5
    %p129 = pnand %p127, %p128
    %p130 = pneg %p129
    // Predicated region
    $region9: #{conv_block_forward.5} parent=5 // pred_check
      _
    $region10: #{conv_block_forward.5} parent=5 // pred_check_branch
      %132 = sbr.rel (%p129) target = $region12
    $region11: #{conv_block_forward.5} parent=5 // pred_region
      %s133 = ssub.s32 %s9, 1
      // Predicated region
      $region13: #{conv_block_forward.5} parent=11 // pred_check
        %p134 = pneg %p70
      $region14: #{conv_block_forward.5} parent=11 // pred_check_branch
        %136 = sbr.rel (%p134) target = $region16
      $region15: #{conv_block_forward.5} parent=11 // pred_region
        _
      $region16: #{conv_block_forward.5} parent=11 // pred_fallthru
        _
      // Predicated region
      $region17: #{conv_block_forward.5} parent=11 // pred_check
        %p137 = pneg %p91
      $region18: #{conv_block_forward.5} parent=11 // pred_check_branch
        %139 = sbr.rel (%p137) target = $region20
      $region19: #{conv_block_forward.5} parent=11 // pred_region
        _
      $region20: #{conv_block_forward.5} parent=11 // pred_fallthru
        _
    $region12: #{conv_block_forward.5} parent=5 // pred_fallthru
      _
    %p140 = scmp.lt.s32.totalorder %s9, 4
    // Predicated region
    $region21: #{conv_block_forward.5} parent=5 // pred_check
      %p141 = pneg %p140
    $region22: #{conv_block_forward.5} parent=5 // pred_check_branch
      %143 = sbr.rel (%p141) target = $region24
    $region23: #{conv_block_forward.5} parent=5 // pred_region
      // Predicated region
      $region25: #{conv_block_forward.5} parent=23 // pred_check
        %p144 = pneg %p43
      $region26: #{conv_block_forward.5} parent=23 // pred_check_branch
        %146 = sbr.rel (%p144) target = $region28
      $region27: #{conv_block_forward.5} parent=23 // pred_region
        %s147 = smul.u32 8, %s17
        %p148 = scmp.lt.s32.totalorder %s16, 1
        %s149 = scalar_select %p148, %s16, 1
        %p150 = scmp.lt.s32.totalorder %s147, 15
        %s151 = scalar_select %p150, %s147, 15
        %s152 = smul.addr %s151, 2
        %s153 = smul.addr %s149, 32
        %s154 = sadd.s32 %s152, %s153
        %s155 = smul.addr %s154, 8
        %s156 = scalar_lea.vmem %s0, %s155
        %s157 = smul.u32 8, %s17
      $region28: #{conv_block_forward.5} parent=23 // pred_fallthru
        _
    $region24: #{conv_block_forward.5} parent=5 // pred_fallthru
      _
    %p158 = scmp.le.s32.totalorder 1, %s9
    %p159 = scmp.lt.s32.totalorder %s9, 5
    %p160 = pnand %p158, %p159
    %p161 = pneg %p160
    // Predicated region
    $region29: #{conv_block_forward.5} parent=5 // pred_check
      _
    $region30: #{conv_block_forward.5} parent=5 // pred_check_branch
      %163 = sbr.rel (%p160) target = $region32
    $region31: #{conv_block_forward.5} parent=5 // pred_region
      %s164 = ssub.s32 %s9, 1
      %s165 = smul.u32 8, %s19
      %p166 = scmp.lt.s32.totalorder %s18, 1
      %s167 = scalar_select %p166, %s18, 1
      %p168 = scmp.lt.s32.totalorder %s165, 15
      %s169 = scalar_select %p168, %s165, 15
      %s170 = smul.addr %s169, 2
      %s171 = smul.addr %s167, 32
      %s172 = sadd.s32 %s170, %s171
      %s173 = smul.addr %s172, 8
      %s174 = scalar_lea.vmem %s0, %s173
      %p175 = pneg %p49
      %p176 = pneg %p46
      %p177 = pneg %p70
      %p178 = pneg %p67
      %p179 = pneg %p91
      %p180 = pneg %p88
      %p181 = pneg %p119
      %p182 = pneg %p116
      %s183 = smul.u32 8, %s19
      %p184 = scmp.lt.s32.totalorder %s18, 1
      %s185 = scalar_select %p184, %s18, 1
      %p186 = scmp.lt.s32.totalorder %s183, 15
      %s187 = scalar_select %p186, %s183, 15
      %s188 = smul.addr %s187, 2
      %s189 = smul.addr %s185, 32
      %s190 = sadd.s32 %s188, %s189
      %s191 = smul.addr %s190, 8
      %s192 = scalar_lea.vmem %s3, %s191
      %s193 = smul.u32 8, %s19
      %p194 = scmp.lt.s32.totalorder %s18, 1
      %s195 = scalar_select %p194, %s18, 1
      %p196 = scmp.lt.s32.totalorder %s193, 15
      %s197 = scalar_select %p196, %s193, 15
      %s198 = smul.addr %s197, 2
      %s199 = smul.addr %s195, 32
      %s200 = sadd.s32 %s198, %s199
      %s201 = smul.addr %s200, 8
      %s202 = scalar_lea.vmem %s0, %s201
      %s203 = smul.u32 8, %s19
      %s204 = smul.u32 8, %s19
      %p205 = scmp.lt.s32.totalorder %s18, 1
      %s206 = scalar_select %p205, %s18, 1
      %p207 = scmp.lt.s32.totalorder %s204, 15
      %s208 = scalar_select %p207, %s204, 15
      %s209 = smul.addr %s208, 2
      %s210 = smul.addr %s206, 32
      %s211 = sadd.s32 %s209, %s210
      %s212 = smul.addr %s211, 8
      %s213 = scalar_lea.vmem %s3, %s212
      %s214 = smul.u32 8, %s19
      %v215 = vld [vmem:[%s202] sm:$0xff]
      %v216 = vld [vmem:[%s202 + $0x8] sm:$0xff]
      %v217 = vld [vmem:[%s202 + $0x10] sm:$0xff]
      %v218 = vld [vmem:[%s202 + $0x18] sm:$0xff]
      %v219 = vld [vmem:[%s202 + $0x20] sm:$0xff]
      %v220 = vld [vmem:[%s202 + $0x28] sm:$0xff]
      %v221 = vld [vmem:[%s202 + $0x30] sm:$0xff]
      %v222 = vld [vmem:[%s202 + $0x38] sm:$0xff]
      %v223 = vld [vmem:[%s202 + $0x40] sm:$0xff]
      %v224 = vld [vmem:[%s202 + $0x48] sm:$0xff]
      %v225 = vld [vmem:[%s202 + $0x50] sm:$0xff]
      %v226 = vld [vmem:[%s202 + $0x58] sm:$0xff]
      %v227 = vld [vmem:[%s202 + $0x60] sm:$0xff]
      %v228 = vld [vmem:[%s202 + $0x68] sm:$0xff]
      %v229 = vld [vmem:[%s202 + $0x70] sm:$0xff]
      %v230 = vld [vmem:[%s202 + $0x78] sm:$0xff]
      %v231 = vld [vmem:[%s1] sm:$0x1]
      %v233 = vlaneseq
      %v234 = vshrl.u32 %v233, 7
      %v235 = vsub.s32 0, %v234
      %v236 = vrot.slane %v231, %v235
      %v238 = vmul.f32 %v215, %v236
      %v239 = vmul.f32 %v216, %v236
      %v240 = vmul.f32 %v217, %v236
      %v241 = vmul.f32 %v218, %v236
      %v242 = vmul.f32 %v219, %v236
      %v243 = vmul.f32 %v220, %v236
      %v244 = vmul.f32 %v221, %v236
      %v245 = vmul.f32 %v222, %v236
      %v246 = vmul.f32 %v223, %v236
      %v247 = vmul.f32 %v224, %v236
      %v248 = vmul.f32 %v225, %v236
      %v249 = vmul.f32 %v226, %v236
      %v250 = vmul.f32 %v227, %v236
      %v251 = vmul.f32 %v228, %v236
      %v252 = vmul.f32 %v229, %v236
      %v253 = vmul.f32 %v230, %v236
      %v254 = vld [vmem:[%s2] sm:$0x1]
      %v256 = vlaneseq
      %v257 = vshrl.u32 %v256, 7
      %v258 = vsub.s32 0, %v257
      %v259 = vrot.slane %v254, %v258
      %v261 = vadd.f32 %v238, %v259
      %v262 = vadd.f32 %v239, %v259
      %v263 = vadd.f32 %v240, %v259
      %v264 = vadd.f32 %v241, %v259
      %v265 = vadd.f32 %v242, %v259
      %v266 = vadd.f32 %v243, %v259
      %v267 = vadd.f32 %v244, %v259
      %v268 = vadd.f32 %v245, %v259
      %v269 = vadd.f32 %v246, %v259
      %v270 = vadd.f32 %v247, %v259
      %v271 = vadd.f32 %v248, %v259
      %v272 = vadd.f32 %v249, %v259
      %v273 = vadd.f32 %v250, %v259
      %v274 = vadd.f32 %v251, %v259
      %v275 = vadd.f32 %v252, %v259
      %v276 = vadd.f32 %v253, %v259
      %v277 = vmax.f32 %v261, 0.0
      %v278 = vmax.f32 %v262, 0.0
      %v279 = vmax.f32 %v263, 0.0
      %v280 = vmax.f32 %v264, 0.0
      %v281 = vmax.f32 %v265, 0.0
      %v282 = vmax.f32 %v266, 0.0
      %v283 = vmax.f32 %v267, 0.0
      %v284 = vmax.f32 %v268, 0.0
      %v285 = vmax.f32 %v269, 0.0
      %v286 = vmax.f32 %v270, 0.0
      %v287 = vmax.f32 %v271, 0.0
      %v288 = vmax.f32 %v272, 0.0
      %v289 = vmax.f32 %v273, 0.0
      %v290 = vmax.f32 %v274, 0.0
      %v291 = vmax.f32 %v275, 0.0
      %v292 = vmax.f32 %v276, 0.0
      %vm293 = vcmask 64512
      %294 = vst.msk [vmem:[%s213] sm:$0xff] %vm293, %v277
      %295 = vst.msk [vmem:[%s213 + $0x8] sm:$0xff] %vm293, %v278
      %296 = vst.msk [vmem:[%s213 + $0x10] sm:$0xff] %vm293, %v279
      %297 = vst.msk [vmem:[%s213 + $0x18] sm:$0xff] %vm293, %v280
      %298 = vst.msk [vmem:[%s213 + $0x20] sm:$0xff] %vm293, %v281
      %299 = vst.msk [vmem:[%s213 + $0x28] sm:$0xff] %vm293, %v282
      %300 = vst.msk [vmem:[%s213 + $0x30] sm:$0xff] %vm293, %v283
      %301 = vst.msk [vmem:[%s213 + $0x38] sm:$0xff] %vm293, %v284
      %302 = vst.msk [vmem:[%s213 + $0x40] sm:$0xff] %vm293, %v285
      %303 = vst.msk [vmem:[%s213 + $0x48] sm:$0xff] %vm293, %v286
      %304 = vst.msk [vmem:[%s213 + $0x50] sm:$0xff] %vm293, %v287
      %305 = vst.msk [vmem:[%s213 + $0x58] sm:$0xff] %vm293, %v288
      %306 = vst.msk [vmem:[%s213 + $0x60] sm:$0xff] %vm293, %v289
      %307 = vst.msk [vmem:[%s213 + $0x68] sm:$0xff] %vm293, %v290
      %308 = vst.msk [vmem:[%s213 + $0x70] sm:$0xff] %vm293, %v291
      %309 = vst.msk [vmem:[%s213 + $0x78] sm:$0xff] %vm293, %v292
      %s310 = smul.u32 8, %s19
      %p311 = scmp.lt.s32.totalorder %s18, 1
      %s312 = scalar_select %p311, %s18, 1
      %p313 = scmp.lt.s32.totalorder %s310, 15
      %s314 = scalar_select %p313, %s310, 15
      %s315 = smul.addr %s314, 2
      %s316 = smul.addr %s312, 32
      %s317 = sadd.s32 %s315, %s316
      %s318 = smul.addr %s317, 8
      %s319 = scalar_lea.vmem %s3, %s318
      // Predicated region
      $region33: #{conv_block_forward.5} parent=31 // pred_check
        %p320 = pneg %p116
      $region34: #{conv_block_forward.5} parent=31 // pred_check_branch
        %322 = sbr.rel (%p320) target = $region36
      $region35: #{conv_block_forward.5} parent=31 // pred_region
        %s323 = smul.u32 8, %s19
      $region36: #{conv_block_forward.5} parent=31 // pred_fallthru
        _
    $region32: #{conv_block_forward.5} parent=5 // pred_fallthru
      _
    %p324 = scmp.le.s32.totalorder 2, %s9
    // Predicated region
    $region37: #{conv_block_forward.5} parent=5 // pred_check
      %p325 = pneg %p324
    $region38: #{conv_block_forward.5} parent=5 // pred_check_branch
      %327 = sbr.rel (%p325) target = $region40
    $region39: #{conv_block_forward.5} parent=5 // pred_region
      %s328 = ssub.s32 %s9, 2
      // Predicated region
      $region41: #{conv_block_forward.5} parent=39 // pred_check
        %p329 = pneg %p122
      $region42: #{conv_block_forward.5} parent=39 // pred_check_branch
        %331 = sbr.rel (%p329) target = $region44
      $region43: #{conv_block_forward.5} parent=39 // pred_region
        %s332 = smul.u32 8, %s21
        %p333 = scmp.lt.s32.totalorder %s20, 1
        %s334 = scalar_select %p333, %s20, 1
        %p335 = scmp.lt.s32.totalorder %s332, 15
        %s336 = scalar_select %p335, %s332, 15
        %s337 = smul.addr %s336, 2
        %s338 = smul.addr %s334, 32
        %s339 = sadd.s32 %s337, %s338
        %s340 = smul.addr %s339, 8
        %s341 = scalar_lea.vmem %s3, %s340
      $region44: #{conv_block_forward.5} parent=39 // pred_fallthru
        _
    $region40: #{conv_block_forward.5} parent=5 // pred_fallthru
      _
  $region6: #{conv_block_forward.5} parent=0 // loop_footer
    %s13 = sadd.s32 1, %s9
  $region7: #{conv_block_forward.5} parent=0 // loop_footer_branch
    %8 = sbr.rel target = $region3
  $region8: #{conv_block_forward.5} parent=0 // loop_exit
    _

// kernel: conv_block_forward.4
$region0: #{conv_block_forward.4}
  #allocation0 [shape = 'u32[]', space=smem, size = 0x4, offset = 0x4, fixed_abs, tag = 'smem constant byte address 0x4 - core index']
  #allocation1 [shape = 'u32[144,128]{1,0:T(1,128)}', space=vmem, size = 0x12000, scoped, tag = 'internal scratch']
  #allocation2 [shape = 'f32[10,18,8]{2,1,0:T(8,128)}', space=vmem, size = 0x1e000, scoped, tag = 'scratch operand']
  %s0 = inlined_call_operand.vmem [shape: f32[2,16,16,8], index: 0, kind: input, shape index: {}]
  %s1 = inlined_call_operand.vmem [shape: f32[2,4,16,8], index: 1, kind: input, shape index: {}]
  %s2 = inlined_call_operand.vmem [shape: bf16[72,8], index: 2, kind: input, shape index: {}]
  %s3 = inlined_call_operand.vmem [shape: f32[1,8], index: 3, kind: input, shape index: {}]
  %s4 = inlined_call_operand.vmem [shape: f32[1,8], index: 4, kind: input, shape index: {}]
  %s5 = inlined_call_operand.vmem [shape: f32[2,16,16,8], index: 5, kind: output, shape index: {0}]
  %s6 = inlined_call_operand.vmem [shape: f32[2,2,2,8], index: 6, kind: output, shape index: {1}]
  %7 = xla_tuple %s5, %s6
  %s8 = sld [smem:[#allocation0]]
  $region61: #{conv_block_forward.4} parent=0
    _
  %s10 = ssub.s32 1, %s8
  %s11 = scalar_select 0, %s10, %s8
  loop: start=0, step=1, limit=6
  $region2: #{conv_block_forward.4} parent=0 // loop_pre_header
    _
  $region3: #{conv_block_forward.4} parent=0 // loop_header
    %s13 = sphi 0, %s17
    %p14 = scmp.ge.s32.totalorder %s13, 6
    %s20 = sphi 0, %s32
    %s21 = sphi 0, %s28
    %s22 = sphi 0, %s20
    %s23 = sphi 0, %s21
    %s24 = sphi 0, %s22
    %s25 = sphi 0, %s23
    %s37 = sphi 0, %s39
    %s40 = sphi 0, %s37
    %s41 = sphi 0, %s40
    %s57 = sphi 0, %s41
    %s65 = sphi 0, %s67
    %s68 = sphi 0, %s65
    %s69 = sphi 0, %s68
    %s85 = sphi 0, %s69
    %s89 = sphi 0, %s89
    %s91 = sphi 0, %s89
    %s92 = sphi 0, %s91
    %s106 = sphi 0, %s92
    %s110 = sphi 0, %s110
    %s112 = sphi 0, %s110
    %s113 = sphi 0, %s112
    %s127 = sphi 0, %s113
    %s131 = sphi 0, %s131
    %s133 = sphi 0, %s131
    %s134 = sphi 0, %s133
    %s148 = sphi 0, %s134
    %s156 = sphi 0, %s158
    %s159 = sphi 0, %s156
    %s160 = sphi 0, %s159
    %s176 = sphi 0, %s160
    %s184 = sphi 0, %s186
    %s187 = sphi 0, %s184
    %s188 = sphi 0, %s187
    %s204 = sphi 0, %s188
  $region4: #{conv_block_forward.4} parent=0 // loop_header_branch
    %16 = sbr.rel (%p14) target = $region8
  $region5: #{conv_block_forward.4} parent=0 // loop_body
    %s18 = ssub.s32 %s13, 1
    %s19 = ssub.s32 %s13, 2
    %s26 = sadd.s32 1, %s21
    %p27 = scmp.ge.s32.totalorder %s26, 2
    %s28 = scalar_select %p27, 0, %s26
    %s29 = sadd.s32 1, %s20
    %s30 = scalar_select %p27, %s29, %s20
    %p31 = scmp.ge.s32.totalorder %s30, 2
    %s32 = scalar_select %p31, 0, %s30
    %s33 = ssub.s32 %s20, %s32
    %s34 = ssub.s32 %s21, %s28
    %s35 = sor.u32 %s33, %s34
    %p36 = scmp.eq.s32.totalorder %s35, 0
    %s38 = sadd.s32 %s37, 1
    %s39 = scalar_select %p36, %s37, %s38
    %p42 = pneg %p36
    %p43 = scmp.eq.s32.totalorder %s13, 3
    %p44 = por %p42, %p43
    %p45 = scmp.ne.s32.totalorder %s37, %s40
    %p46 = scmp.eq.s32.totalorder %s13, 0
    %p47 = por %p45, %p46
    %p48 = scmp.ne.s32.totalorder %s37, %s40
    %p49 = scmp.eq.s32.totalorder %s18, 3
    %p50 = por %p48, %p49
    %p51 = scmp.ne.s32.totalorder %s40, %s41
    %p52 = scmp.eq.s32.totalorder %s18, 0
    %p53 = por %p51, %p52
    %p54 = scmp.ne.s32.totalorder %s40, %s41
    %p55 = scmp.eq.s32.totalorder %s19, 3
    %p56 = por %p54, %p55
    %p58 = scmp.ne.s32.totalorder %s41, %s57
    %p59 = scmp.eq.s32.totalorder %s19, 0
    %p60 = por %p58, %p59
    %s61 = ssub.s32 %s20, %s32
    %s62 = ssub.s32 %s21, %s28
    %s63 = sor.u32 %s61, %s62
    %p64 = scmp.eq.s32.totalorder %s63, 0
    %s66 = sadd.s32 %s65, 1
    %s67 = scalar_select %p64, %s65, %s66
    %p70 = pneg %p64
    %p71 = scmp.eq.s32.totalorder %s13, 3
    %p72 = por %p70, %p71
    %p73 = scmp.ne.s32.totalorder %s65, %s68
    %p74 = scmp.eq.s32.totalorder %s13, 0
    %p75 = por %p73, %p74
    %p76 = scmp.ne.s32.totalorder %s65, %s68
    %p77 = scmp.eq.s32.totalorder %s18, 3
    %p78 = por %p76, %p77
    %p79 = scmp.ne.s32.totalorder %s68, %s69
    %p80 = scmp.eq.s32.totalorder %s18, 0
    %p81 = por %p79, %p80
    %p82 = scmp.ne.s32.totalorder %s68, %s69
    %p83 = scmp.eq.s32.totalorder %s19, 3
    %p84 = por %p82, %p83
    %p86 = scmp.ne.s32.totalorder %s69, %s85
    %p87 = scmp.eq.s32.totalorder %s19, 0
    %p88 = por %p86, %p87
    %s90 = sadd.s32 %s89, 1
    %p93 = scmp.eq.s32.totalorder %s13, 3
    %p94 = scmp.ne.s32.totalorder %s89, %s91
    %p95 = scmp.eq.s32.totalorder %s13, 0
    %p96 = por %p94, %p95
    %p97 = scmp.ne.s32.totalorder %s89, %s91
    %p98 = scmp.eq.s32.totalorder %s18, 3
    %p99 = por %p97, %p98
    %p100 = scmp.ne.s32.totalorder %s91, %s92
    %p101 = scmp.eq.s32.totalorder %s18, 0
    %p102 = por %p100, %p101
    %p103 = scmp.ne.s32.totalorder %s91, %s92
    %p104 = scmp.eq.s32.totalorder %s19, 3
    %p105 = por %p103, %p104
    %p107 = scmp.ne.s32.totalorder %s92, %s106
    %p108 = scmp.eq.s32.totalorder %s19, 0
    %p109 = por %p107, %p108
    %s111 = sadd.s32 %s110, 1
    %p114 = scmp.eq.s32.totalorder %s13, 3
    %p115 = scmp.ne.s32.totalorder %s110, %s112
    %p116 = scmp.eq.s32.totalorder %s13, 0
    %p117 = por %p115, %p116
    %p118 = scmp.ne.s32.totalorder %s110, %s112
    %p119 = scmp.eq.s32.totalorder %s18, 3
    %p120 = por %p118, %p119
    %p121 = scmp.ne.s32.totalorder %s112, %s113
    %p122 = scmp.eq.s32.totalorder %s18, 0
    %p123 = por %p121, %p122
    %p124 = scmp.ne.s32.totalorder %s112, %s113
    %p125 = scmp.eq.s32.totalorder %s19, 3
    %p126 = por %p124, %p125
    %p128 = scmp.ne.s32.totalorder %s113, %s127
    %p129 = scmp.eq.s32.totalorder %s19, 0
    %p130 = por %p128, %p129
    %s132 = sadd.s32 %s131, 1
    %p135 = scmp.eq.s32.totalorder %s13, 3
    %p136 = scmp.ne.s32.totalorder %s131, %s133
    %p137 = scmp.eq.s32.totalorder %s13, 0
    %p138 = por %p136, %p137
    %p139 = scmp.ne.s32.totalorder %s131, %s133
    %p140 = scmp.eq.s32.totalorder %s18, 3
    %p141 = por %p139, %p140
    %p142 = scmp.ne.s32.totalorder %s133, %s134
    %p143 = scmp.eq.s32.totalorder %s18, 0
    %p144 = por %p142, %p143
    %p145 = scmp.ne.s32.totalorder %s133, %s134
    %p146 = scmp.eq.s32.totalorder %s19, 3
    %p147 = por %p145, %p146
    %p149 = scmp.ne.s32.totalorder %s134, %s148
    %p150 = scmp.eq.s32.totalorder %s19, 0
    %p151 = por %p149, %p150
    %s152 = ssub.s32 %s20, %s32
    %s153 = ssub.s32 %s21, %s28
    %s154 = sor.u32 %s152, %s153
    %p155 = scmp.eq.s32.totalorder %s154, 0
    %s157 = sadd.s32 %s156, 1
    %s158 = scalar_select %p155, %s156, %s157
    %p161 = pneg %p155
    %p162 = scmp.eq.s32.totalorder %s13, 3
    %p163 = por %p161, %p162
    %p164 = scmp.ne.s32.totalorder %s156, %s159
    %p165 = scmp.eq.s32.totalorder %s13, 0
    %p166 = por %p164, %p165
    %p167 = scmp.ne.s32.totalorder %s156, %s159
    %p168 = scmp.eq.s32.totalorder %s18, 3
    %p169 = por %p167, %p168
    %p170 = scmp.ne.s32.totalorder %s159, %s160
    %p171 = scmp.eq.s32.totalorder %s18, 0
    %p172 = por %p170, %p171
    %p173 = scmp.ne.s32.totalorder %s159, %s160
    %p174 = scmp.eq.s32.totalorder %s19, 3
    %p175 = por %p173, %p174
    %p177 = scmp.ne.s32.totalorder %s160, %s176
    %p178 = scmp.eq.s32.totalorder %s19, 0
    %p179 = por %p177, %p178
    %s180 = ssub.s32 %s20, %s32
    %s181 = ssub.s32 %s21, %s28
    %s182 = sor.u32 %s180, %s181
    %p183 = scmp.eq.s32.totalorder %s182, 0
    %s185 = sadd.s32 %s184, 1
    %s186 = scalar_select %p183, %s184, %s185
    %p189 = pneg %p183
    %p190 = scmp.eq.s32.totalorder %s13, 3
    %p191 = por %p189, %p190
    %p192 = scmp.ne.s32.totalorder %s184, %s187
    %p193 = scmp.eq.s32.totalorder %s13, 0
    %p194 = por %p192, %p193
    %p195 = scmp.ne.s32.totalorder %s184, %s187
    %p196 = scmp.eq.s32.totalorder %s18, 3
    %p197 = por %p195, %p196
    %p198 = scmp.ne.s32.totalorder %s187, %s188
    %p199 = scmp.eq.s32.totalorder %s18, 0
    %p200 = por %p198, %p199
    %p201 = scmp.ne.s32.totalorder %s187, %s188
    %p202 = scmp.eq.s32.totalorder %s19, 3
    %p203 = por %p201, %p202
    %p205 = scmp.ne.s32.totalorder %s188, %s204
    %p206 = scmp.eq.s32.totalorder %s19, 0
    %p207 = por %p205, %p206
    %p208 = scmp.le.s32.totalorder 1, %s13
    %p209 = scmp.lt.s32.totalorder %s13, 5
    %p210 = pnand %p208, %p209
    %p211 = pneg %p210
    // Predicated region
    $region9: #{conv_block_forward.4} parent=5 // pred_check
      _
    $region10: #{conv_block_forward.4} parent=5 // pred_check_branch
      %213 = sbr.rel (%p210) target = $region12
    $region11: #{conv_block_forward.4} parent=5 // pred_region
      %s214 = ssub.s32 %s13, 1
      // Predicated region
      $region13: #{conv_block_forward.4} parent=11 // pred_check
        %p215 = pneg %p102
      $region14: #{conv_block_forward.4} parent=11 // pred_check_branch
        %217 = sbr.rel (%p215) target = $region16
      $region15: #{conv_block_forward.4} parent=11 // pred_region
        _
      $region16: #{conv_block_forward.4} parent=11 // pred_fallthru
        _
      // Predicated region
      $region17: #{conv_block_forward.4} parent=11 // pred_check
        %p218 = pneg %p123
      $region18: #{conv_block_forward.4} parent=11 // pred_check_branch
        %220 = sbr.rel (%p218) target = $region20
      $region19: #{conv_block_forward.4} parent=11 // pred_region
        _
      $region20: #{conv_block_forward.4} parent=11 // pred_fallthru
        _
      // Predicated region
      $region21: #{conv_block_forward.4} parent=11 // pred_check
        %p221 = pneg %p144
      $region22: #{conv_block_forward.4} parent=11 // pred_check_branch
        %223 = sbr.rel (%p221) target = $region24
      $region23: #{conv_block_forward.4} parent=11 // pred_region
        _
      $region24: #{conv_block_forward.4} parent=11 // pred_fallthru
        _
    $region12: #{conv_block_forward.4} parent=5 // pred_fallthru
      _
    %p224 = scmp.lt.s32.totalorder %s13, 4
    // Predicated region
    $region25: #{conv_block_forward.4} parent=5 // pred_check
      %p225 = pneg %p224
    $region26: #{conv_block_forward.4} parent=5 // pred_check_branch
      %227 = sbr.rel (%p225) target = $region28
    $region27: #{conv_block_forward.4} parent=5 // pred_region
      // Predicated region
      $region29: #{conv_block_forward.4} parent=27 // pred_check
        %p228 = pneg %p47
      $region30: #{conv_block_forward.4} parent=27 // pred_check_branch
        %230 = sbr.rel (%p228) target = $region32
      $region31: #{conv_block_forward.4} parent=27 // pred_region
        %s231 = smul.u32 8, %s21
        %p232 = scmp.lt.s32.totalorder %s20, 1
        %s233 = scalar_select %p232, %s20, 1
        %p234 = scmp.lt.s32.totalorder %s231, 15
        %s235 = scalar_select %p234, %s231, 15
        %s236 = smul.addr %s235, 2
        %s237 = smul.addr %s233, 32
        %s238 = sadd.s32 %s236, %s237
        %s239 = smul.addr %s238, 8
        %s240 = scalar_lea.vmem %s0, %s239
        %s241 = smul.u32 8, %s21
      $region32: #{conv_block_forward.4} parent=27 // pred_fallthru
        _
      // Predicated region
      $region33: #{conv_block_forward.4} parent=27 // pred_check
        %p242 = pneg %p75
      $region34: #{conv_block_forward.4} parent=27 // pred_check_branch
        %244 = sbr.rel (%p242) target = $region36
      $region35: #{conv_block_forward.4} parent=27 // pred_region
        %s245 = smul.u32 2, %s21
        %p246 = scmp.lt.s32.totalorder %s20, 1
        %s247 = scalar_select %p246, %s20, 1
        %p248 = scmp.lt.s32.totalorder %s245, 3
        %s249 = scalar_select %p248, %s245, 3
        %s250 = smul.addr %s249, 2
        %s251 = smul.addr %s247, 8
        %s252 = sadd.s32 %s250, %s251
        %s253 = smul.addr %s252, 8
        %s254 = scalar_lea.vmem %s1, %s253
        %s255 = smul.u32 2, %s21
      $region36: #{conv_block_forward.4} parent=27 // pred_fallthru
        _
    $region28: #{conv_block_forward.4} parent=5 // pred_fallthru
      _
    %p256 = scmp.le.s32.totalorder 1, %s13
    %p257 = scmp.lt.s32.totalorder %s13, 5
    %p258 = pnand %p256, %p257
    %p259 = pneg %p258
    // Predicated region
    $region37: #{conv_block_forward.4} parent=5 // pred_check
      _
    $region38: #{conv_block_forward.4} parent=5 // pred_check_branch
      %261 = sbr.rel (%p258) target = $region40
    $region39: #{conv_block_forward.4} parent=5 // pred_region
      %s262 = ssub.s32 %s13, 1
      %s263 = smul.u32 8, %s23
      %p264 = scmp.lt.s32.totalorder %s22, 1
      %s265 = scalar_select %p264, %s22, 1
      %p266 = scmp.lt.s32.totalorder %s263, 15
      %s267 = scalar_select %p266, %s263, 15
      %s268 = smul.addr %s267, 2
      %s269 = smul.addr %s265, 32
      %s270 = sadd.s32 %s268, %s269
      %s271 = smul.addr %s270, 8
      %s272 = scalar_lea.vmem %s0, %s271
      %p273 = pneg %p53
      %p274 = pneg %p50
      %s275 = smul.u32 2, %s23
      %p276 = scmp.lt.s32.totalorder %s22, 1
      %s277 = scalar_select %p276, %s22, 1
      %p278 = scmp.lt.s32.totalorder %s275, 3
      %s279 = scalar_select %p278, %s275, 3
      %s280 = smul.addr %s279, 2
      %s281 = smul.addr %s277, 8
      %s282 = sadd.s32 %s280, %s281
      %s283 = smul.addr %s282, 8
      %s284 = scalar_lea.vmem %s1, %s283
      %p285 = pneg %p81
      %p286 = pneg %p78
      %p287 = pneg %p102
      %p288 = pneg %p99
      %p289 = pneg %p123
      %p290 = pneg %p120
      %p291 = pneg %p144
      %p292 = pneg %p141
      %p293 = pneg %p172
      %p294 = pneg %p169
      %s295 = smul.u32 8, %s23
      %p296 = scmp.lt.s32.totalorder %s22, 1
      %s297 = scalar_select %p296, %s22, 1
      %p298 = scmp.lt.s32.totalorder %s295, 15
      %s299 = scalar_select %p298, %s295, 15
      %s300 = smul.addr %s299, 2
      %s301 = smul.addr %s297, 32
      %s302 = sadd.s32 %s300, %s301
      %s303 = smul.addr %s302, 8
      %s304 = scalar_lea.vmem %s5, %s303
      %p305 = pneg %p200
      %p306 = pneg %p197
      %p307 = scmp.lt.s32.totalorder %s22, 1
      %s308 = scalar_select %p307, %s22, 1
      %p309 = scmp.lt.s32.totalorder %s23, 1
      %s310 = scalar_select %p309, %s23, 1
      %s311 = smul.addr %s308, 2
      %s312 = sadd.s32 %s310, %s311
      %s313 = smul.addr %s312, 2
      %s314 = scalar_lea.vmem %s6, %s313
      %s315 = smul.u32 8, %s23
      %p316 = scmp.lt.s32.totalorder %s22, 1
      %s317 = scalar_select %p316, %s22, 1
      %p318 = scmp.lt.s32.totalorder %s315, 15
      %s319 = scalar_select %p318, %s315, 15
      %s320 = smul.addr %s319, 2
      %s321 = smul.addr %s317, 32
      %s322 = sadd.s32 %s320, %s321
      %s323 = smul.addr %s322, 8
      %s324 = scalar_lea.vmem %s0, %s323
      %s325 = smul.u32 8, %s23
      %s326 = smul.u32 2, %s23
      %p327 = scmp.lt.s32.totalorder %s22, 1
      %s328 = scalar_select %p327, %s22, 1
      %p329 = scmp.lt.s32.totalorder %s326, 3
      %s330 = scalar_select %p329, %s326, 3
      %s331 = smul.addr %s330, 2
      %s332 = smul.addr %s328, 8
      %s333 = sadd.s32 %s331, %s332
      %s334 = smul.addr %s333, 8
      %s335 = scalar_lea.vmem %s1, %s334
      %s336 = smul.u32 2, %s23
      %s337 = smul.u32 8, %s23
      %p338 = scmp.lt.s32.totalorder %s22, 1
      %s339 = scalar_select %p338, %s22, 1
      %p340 = scmp.lt.s32.totalorder %s337, 15
      %s341 = scalar_select %p340, %s337, 15
      %s342 = smul.addr %s341, 2
      %s343 = smul.addr %s339, 32
      %s344 = sadd.s32 %s342, %s343
      %s345 = smul.addr %s344, 8
      %s346 = scalar_lea.vmem %s5, %s345
      %s347 = smul.u32 8, %s23
      %p348 = scmp.lt.s32.totalorder %s22, 1
      %s349 = scalar_select %p348, %s22, 1
      %p350 = scmp.lt.s32.totalorder %s23, 1
      %s351 = scalar_select %p350, %s23, 1
      %s352 = smul.addr %s349, 2
      %s353 = sadd.s32 %s351, %s352
      %s354 = smul.addr %s353, 2
      %s355 = scalar_lea.vmem %s6, %s354
      %v357 = vld [vmem:[%s335] sm:$0xff]
      %v358 = vld [vmem:[%s335 + $0x8] sm:$0xff]
      %v359 = vld [vmem:[%s324] sm:$0xff]
      %v360 = vld [vmem:[%s324 + $0x8] sm:$0xff]
      %v361 = vld [vmem:[%s324 + $0x10] sm:$0xff]
      %v362 = vld [vmem:[%s324 + $0x18] sm:$0xff]
      %v363 = vld [vmem:[%s324 + $0x20] sm:$0xff]
      %v364 = vld [vmem:[%s324 + $0x28] sm:$0xff]
      %v365 = vld [vmem:[%s324 + $0x30] sm:$0xff]
      %v366 = vld [vmem:[%s324 + $0x38] sm:$0xff]
      %v367 = vld [vmem:[%s324 + $0x40] sm:$0xff]
      %v368 = vld [vmem:[%s324 + $0x48] sm:$0xff]
      %v369 = vld [vmem:[%s324 + $0x50] sm:$0xff]
      %v370 = vld [vmem:[%s324 + $0x58] sm:$0xff]
      %v371 = vld [vmem:[%s324 + $0x60] sm:$0xff]
      %v372 = vld [vmem:[%s324 + $0x68] sm:$0xff]
      %v373 = vld [vmem:[%s324 + $0x70] sm:$0xff]
      %v374 = vld [vmem:[%s324 + $0x78] sm:$0xff]
      %s375 = scalar_lea.vmem %s335, 16
      %v376 = vld [vmem:[%s375] sm:$0xff]
      %v377 = vld [vmem:[%s375 + $0x8] sm:$0xff]
      %v378 = vld [vmem:[%s3] sm:$0x1]
      %v379 = vld [vmem:[%s4] sm:$0x1]
      %v381 = vlaneseq
      %v382 = vshrl.u32 %v381, 7
      %v383 = vsub.s32 0, %v382
      %v384 = vrot.slane %v378, %v383
      %v386 = vmul.f32 %v357, %v384
      %v387 = vmul.f32 %v358, %v384
      %v389 = vlaneseq
      %v390 = vshrl.u32 %v389, 7
      %v391 = vsub.s32 0, %v390
      %v392 = vrot.slane %v379, %v391
      %v394 = vadd.f32 %v386, %v392
      %v395 = vadd.f32 %v387, %v392
      %v396 = vmax.f32 %v394, 0.0
      %v397 = vmax.f32 %v395, 0.0
      %p398 = scmp.eq.s32.totalorder %s23, 0
      %s399 = scalar_select %p398, 0.0, 1.0
      %v400 = vstv %s399
      %v401 = vmul.f32 %v396, %v400
      %v402 = vmul.f32 %v397, %v400
      %v403 = vmul.f32 %v359, %v384
      %v404 = vmul.f32 %v360, %v384
      %v405 = vmul.f32 %v361, %v384
      %v406 = vmul.f32 %v362, %v384
      %v407 = vmul.f32 %v363, %v384
      %v408 = vmul.f32 %v364, %v384
      %v409 = vmul.f32 %v365, %v384
      %v410 = vmul.f32 %v366, %v384
      %v411 = vmul.f32 %v367, %v384
      %v412 = vmul.f32 %v368, %v384
      %v413 = vmul.f32 %v369, %v384
      %v414 = vmul.f32 %v370, %v384
      %v415 = vmul.f32 %v371, %v384
      %v416 = vmul.f32 %v372, %v384
      %v417 = vmul.f32 %v373, %v384
      %v418 = vmul.f32 %v374, %v384
      %v419 = vadd.f32 %v403, %v392
      %v420 = vadd.f32 %v404, %v392
      %v421 = vadd.f32 %v405, %v392
      %v422 = vadd.f32 %v406, %v392
      %v423 = vadd.f32 %v407, %v392
      %v424 = vadd.f32 %v408, %v392
      %v425 = vadd.f32 %v409, %v392
      %v426 = vadd.f32 %v410, %v392
      %v427 = vadd.f32 %v411, %v392
      %v428 = vadd.f32 %v412, %v392
      %v429 = vadd.f32 %v413, %v392
      %v430 = vadd.f32 %v414, %v392
      %v431 = vadd.f32 %v415, %v392
      %v432 = vadd.f32 %v416, %v392
      %v433 = vadd.f32 %v417, %v392
      %v434 = vadd.f32 %v418, %v392
      %v435 = vmax.f32 %v419, 0.0
      %v436 = vmax.f32 %v420, 0.0
      %v437 = vmax.f32 %v421, 0.0
      %v438 = vmax.f32 %v422, 0.0
      %v439 = vmax.f32 %v423, 0.0
      %v440 = vmax.f32 %v424, 0.0
      %v441 = vmax.f32 %v425, 0.0
      %v442 = vmax.f32 %v426, 0.0
      %v443 = vmax.f32 %v427, 0.0
      %v444 = vmax.f32 %v428, 0.0
      %v445 = vmax.f32 %v429, 0.0
      %v446 = vmax.f32 %v430, 0.0
      %v447 = vmax.f32 %v431, 0.0
      %v448 = vmax.f32 %v432, 0.0
      %v449 = vmax.f32 %v433, 0.0
      %v450 = vmax.f32 %v434, 0.0
      %v451 = vmul.f32 %v376, %v384
      %v452 = vmul.f32 %v377, %v384
      %v453 = vadd.f32 %v451, %v392
      %v454 = vadd.f32 %v452, %v392
      %v455 = vmax.f32 %v453, 0.0
      %v456 = vmax.f32 %v454, 0.0
      %p457 = scmp.eq.s32.totalorder %s23, 1
      %s458 = scalar_select %p457, 0.0, 1.0
      %v459 = vstv %s458
      %v460 = vmul.f32 %v455, %v459
      %v461 = vmul.f32 %v456, %v459
      %vm462 = vcmask 57344
      %463 = vst.msk [vmem:[#allocation2] sm:$0x1] %vm462, 0.0
      %464 = vst.msk [vmem:[#allocation2 + $0x18] sm:$0x1] %vm462, 0.0
      %465 = vst.msk [vmem:[#allocation2 + $0x30] sm:$0x1] %vm462, 0.0
      %466 = vst.msk [vmem:[#allocation2 + $0x48] sm:$0x1] %vm462, 0.0
      %467 = vst.msk [vmem:[#allocation2 + $0x60] sm:$0x1] %vm462, 0.0
      %468 = vst.msk [vmem:[#allocation2 + $0x78] sm:$0x1] %vm462, 0.0
      %469 = vst.msk [vmem:[#allocation2 + $0x90] sm:$0x1] %vm462, 0.0
      %470 = vst.msk [vmem:[#allocation2 + $0xa8] sm:$0x1] %vm462, 0.0
      %471 = vst.msk [vmem:[#allocation2 + $0xc0] sm:$0x1] %vm462, 0.0
      %472 = vst.msk [vmem:[#allocation2 + $0xd8] sm:$0x1] %vm462, 0.0
      %473 = vst.msk [vmem:[#allocation2 + $0x11] sm:$0x1] %vm462, 0.0
      %474 = vst.msk [vmem:[#allocation2 + $0x29] sm:$0x1] %vm462, 0.0
      %475 = vst.msk [vmem:[#allocation2 + $0x41] sm:$0x1] %vm462, 0.0
      %476 = vst.msk [vmem:[#allocation2 + $0x59] sm:$0x1] %vm462, 0.0
      %477 = vst.msk [vmem:[#allocation2 + $0x71] sm:$0x1] %vm462, 0.0
      %478 = vst.msk [vmem:[#allocation2 + $0x89] sm:$0x1] %vm462, 0.0
      %479 = vst.msk [vmem:[#allocation2 + $0xa1] sm:$0x1] %vm462, 0.0
      %480 = vst.msk [vmem:[#allocation2 + $0xb9] sm:$0x1] %vm462, 0.0
      %481 = vst.msk [vmem:[#allocation2 + $0xd1] sm:$0x1] %vm462, 0.0
      %482 = vst.msk [vmem:[#allocation2 + $0xe9] sm:$0x1] %vm462, 0.0
      %vm483 = vcmask 64512
      %484 = vst.msk [vmem:[#allocation2 + $0x1] sm:$0xff] %vm483, %v401
      %485 = vst.msk [vmem:[#allocation2 + $0x9] sm:$0xff] %vm483, %v402
      %s486 = scalar_lea.vmem [#allocation2], 24
      %487 = vst.msk [vmem:[%s486 + $0x1] sm:$0xff] %vm483, %v435
      %488 = vst.msk [vmem:[%s486 + $0x9] sm:$0xff] %vm483, %v436
      %489 = vst.msk [vmem:[%s486 + $0x19] sm:$0xff] %vm483, %v437
      %490 = vst.msk [vmem:[%s486 + $0x21] sm:$0xff] %vm483, %v438
      %491 = vst.msk [vmem:[%s486 + $0x31] sm:$0xff] %vm483, %v439
      %492 = vst.msk [vmem:[%s486 + $0x39] sm:$0xff] %vm483, %v440
      %493 = vst.msk [vmem:[%s486 + $0x49] sm:$0xff] %vm483, %v441
      %494 = vst.msk [vmem:[%s486 + $0x51] sm:$0xff] %vm483, %v442
      %495 = vst.msk [vmem:[%s486 + $0x61] sm:$0xff] %vm483, %v443
      %496 = vst.msk [vmem:[%s486 + $0x69] sm:$0xff] %vm483, %v444
      %497 = vst.msk [vmem:[%s486 + $0x79] sm:$0xff] %vm483, %v445
      %498 = vst.msk [vmem:[%s486 + $0x81] sm:$0xff] %vm483, %v446
      %499 = vst.msk [vmem:[%s486 + $0x91] sm:$0xff] %vm483, %v447
      %500 = vst.msk [vmem:[%s486 + $0x99] sm:$0xff] %vm483, %v448
      %501 = vst.msk [vmem:[%s486 + $0xa9] sm:$0xff] %vm483, %v449
      %502 = vst.msk [vmem:[%s486 + $0xb1] sm:$0xff] %vm483, %v450
      %s503 = scalar_lea.vmem [#allocation2], 216
      %504 = vst.msk [vmem:[%s503 + $0x1] sm:$0xff] %vm483, %v460
      %505 = vst.msk [vmem:[%s503 + $0x9] sm:$0xff] %vm483, %v461
      %v506 = vld [vmem:[#allocation2] sm:$0xff]
      %v507 = vld [vmem:[#allocation2 + $0x8] sm:$0xff]
      %v508 = vld [vmem:[#allocation2 + $0x18] sm:$0xff]
      %v509 = vld [vmem:[#allocation2 + $0x20] sm:$0xff]
      %v510 = vld [vmem:[#allocation2 + $0x30] sm:$0xff]
      %v511 = vld [vmem:[#allocation2 + $0x38] sm:$0xff]
      %v512 = vld [vmem:[#allocation2 + $0x48] sm:$0xff]
      %v513 = vld [vmem:[#allocation2 + $0x50] sm:$0xff]
      %v514 = vld [vmem:[#allocation2 + $0x60] sm:$0xff]
      %v515 = vld [vmem:[#allocation2 + $0x68] sm:$0xff]
      %v516 = vld [vmem:[#allocation2 + $0x78] sm:$0xff]
      %v517 = vld [vmem:[#allocation2 + $0x80] sm:$0xff]
      %v518 = vld [vmem:[#allocation2 + $0x90] sm:$0xff]
      %v519 = vld [vmem:[#allocation2 + $0x98] sm:$0xff]
      %v520 = vld [vmem:[#allocation2 + $0xa8] sm:$0xff]
      %v521 = vld [vmem:[#allocation2 + $0xb0] sm:$0xff]
      %v522 = vld [vmem:[#allocation2 + $0x1] sm:$0xff]
      %v523 = vld [vmem:[#allocation2 + $0x9] sm:$0xff]
      %v524 = vld [vmem:[#allocation2 + $0x19] sm:$0xff]
      %v525 = vld [vmem:[#allocation2 + $0x21] sm:$0xff]
      %v526 = vld [vmem:[#allocation2 + $0x31] sm:$0xff]
      %v527 = vld [vmem:[#allocation2 + $0x39] sm:$0xff]
      %v528 = vld [vmem:[#allocation2 + $0x49] sm:$0xff]
      %v529 = vld [vmem:[#allocation2 + $0x51] sm:$0xff]
      %v530 = vld [vmem:[#allocation2 + $0x61] sm:$0xff]
      %v531 = vld [vmem:[#allocation2 + $0x69] sm:$0xff]
      %v532 = vld [vmem:[#allocation2 + $0x79] sm:$0xff]
      %v533 = vld [vmem:[#allocation2 + $0x81] sm:$0xff]
      %v534 = vld [vmem:[#allocation2 + $0x91] sm:$0xff]
      %v535 = vld [vmem:[#allocation2 + $0x99] sm:$0xff]
      %v536 = vld [vmem:[#allocation2 + $0xa9] sm:$0xff]
      %v537 = vld [vmem:[#allocation2 + $0xb1] sm:$0xff]
      %v538 = vld [vmem:[#allocation2 + $0x2] sm:$0xff]
      %v539 = vld [vmem:[#allocation2 + $0xa] sm:$0xff]
      %v540 = vld [vmem:[#allocation2 + $0x1a] sm:$0xff]
      %v541 = vld [vmem:[#allocation2 + $0x22] sm:$0xff]
      %v542 = vld [vmem:[#allocation2 + $0x32] sm:$0xff]
      %v543 = vld [vmem:[#allocation2 + $0x3a] sm:$0xff]
      %v544 = vld [vmem:[#allocation2 + $0x4a] sm:$0xff]
      %v545 = vld [vmem:[#allocation2 + $0x52] sm:$0xff]
      %v546 = vld [vmem:[#allocation2 + $0x62] sm:$0xff]
      %v547 = vld [vmem:[#allocation2 + $0x6a] sm:$0xff]
      %v548 = vld [vmem:[#allocation2 + $0x7a] sm:$0xff]
      %v549 = vld [vmem:[#allocation2 + $0x82] sm:$0xff]
      %v550 = vld [vmem:[#allocation2 + $0x92] sm:$0xff]
      %v551 = vld [vmem:[#allocation2 + $0x9a] sm:$0xff]
      %v552 = vld [vmem:[#allocation2 + $0xaa] sm:$0xff]
      %v553 = vld [vmem:[#allocation2 + $0xb2] sm:$0xff]
      %v554 = vld [vmem:[%s486] sm:$0xff]
      %v555 = vld [vmem:[%s486 + $0x8] sm:$0xff]
      %v556 = vld [vmem:[%s486 + $0x18] sm:$0xff]
      %v557 = vld [vmem:[%s486 + $0x20] sm:$0xff]
      %v558 = vld [vmem:[%s486 + $0x30] sm:$0xff]
      %v559 = vld [vmem:[%s486 + $0x38] sm:$0xff]
      %v560 = vld [vmem:[%s486 + $0x48] sm:$0xff]
      %v561 = vld [vmem:[%s486 + $0x50] sm:$0xff]
      %v562 = vld [vmem:[%s486 + $0x60] sm:$0xff]
      %v563 = vld [vmem:[%s486 + $0x68] sm:$0xff]
      %v564 = vld [vmem:[%s486 + $0x78] sm:$0xff]
      %v565 = vld [vmem:[%s486 + $0x80] sm:$0xff]
      %v566 = vld [vmem:[%s486 + $0x90] sm:$0xff]
      %v567 = vld [vmem:[%s486 + $0x98] sm:$0xff]
      %v568 = vld [vmem:[%s486 + $0xa8] sm:$0xff]
      %v569 = vld [vmem:[%s486 + $0xb0] sm:$0xff]
      %v570 = vld [vmem:[%s486 + $0x1] sm:$0xff]
      %v571 = vld [vmem:[%s486 + $0x9] sm:$0xff]
      %v572 = vld [vmem:[%s486 + $0x19] sm:$0xff]
      %v573 = vld [vmem:[%s486 + $0x21] sm:$0xff]
      %v574 = vld [vmem:[%s486 + $0x31] sm:$0xff]
      %v575 = vld [vmem:[%s486 + $0x39] sm:$0xff]
      %v576 = vld [vmem:[%s486 + $0x49] sm:$0xff]
      %v577 = vld [vmem:[%s486 + $0x51] sm:$0xff]
      %v578 = vld [vmem:[%s486 + $0x61] sm:$0xff]
      %v579 = vld [vmem:[%s486 + $0x69] sm:$0xff]
      %v580 = vld [vmem:[%s486 + $0x79] sm:$0xff]
      %v581 = vld [vmem:[%s486 + $0x81] sm:$0xff]
      %v582 = vld [vmem:[%s486 + $0x91] sm:$0xff]
      %v583 = vld [vmem:[%s486 + $0x99] sm:$0xff]
      %v584 = vld [vmem:[%s486 + $0xa9] sm:$0xff]
      %v585 = vld [vmem:[%s486 + $0xb1] sm:$0xff]
      %v586 = vld [vmem:[%s486 + $0x2] sm:$0xff]
      %v587 = vld [vmem:[%s486 + $0xa] sm:$0xff]
      %v588 = vld [vmem:[%s486 + $0x1a] sm:$0xff]
      %v589 = vld [vmem:[%s486 + $0x22] sm:$0xff]
      %v590 = vld [vmem:[%s486 + $0x32] sm:$0xff]
      %v591 = vld [vmem:[%s486 + $0x3a] sm:$0xff]
      %v592 = vld [vmem:[%s486 + $0x4a] sm:$0xff]
      %v593 = vld [vmem:[%s486 + $0x52] sm:$0xff]
      %v594 = vld [vmem:[%s486 + $0x62] sm:$0xff]
      %v595 = vld [vmem:[%s486 + $0x6a] sm:$0xff]
      %v596 = vld [vmem:[%s486 + $0x7a] sm:$0xff]
      %v597 = vld [vmem:[%s486 + $0x82] sm:$0xff]
      %v598 = vld [vmem:[%s486 + $0x92] sm:$0xff]
      %v599 = vld [vmem:[%s486 + $0x9a] sm:$0xff]
      %v600 = vld [vmem:[%s486 + $0xaa] sm:$0xff]
      %v601 = vld [vmem:[%s486 + $0xb2] sm:$0xff]
      %s602 = scalar_lea.vmem [#allocation2], 48
      %v603 = vld [vmem:[%s602] sm:$0xff]
      %v604 = vld [vmem:[%s602 + $0x8] sm:$0xff]
      %v605 = vld [vmem:[%s602 + $0x18] sm:$0xff]
      %v606 = vld [vmem:[%s602 + $0x20] sm:$0xff]
      %v607 = vld [vmem:[%s602 + $0x30] sm:$0xff]
      %v608 = vld [vmem:[%s602 + $0x38] sm:$0xff]
      %v609 = vld [vmem:[%s602 + $0x48] sm:$0xff]
      %v610 = vld [vmem:[%s602 + $0x50] sm:$0xff]
      %v611 = vld [vmem:[%s602 + $0x60] sm:$0xff]
      %v612 = vld [vmem:[%s602 + $0x68] sm:$0xff]
      %v613 = vld [vmem:[%s602 + $0x78] sm:$0xff]
      %v614 = vld [vmem:[%s602 + $0x80] sm:$0xff]
      %v615 = vld [vmem:[%s602 + $0x90] sm:$0xff]
      %v616 = vld [vmem:[%s602 + $0x98] sm:$0xff]
      %v617 = vld [vmem:[%s602 + $0xa8] sm:$0xff]
      %v618 = vld [vmem:[%s602 + $0xb0] sm:$0xff]
      %v619 = vld [vmem:[%s602 + $0x1] sm:$0xff]
      %v620 = vld [vmem:[%s602 + $0x9] sm:$0xff]
      %v621 = vld [vmem:[%s602 + $0x19] sm:$0xff]
      %v622 = vld [vmem:[%s602 + $0x21] sm:$0xff]
      %v623 = vld [vmem:[%s602 + $0x31] sm:$0xff]
      %v624 = vld [vmem:[%s602 + $0x39] sm:$0xff]
      %v625 = vld [vmem:[%s602 + $0x49] sm:$0xff]
      %v626 = vld [vmem:[%s602 + $0x51] sm:$0xff]
      %v627 = vld [vmem:[%s602 + $0x61] sm:$0xff]
      %v628 = vld [vmem:[%s602 + $0x69] sm:$0xff]
      %v629 = vld [vmem:[%s602 + $0x79] sm:$0xff]
      %v630 = vld [vmem:[%s602 + $0x81] sm:$0xff]
      %v631 = vld [vmem:[%s602 + $0x91] sm:$0xff]
      %v632 = vld [vmem:[%s602 + $0x99] sm:$0xff]
      %v633 = vld [vmem:[%s602 + $0xa9] sm:$0xff]
      %v634 = vld [vmem:[%s602 + $0xb1] sm:$0xff]
      %v635 = vld [vmem:[%s602 + $0x2] sm:$0xff]
      %v636 = vld [vmem:[%s602 + $0xa] sm:$0xff]
      %v637 = vld [vmem:[%s602 + $0x1a] sm:$0xff]
      %v638 = vld [vmem:[%s602 + $0x22] sm:$0xff]
      %v639 = vld [vmem:[%s602 + $0x32] sm:$0xff]
      %v640 = vld [vmem:[%s602 + $0x3a] sm:$0xff]
      %v641 = vld [vmem:[%s602 + $0x4a] sm:$0xff]
      %v642 = vld [vmem:[%s602 + $0x52] sm:$0xff]
      %v643 = vld [vmem:[%s602 + $0x62] sm:$0xff]
      %v644 = vld [vmem:[%s602 + $0x6a] sm:$0xff]
      %v645 = vld [vmem:[%s602 + $0x7a] sm:$0xff]
      %v646 = vld [vmem:[%s602 + $0x82] sm:$0xff]
      %v647 = vld [vmem:[%s602 + $0x92] sm:$0xff]
      %v648 = vld [vmem:[%s602 + $0x9a] sm:$0xff]
      %v649 = vld [vmem:[%s602 + $0xaa] sm:$0xff]
      %v650 = vld [vmem:[%s602 + $0xb2] sm:$0xff]
      %667 = vrot.lane.b32.xlu0 %v522, 8
      %v668 = vpop.permute.xlu0 %667
      %669 = vrot.lane.b32.xlu0 %v523, 8
      %v670 = vpop.permute.xlu0 %669
      %671 = vrot.lane.b32.xlu0 %v524, 8
      %v672 = vpop.permute.xlu0 %671
      %673 = vrot.lane.b32.xlu0 %v525, 8
      %v674 = vpop.permute.xlu0 %673
      %675 = vrot.lane.b32.xlu0 %v526, 8
      %v676 = vpop.permute.xlu0 %675
      %677 = vrot.lane.b32.xlu0 %v527, 8
      %v678 = vpop.permute.xlu0 %677
      %679 = vrot.lane.b32.xlu0 %v528, 8
      %v680 = vpop.permute.xlu0 %679
      %681 = vrot.lane.b32.xlu0 %v529, 8
      %v682 = vpop.permute.xlu0 %681
      %683 = vrot.lane.b32.xlu0 %v530, 8
      %v684 = vpop.permute.xlu0 %683
      %685 = vrot.lane.b32.xlu0 %v531, 8
      %v686 = vpop.permute.xlu0 %685
      %687 = vrot.lane.b32.xlu0 %v532, 8
      %v688 = vpop.permute.xlu0 %687
      %689 = vrot.lane.b32.xlu0 %v533, 8
      %v690 = vpop.permute.xlu0 %689
      %691 = vrot.lane.b32.xlu0 %v534, 8
      %v692 = vpop.permute.xlu0 %691
      %693 = vrot.lane.b32.xlu0 %v535, 8
      %v694 = vpop.permute.xlu0 %693
      %695 = vrot.lane.b32.xlu0 %v536, 8
      %v696 = vpop.permute.xlu0 %695
      %697 = vrot.lane.b32.xlu0 %v537, 8
      %v698 = vpop.permute.xlu0 %697
      %731 = vrot.lane.b32.xlu0 %v538, 16
      %v732 = vpop.permute.xlu0 %731
      %733 = vrot.lane.b32.xlu0 %v539, 16
      %v734 = vpop.permute.xlu0 %733
      %735 = vrot.lane.b32.xlu0 %v540, 16
      %v736 = vpop.permute.xlu0 %735
      %737 = vrot.lane.b32.xlu0 %v541, 16
      %v738 = vpop.permute.xlu0 %737
      %739 = vrot.lane.b32.xlu0 %v542, 16
      %v740 = vpop.permute.xlu0 %739
      %741 = vrot.lane.b32.xlu0 %v543, 16
      %v742 = vpop.permute.xlu0 %741
      %743 = vrot.lane.b32.xlu0 %v544, 16
      %v744 = vpop.permute.xlu0 %743
      %745 = vrot.lane.b32.xlu0 %v545, 16
      %v746 = vpop.permute.xlu0 %745
      %747 = vrot.lane.b32.xlu0 %v546, 16
      %v748 = vpop.permute.xlu0 %747
      %749 = vrot.lane.b32.xlu0 %v547, 16
      %v750 = vpop.permute.xlu0 %749
      %751 = vrot.lane.b32.xlu0 %v548, 16
      %v752 = vpop.permute.xlu0 %751
      %753 = vrot.lane.b32.xlu0 %v549, 16
      %v754 = vpop.permute.xlu0 %753
      %755 = vrot.lane.b32.xlu0 %v550, 16
      %v756 = vpop.permute.xlu0 %755
      %757 = vrot.lane.b32.xlu0 %v551, 16
      %v758 = vpop.permute.xlu0 %757
      %759 = vrot.lane.b32.xlu0 %v552, 16
      %v760 = vpop.permute.xlu0 %759
      %761 = vrot.lane.b32.xlu0 %v553, 16
      %v762 = vpop.permute.xlu0 %761
      %795 = vrot.lane.b32.xlu0 %v554, 24
      %v796 = vpop.permute.xlu0 %795
      %797 = vrot.lane.b32.xlu0 %v555, 24
      %v798 = vpop.permute.xlu0 %797
      %799 = vrot.lane.b32.xlu0 %v556, 24
      %v800 = vpop.permute.xlu0 %799
      %801 = vrot.lane.b32.xlu0 %v557, 24
      %v802 = vpop.permute.xlu0 %801
      %803 = vrot.lane.b32.xlu0 %v558, 24
      %v804 = vpop.permute.xlu0 %803
      %805 = vrot.lane.b32.xlu0 %v559, 24
      %v806 = vpop.permute.xlu0 %805
      %807 = vrot.lane.b32.xlu0 %v560, 24
      %v808 = vpop.permute.xlu0 %807
      %809 = vrot.lane.b32.xlu0 %v561, 24
      %v810 = vpop.permute.xlu0 %809
      %811 = vrot.lane.b32.xlu0 %v562, 24
      %v812 = vpop.permute.xlu0 %811
      %813 = vrot.lane.b32.xlu0 %v563, 24
      %v814 = vpop.permute.xlu0 %813
      %815 = vrot.lane.b32.xlu0 %v564, 24
      %v816 = vpop.permute.xlu0 %815
      %817 = vrot.lane.b32.xlu0 %v565, 24
      %v818 = vpop.permute.xlu0 %817
      %819 = vrot.lane.b32.xlu0 %v566, 24
      %v820 = vpop.permute.xlu0 %819
      %821 = vrot.lane.b32.xlu0 %v567, 24
      %v822 = vpop.permute.xlu0 %821
      %823 = vrot.lane.b32.xlu0 %v568, 24
      %v824 = vpop.permute.xlu0 %823
      %825 = vrot.lane.b32.xlu0 %v569, 24
      %v826 = vpop.permute.xlu0 %825
      %859 = vrot.lane.b32.xlu0 %v570, 32
      %v860 = vpop.permute.xlu0 %859
      %861 = vrot.lane.b32.xlu0 %v571, 32
      %v862 = vpop.permute.xlu0 %861
      %863 = vrot.lane.b32.xlu0 %v572, 32
      %v864 = vpop.permute.xlu0 %863
      %865 = vrot.lane.b32.xlu0 %v573, 32
      %v866 = vpop.permute.xlu0 %865
      %867 = vrot.lane.b32.xlu0 %v574, 32
      %v868 = vpop.permute.xlu0 %867
      %869 = vrot.lane.b32.xlu0 %v575, 32
      %v870 = vpop.permute.xlu0 %869
      %871 = vrot.lane.b32.xlu0 %v576, 32
      %v872 = vpop.permute.xlu0 %871
      %873 = vrot.lane.b32.xlu0 %v577, 32
      %v874 = vpop.permute.xlu0 %873
      %875 = vrot.lane.b32.xlu0 %v578, 32
      %v876 = vpop.permute.xlu0 %875
      %877 = vrot.lane.b32.xlu0 %v579, 32
      %v878 = vpop.permute.xlu0 %877
      %879 = vrot.lane.b32.xlu0 %v580, 32
      %v880 = vpop.permute.xlu0 %879
      %881 = vrot.lane.b32.xlu0 %v581, 32
      %v882 = vpop.permute.xlu0 %881
      %883 = vrot.lane.b32.xlu0 %v582, 32
      %v884 = vpop.permute.xlu0 %883
      %885 = vrot.lane.b32.xlu0 %v583, 32
      %v886 = vpop.permute.xlu0 %885
      %887 = vrot.lane.b32.xlu0 %v584, 32
      %v888 = vpop.permute.xlu0 %887
      %889 = vrot.lane.b32.xlu0 %v585, 32
      %v890 = vpop.permute.xlu0 %889
      %923 = vrot.lane.b32.xlu0 %v586, 40
      %v924 = vpop.permute.xlu0 %923
      %925 = vrot.lane.b32.xlu0 %v587, 40
      %v926 = vpop.permute.xlu0 %925
      %927 = vrot.lane.b32.xlu0 %v588, 40
      %v928 = vpop.permute.xlu0 %927
      %929 = vrot.lane.b32.xlu0 %v589, 40
      %v930 = vpop.permute.xlu0 %929
      %931 = vrot.lane.b32.xlu0 %v590, 40
      %v932 = vpop.permute.xlu0 %931
      %933 = vrot.lane.b32.xlu0 %v591, 40
      %v934 = vpop.permute.xlu0 %933
      %935 = vrot.lane.b32.xlu0 %v592, 40
      %v936 = vpop.permute.xlu0 %935
      %937 = vrot.lane.b32.xlu0 %v593, 40
      %v938 = vpop.permute.xlu0 %937
      %939 = vrot.lane.b32.xlu0 %v594, 40
      %v940 = vpop.permute.xlu0 %939
      %941 = vrot.lane.b32.xlu0 %v595, 40
      %v942 = vpop.permute.xlu0 %941
      %943 = vrot.lane.b32.xlu0 %v596, 40
      %v944 = vpop.permute.xlu0 %943
      %945 = vrot.lane.b32.xlu0 %v597, 40
      %v946 = vpop.permute.xlu0 %945
      %947 = vrot.lane.b32.xlu0 %v598, 40
      %v948 = vpop.permute.xlu0 %947
      %949 = vrot.lane.b32.xlu0 %v599, 40
      %v950 = vpop.permute.xlu0 %949
      %951 = vrot.lane.b32.xlu0 %v600, 40
      %v952 = vpop.permute.xlu0 %951
      %953 = vrot.lane.b32.xlu0 %v601, 40
      %v954 = vpop.permute.xlu0 %953
      %987 = vrot.lane.b32.xlu0 %v603, 48
      %v988 = vpop.permute.xlu0 %987
      %989 = vrot.lane.b32.xlu0 %v604, 48
      %v990 = vpop.permute.xlu0 %989
      %991 = vrot.lane.b32.xlu0 %v605, 48
      %v992 = vpop.permute.xlu0 %991
      %993 = vrot.lane.b32.xlu0 %v606, 48
      %v994 = vpop.permute.xlu0 %993
      %995 = vrot.lane.b32.xlu0 %v607, 48
      %v996 = vpop.permute.xlu0 %995
      %997 = vrot.lane.b32.xlu0 %v608, 48
      %v998 = vpop.permute.xlu0 %997
      %999 = vrot.lane.b32.xlu0 %v609, 48
      %v1000 = vpop.permute.xlu0 %999
      %1001 = vrot.lane.b32.xlu0 %v610, 48
      %v1002 = vpop.permute.xlu0 %1001
      %1003 = vrot.lane.b32.xlu0 %v611, 48
      %v1004 = vpop.permute.xlu0 %1003
      %1005 = vrot.lane.b32.xlu0 %v612, 48
      %v1006 = vpop.permute.xlu0 %1005
      %1007 = vrot.lane.b32.xlu0 %v613, 48
      %v1008 = vpop.permute.xlu0 %1007
      %1009 = vrot.lane.b32.xlu0 %v614, 48
      %v1010 = vpop.permute.xlu0 %1009
      %1011 = vrot.lane.b32.xlu0 %v615, 48
      %v1012 = vpop.permute.xlu0 %1011
      %1013 = vrot.lane.b32.xlu0 %v616, 48
      %v1014 = vpop.permute.xlu0 %1013
      %1015 = vrot.lane.b32.xlu0 %v617, 48
      %v1016 = vpop.permute.xlu0 %1015
      %1017 = vrot.lane.b32.xlu0 %v618, 48
      %v1018 = vpop.permute.xlu0 %1017
      %1051 = vrot.lane.b32.xlu0 %v619, 56
      %v1052 = vpop.permute.xlu0 %1051
      %1053 = vrot.lane.b32.xlu0 %v620, 56
      %v1054 = vpop.permute.xlu0 %1053
      %1055 = vrot.lane.b32.xlu0 %v621, 56
      %v1056 = vpop.permute.xlu0 %1055
      %1057 = vrot.lane.b32.xlu0 %v622, 56
      %v1058 = vpop.permute.xlu0 %1057
      %1059 = vrot.lane.b32.xlu0 %v623, 56
      %v1060 = vpop.permute.xlu0 %1059
      %1061 = vrot.lane.b32.xlu0 %v624, 56
      %v1062 = vpop.permute.xlu0 %1061
      %1063 = vrot.lane.b32.xlu0 %v625, 56
      %v1064 = vpop.permute.xlu0 %1063
      %1065 = vrot.lane.b32.xlu0 %v626, 56
      %v1066 = vpop.permute.xlu0 %1065
      %1067 = vrot.lane.b32.xlu0 %v627, 56
      %v1068 = vpop.permute.xlu0 %1067
      %1069 = vrot.lane.b32.xlu0 %v628, 56
      %v1070 = vpop.permute.xlu0 %1069
      %1071 = vrot.lane.b32.xlu0 %v629, 56
      %v1072 = vpop.permute.xlu0 %1071
      %1073 = vrot.lane.b32.xlu0 %v630, 56
      %v1074 = vpop.permute.xlu0 %1073
      %1075 = vrot.lane.b32.xlu0 %v631, 56
      %v1076 = vpop.permute.xlu0 %1075
      %1077 = vrot.lane.b32.xlu0 %v632, 56
      %v1078 = vpop.permute.xlu0 %1077
      %1079 = vrot.lane.b32.xlu0 %v633, 56
      %v1080 = vpop.permute.xlu0 %1079
      %1081 = vrot.lane.b32.xlu0 %v634, 56
      %v1082 = vpop.permute.xlu0 %1081
      %1115 = vrot.lane.b32.xlu0 %v635, 64
      %v1116 = vpop.permute.xlu0 %1115
      %1117 = vrot.lane.b32.xlu0 %v636, 64
      %v1118 = vpop.permute.xlu0 %1117
      %1119 = vrot.lane.b32.xlu0 %v637, 64
      %v1120 = vpop.permute.xlu0 %1119
      %1121 = vrot.lane.b32.xlu0 %v638, 64
      %v1122 = vpop.permute.xlu0 %1121
      %1123 = vrot.lane.b32.xlu0 %v639, 64
      %v1124 = vpop.permute.xlu0 %1123
      %1125 = vrot.lane.b32.xlu0 %v640, 64
      %v1126 = vpop.permute.xlu0 %1125
      %1127 = vrot.lane.b32.xlu0 %v641, 64
      %v1128 = vpop.permute.xlu0 %1127
      %1129 = vrot.lane.b32.xlu0 %v642, 64
      %v1130 = vpop.permute.xlu0 %1129
      %1131 = vrot.lane.b32.xlu0 %v643, 64
      %v1132 = vpop.permute.xlu0 %1131
      %1133 = vrot.lane.b32.xlu0 %v644, 64
      %v1134 = vpop.permute.xlu0 %1133
      %1135 = vrot.lane.b32.xlu0 %v645, 64
      %v1136 = vpop.permute.xlu0 %1135
      %1137 = vrot.lane.b32.xlu0 %v646, 64
      %v1138 = vpop.permute.xlu0 %1137
      %1139 = vrot.lane.b32.xlu0 %v647, 64
      %v1140 = vpop.permute.xlu0 %1139
      %1141 = vrot.lane.b32.xlu0 %v648, 64
      %v1142 = vpop.permute.xlu0 %1141
      %1143 = vrot.lane.b32.xlu0 %v649, 64
      %v1144 = vpop.permute.xlu0 %1143
      %1145 = vrot.lane.b32.xlu0 %v650, 64
      %v1146 = vpop.permute.xlu0 %1145
      %v1163 = vsel %vm483, %v506, %v668
      %v1164 = vsel %vm483, %v507, %v670
      %v1165 = vsel %vm483, %v508, %v672
      %v1166 = vsel %vm483, %v509, %v674
      %v1167 = vsel %vm483, %v510, %v676
      %v1168 = vsel %vm483, %v511, %v678
      %v1169 = vsel %vm483, %v512, %v680
      %v1170 = vsel %vm483, %v513, %v682
      %v1171 = vsel %vm483, %v514, %v684
      %v1172 = vsel %vm483, %v515, %v686
      %v1173 = vsel %vm483, %v516, %v688
      %v1174 = vsel %vm483, %v517, %v690
      %v1175 = vsel %vm483, %v518, %v692
      %v1176 = vsel %vm483, %v519, %v694
      %v1177 = vsel %vm483, %v520, %v696
      %v1178 = vsel %vm483, %v521, %v698
      %vm1179 = vcmask 130048
      %v1180 = vsel %vm1179, %v1163, %v732
      %v1181 = vsel %vm1179, %v1164, %v734
      %v1182 = vsel %vm1179, %v1165, %v736
      %v1183 = vsel %vm1179, %v1166, %v738
      %v1184 = vsel %vm1179, %v1167, %v740
      %v1185 = vsel %vm1179, %v1168, %v742
      %v1186 = vsel %vm1179, %v1169, %v744
      %v1187 = vsel %vm1179, %v1170, %v746
      %v1188 = vsel %vm1179, %v1171, %v748
      %v1189 = vsel %vm1179, %v1172, %v750
      %v1190 = vsel %vm1179, %v1173, %v752
      %v1191 = vsel %vm1179, %v1174, %v754
      %v1192 = vsel %vm1179, %v1175, %v756
      %v1193 = vsel %vm1179, %v1176, %v758
      %v1194 = vsel %vm1179, %v1177, %v760
      %v1195 = vsel %vm1179, %v1178, %v762
      %vm1196 = vcmask 195584
      %v1197 = vsel %vm1196, %v1180, %v796
      %v1198 = vsel %vm1196, %v1181, %v798
      %v1199 = vsel %vm1196, %v1182, %v800
      %v1200 = vsel %vm1196, %v1183, %v802
      %v1201 = vsel %vm1196, %v1184, %v804
      %v1202 = vsel %vm1196, %v1185, %v806
      %v1203 = vsel %vm1196, %v1186, %v808
      %v1204 = vsel %vm1196, %v1187, %v810
      %v1205 = vsel %vm1196, %v1188, %v812
      %v1206 = vsel %vm1196, %v1189, %v814
      %v1207 = vsel %vm1196, %v1190, %v816
      %v1208 = vsel %vm1196, %v1191, %v818
      %v1209 = vsel %vm1196, %v1192, %v820
      %v1210 = vsel %vm1196, %v1193, %v822
      %v1211 = vsel %vm1196, %v1194, %v824
      %v1212 = vsel %vm1196, %v1195, %v826
      %vm1213 = vcmask 261120
      %v1214 = vsel %vm1213, %v1197, %v860
      %v1215 = vsel %vm1213, %v1198, %v862
      %v1216 = vsel %vm1213, %v1199, %v864
      %v1217 = vsel %vm1213, %v1200, %v866
      %v1218 = vsel %vm1213, %v1201, %v868
      %v1219 = vsel %vm1213, %v1202, %v870
      %v1220 = vsel %vm1213, %v1203, %v872
      %v1221 = vsel %vm1213, %v1204, %v874
      %v1222 = vsel %vm1213, %v1205, %v876
      %v1223 = vsel %vm1213, %v1206, %v878
      %v1224 = vsel %vm1213, %v1207, %v880
      %v1225 = vsel %vm1213, %v1208, %v882
      %v1226 = vsel %vm1213, %v1209, %v884
      %v1227 = vsel %vm1213, %v1210, %v886
      %v1228 = vsel %vm1213, %v1211, %v888
      %v1229 = vsel %vm1213, %v1212, %v890
      %vm1230 = vcmask 326656
      %v1231 = vsel %vm1230, %v1214, %v924
      %v1232 = vsel %vm1230, %v1215, %v926
      %v1233 = vsel %vm1230, %v1216, %v928
      %v1234 = vsel %vm1230, %v1217, %v930
      %v1235 = vsel %vm1230, %v1218, %v932
      %v1236 = vsel %vm1230, %v1219, %v934
      %v1237 = vsel %vm1230, %v1220, %v936
      %v1238 = vsel %vm1230, %v1221, %v938
      %v1239 = vsel %vm1230, %v1222, %v940
      %v1240 = vsel %vm1230, %v1223, %v942
      %v1241 = vsel %vm1230, %v1224, %v944
      %v1242 = vsel %vm1230, %v1225, %v946
      %v1243 = vsel %vm1230, %v1226, %v948
      %v1244 = vsel %vm1230, %v1227, %v950
      %v1245 = vsel %vm1230, %v1228, %v952
      %v1246 = vsel %vm1230, %v1229, %v954
      %vm1247 = vcmask 392192
      %v1248 = vsel %vm1247, %v1231, %v988
      %v1249 = vsel %vm1247, %v1232, %v990
      %v1250 = vsel %vm1247, %v1233, %v992
      %v1251 = vsel %vm1247, %v1234, %v994
      %v1252 = vsel %vm1247, %v1235, %v996
      %v1253 = vsel %vm1247, %v1236, %v998
      %v1254 = vsel %vm1247, %v1237, %v1000
      %v1255 = vsel %vm1247, %v1238, %v1002
      %v1256 = vsel %vm1247, %v1239, %v1004
      %v1257 = vsel %vm1247, %v1240, %v1006
      %v1258 = vsel %vm1247, %v1241, %v1008
      %v1259 = vsel %vm1247, %v1242, %v1010
      %v1260 = vsel %vm1247, %v1243, %v1012
      %v1261 = vsel %vm1247, %v1244, %v1014
      %v1262 = vsel %vm1247, %v1245, %v1016
      %v1263 = vsel %vm1247, %v1246, %v1018
      %vm1264 = vcmask 457728
      %v1265 = vsel %vm1264, %v1248, %v1052
      %v1266 = vsel %vm1264, %v1249, %v1054
      %v1267 = vsel %vm1264, %v1250, %v1056
      %v1268 = vsel %vm1264, %v1251, %v1058
      %v1269 = vsel %vm1264, %v1252, %v1060
      %v1270 = vsel %vm1264, %v1253, %v1062
      %v1271 = vsel %vm1264, %v1254, %v1064
      %v1272 = vsel %vm1264, %v1255, %v1066
      %v1273 = vsel %vm1264, %v1256, %v1068
      %v1274 = vsel %vm1264, %v1257, %v1070
      %v1275 = vsel %vm1264, %v1258, %v1072
      %v1276 = vsel %vm1264, %v1259, %v1074
      %v1277 = vsel %vm1264, %v1260, %v1076
      %v1278 = vsel %vm1264, %v1261, %v1078
      %v1279 = vsel %vm1264, %v1262, %v1080
      %v1280 = vsel %vm1264, %v1263, %v1082
      %vm1281 = vcmask 523264
      %v1282 = vsel %vm1281, %v1265, %v1116
      %v1283 = vsel %vm1281, %v1266, %v1118
      %v1284 = vsel %vm1281, %v1267, %v1120
      %v1285 = vsel %vm1281, %v1268, %v1122
      %v1286 = vsel %vm1281, %v1269, %v1124
      %v1287 = vsel %vm1281, %v1270, %v1126
      %v1288 = vsel %vm1281, %v1271, %v1128
      %v1289 = vsel %vm1281, %v1272, %v1130
      %v1290 = vsel %vm1281, %v1273, %v1132
      %v1291 = vsel %vm1281, %v1274, %v1134
      %v1292 = vsel %vm1281, %v1275, %v1136
      %v1293 = vsel %vm1281, %v1276, %v1138
      %v1294 = vsel %vm1281, %v1277, %v1140
      %v1295 = vsel %vm1281, %v1278, %v1142
      %v1296 = vsel %vm1281, %v1279, %v1144
      %v1297 = vsel %vm1281, %v1280, %v1146
      %v1298 = vpack.c.bf16 %v1283, %v1282
      %v1299 = vpack.c.bf16 %v1285, %v1284
      %v1300 = vpack.c.bf16 %v1287, %v1286
      %v1301 = vpack.c.bf16 %v1289, %v1288
      %v1302 = vpack.c.bf16 %v1291, %v1290
      %v1303 = vpack.c.bf16 %v1293, %v1292
      %v1304 = vpack.c.bf16 %v1295, %v1294
      %v1305 = vpack.c.bf16 %v1297, %v1296
      %v1306 = vld [vmem:[%s2] sm:$0xf]
      %v1307 = vld [vmem:[%s2 + $0x4] sm:$0xf]
      %v1308 = vld [vmem:[%s2 + $0x8] sm:$0xf]
      %v1309 = vld [vmem:[%s2 + $0xc] sm:$0xf]
      %v1310 = vld [vmem:[%s2 + $0x10] sm:$0xf]
      %v1311 = vld [vmem:[%s2 + $0x14] sm:$0xf]
      %v1312 = vld [vmem:[%s2 + $0x18] sm:$0xf]
      %v1313 = vld [vmem:[%s2 + $0x1c] sm:$0xf]
      %v1314 = vld [vmem:[%s2 + $0x20] sm:$0xf]
      %v1324 = vunpack.c.l.b16 %v1306
      %v1325 = vunpack.c.l.b16 %v1307
      %v1326 = vunpack.c.l.b16 %v1308
      %v1327 = vunpack.c.l.b16 %v1309
      %v1328 = vunpack.c.l.b16 %v1310
      %v1329 = vunpack.c.l.b16 %v1311
      %v1330 = vunpack.c.l.b16 %v1312
      %v1331 = vunpack.c.l.b16 %v1313
      %v1332 = vunpack.c.l.b16 %v1314
      %v1333 = vpack.c.b16 %v1325, %v1324
      %v1334 = vpack.c.b16 %v1327, %v1326
      %v1335 = vpack.c.b16 %v1329, %v1328
      %v1336 = vpack.c.b16 %v1331, %v1330
      %v1337 = vpack.c.b16 %v1332, %v1332
      %vm1342 = vcmask 588800
      %v1344 = vsel %vm1342, %v1298, 0
      %v1347 = vsel %vm1342, %v1299, 0
      %v1350 = vsel %vm1342, %v1300, 0
      %v1353 = vsel %vm1342, %v1301, 0
      %v1356 = vsel %vm1342, %v1302, 0
      %v1359 = vsel %vm1342, %v1303, 0
      %v1362 = vsel %vm1342, %v1304, 0
      %v1365 = vsel %vm1342, %v1305, 0
      %vm1367 = vcmask 1043456
      %v1369 = vsel %vm1367, %v1337, 0
      %1371 = vmatprep.subr.bf16.mxu0 0
      %1372 = vmatpush1.bf16.msra.mxu0 0
      %1373 = vmatprep.subr.bf16.mxu0 0
      %1374 = vmatpush1.bf16.msra.mxu0 0
      %1375 = vmatprep.subr.bf16.mxu0 0
      %1376 = vmatpush1.bf16.msra.mxu0 0
      %1377 = vmatprep.subr.bf16.mxu0 0
      %1378 = vmatpush1.bf16.msra.mxu0 %v1369
      %1379 = vmatprep.subr.bf16.mxu0 0
      %1380 = vmatpush1.bf16.msra.mxu0 %v1336
      %1381 = vmatprep.subr.bf16.mxu0 0
      %1382 = vmatpush1.bf16.msra.mxu0 %v1335
      %1383 = vmatprep.subr.bf16.mxu0 0
      %1384 = vmatpush1.bf16.msra.mxu0 %v1334
      %1385 = vmatprep.subr.bf16.mxu0 0
      %1386 = vmatpush1.bf16.msra.mxu0 %v1333
      %1387 = vmatprep.subr.bf16.mxu0 0
      %1388 = vmatpush2.bf16.msra.mxu0 0
      %1389 = vmatprep.subr.bf16.mxu0 0
      %1390 = vmatpush2.bf16.msra.mxu0 0
      %1391 = vmatprep.subr.bf16.mxu0 0
      %1392 = vmatpush2.bf16.msra.mxu0 0
      %1393 = vmatprep.subr.bf16.mxu0 0
      %1394 = vmatpush2.bf16.msra.mxu0 0
      %1395 = vmatprep.subr.bf16.mxu0 0
      %1396 = vmatpush2.bf16.msra.mxu0 0
      %1397 = vmatprep.subr.bf16.mxu0 0
      %1398 = vmatpush2.bf16.msra.mxu0 0
      %1399 = vmatprep.subr.bf16.mxu0 0
      %1400 = vmatpush2.bf16.msra.mxu0 0
      %1401 = vmatprep.subr.bf16.mxu0 0
      %1402 = vmatpush2.bf16.msra.mxu0 0
      %1403 = vmatprep.mubr.bf16.mxu0 0
      %1404 = vmatmul.mubr.bf16.gmra.mxu0 %v1344
      %v1405 = vpop.f32.mrf.mxu0
      %v1406 = vadd.f32 0.0, %v1405
      %v1407 = vpop.f32.mrf.mxu0
      %v1408 = vpop.f32.mrf.mxu0
      %v1409 = vadd.f32 0.0, %v1408
      %v1410 = vpop.f32.mrf.mxu0
      %1411 = vmatprep.mubr.bf16.mxu0 0
      %1412 = vmatmul.mubr.bf16.gmra.mxu0 %v1347
      %v1413 = vpop.f32.mrf.mxu0
      %v1414 = vadd.f32 0.0, %v1413
      %v1415 = vpop.f32.mrf.mxu0
      %v1416 = vpop.f32.mrf.mxu0
      %v1417 = vadd.f32 0.0, %v1416
      %v1418 = vpop.f32.mrf.mxu0
      %1419 = vmatprep.mubr.bf16.mxu0 0
      %1420 = vmatmul.mubr.bf16.gmra.mxu0 %v1350
      %v1421 = vpop.f32.mrf.mxu0
      %v1422 = vadd.f32 0.0, %v1421
      %v1423 = vpop.f32.mrf.mxu0
      %v1424 = vpop.f32.mrf.mxu0
      %v1425 = vadd.f32 0.0, %v1424
      %v1426 = vpop.f32.mrf.mxu0
      %1427 = vmatprep.mubr.bf16.mxu0 0
      %1428 = vmatmul.mubr.bf16.gmra.mxu0 %v1353
      %v1429 = vpop.f32.mrf.mxu0
      %v1430 = vadd.f32 0.0, %v1429
      %v1431 = vpop.f32.mrf.mxu0
      %v1432 = vpop.f32.mrf.mxu0
      %v1433 = vadd.f32 0.0, %v1432
      %v1434 = vpop.f32.mrf.mxu0
      %1435 = vmatprep.mubr.bf16.mxu0 0
      %1436 = vmatmul.mubr.bf16.gmra.mxu0 %v1356
      %v1437 = vpop.f32.mrf.mxu0
      %v1438 = vadd.f32 0.0, %v1437
      %v1439 = vpop.f32.mrf.mxu0
      %v1440 = vpop.f32.mrf.mxu0
      %v1441 = vadd.f32 0.0, %v1440
      %v1442 = vpop.f32.mrf.mxu0
      %1443 = vmatprep.mubr.bf16.mxu0 0
      %1444 = vmatmul.mubr.bf16.gmra.mxu0 %v1359
      %v1445 = vpop.f32.mrf.mxu0
      %v1446 = vadd.f32 0.0, %v1445
      %v1447 = vpop.f32.mrf.mxu0
      %v1448 = vpop.f32.mrf.mxu0
      %v1449 = vadd.f32 0.0, %v1448
      %v1450 = vpop.f32.mrf.mxu0
      %1451 = vmatprep.mubr.bf16.mxu0 0
      %1452 = vmatmul.mubr.bf16.gmra.mxu0 %v1362
      %v1453 = vpop.f32.mrf.mxu0
      %v1454 = vadd.f32 0.0, %v1453
      %v1455 = vpop.f32.mrf.mxu0
      %v1456 = vpop.f32.mrf.mxu0
      %v1457 = vadd.f32 0.0, %v1456
      %v1458 = vpop.f32.mrf.mxu0
      %1459 = vmatprep.mubr.bf16.mxu0 0
      %1460 = vmatmul.mubr.bf16.gmra.mxu0 %v1365
      %v1461 = vpop.f32.mrf.mxu0
      %v1462 = vadd.f32 0.0, %v1461
      %v1463 = vpop.f32.mrf.mxu0
      %v1464 = vpop.f32.mrf.mxu0
      %v1465 = vadd.f32 0.0, %v1464
      %v1466 = vpop.f32.mrf.mxu0
      %1467 = vdwg.mxu0
      %v1468 = vsel %vm483, %v1406, 0.0
      %v1469 = vsel %vm483, %v1409, 0.0
      %v1470 = vadd.f32 %v1468, %v1469
      %v1471 = vsel %vm483, %v1414, 0.0
      %v1472 = vadd.f32 %v1470, %v1471
      %v1473 = vsel %vm483, %v1417, 0.0
      %v1474 = vadd.f32 %v1472, %v1473
      %v1475 = vsel %vm483, %v1422, 0.0
      %v1476 = vadd.f32 %v1474, %v1475
      %v1477 = vsel %vm483, %v1425, 0.0
      %v1478 = vadd.f32 %v1476, %v1477
      %v1479 = vsel %vm483, %v1430, 0.0
      %v1480 = vadd.f32 %v1478, %v1479
      %v1481 = vsel %vm483, %v1433, 0.0
      %v1482 = vadd.f32 %v1480, %v1481
      %v1483 = vsel %vm483, %v1438, 0.0
      %v1484 = vadd.f32 %v1482, %v1483
      %v1485 = vsel %vm483, %v1441, 0.0
      %v1486 = vadd.f32 %v1484, %v1485
      %v1487 = vsel %vm483, %v1446, 0.0
      %v1488 = vadd.f32 %v1486, %v1487
      %v1489 = vsel %vm483, %v1449, 0.0
      %v1490 = vadd.f32 %v1488, %v1489
      %v1491 = vsel %vm483, %v1454, 0.0
      %v1492 = vadd.f32 %v1490, %v1491
      %v1493 = vsel %vm483, %v1457, 0.0
      %v1494 = vadd.f32 %v1492, %v1493
      %v1495 = vsel %vm483, %v1462, 0.0
      %v1496 = vadd.f32 %v1494, %v1495
      %v1497 = vsel %vm483, %v1465, 0.0
      %v1498 = vadd.f32 %v1496, %v1497
      %v1499 = vrot.slane %v1498, 4
      %v1500 = vadd.f32 %v1498, %v1499
      %v1501 = vrot.slane %v1500, 2
      %v1502 = vadd.f32 %v1500, %v1501
      %v1503 = vrot.slane %v1502, 1
      %v1504 = vadd.f32 %v1502, %v1503
      %v1505 = vmul.f32 %v1406, %v1406
      %v1506 = vmul.f32 %v1409, %v1409
      %v1507 = vmul.f32 %v1414, %v1414
      %v1508 = vmul.f32 %v1417, %v1417
      %v1509 = vmul.f32 %v1422, %v1422
      %v1510 = vmul.f32 %v1425, %v1425
      %v1511 = vmul.f32 %v1430, %v1430
      %v1512 = vmul.f32 %v1433, %v1433
      %v1513 = vmul.f32 %v1438, %v1438
      %v1514 = vmul.f32 %v1441, %v1441
      %v1515 = vmul.f32 %v1446, %v1446
      %v1516 = vmul.f32 %v1449, %v1449
      %v1517 = vmul.f32 %v1454, %v1454
      %v1518 = vmul.f32 %v1457, %v1457
      %v1519 = vmul.f32 %v1462, %v1462
      %v1520 = vmul.f32 %v1465, %v1465
      %v1521 = vsel %vm483, %v1505, 0.0
      %v1522 = vsel %vm483, %v1506, 0.0
      %v1523 = vadd.f32 %v1521, %v1522
      %v1524 = vsel %vm483, %v1507, 0.0
      %v1525 = vadd.f32 %v1523, %v1524
      %v1526 = vsel %vm483, %v1508, 0.0
      %v1527 = vadd.f32 %v1525, %v1526
      %v1528 = vsel %vm483, %v1509, 0.0
      %v1529 = vadd.f32 %v1527, %v1528
      %v1530 = vsel %vm483, %v1510, 0.0
      %v1531 = vadd.f32 %v1529, %v1530
      %v1532 = vsel %vm483, %v1511, 0.0
      %v1533 = vadd.f32 %v1531, %v1532
      %v1534 = vsel %vm483, %v1512, 0.0
      %v1535 = vadd.f32 %v1533, %v1534
      %v1536 = vsel %vm483, %v1513, 0.0
      %v1537 = vadd.f32 %v1535, %v1536
      %v1538 = vsel %vm483, %v1514, 0.0
      %v1539 = vadd.f32 %v1537, %v1538
      %v1540 = vsel %vm483, %v1515, 0.0
      %v1541 = vadd.f32 %v1539, %v1540
      %v1542 = vsel %vm483, %v1516, 0.0
      %v1543 = vadd.f32 %v1541, %v1542
      %v1544 = vsel %vm483, %v1517, 0.0
      %v1545 = vadd.f32 %v1543, %v1544
      %v1546 = vsel %vm483, %v1518, 0.0
      %v1547 = vadd.f32 %v1545, %v1546
      %v1548 = vsel %vm483, %v1519, 0.0
      %v1549 = vadd.f32 %v1547, %v1548
      %v1550 = vsel %vm483, %v1520, 0.0
      %v1551 = vadd.f32 %v1549, %v1550
      %v1552 = vrot.slane %v1551, 4
      %v1553 = vadd.f32 %v1551, %v1552
      %v1554 = vrot.slane %v1553, 2
      %v1555 = vadd.f32 %v1553, %v1554
      %v1556 = vrot.slane %v1555, 1
      %v1557 = vadd.f32 %v1555, %v1556
      %vm1558 = vcmask 1040384
      %v1559 = vsel %vm1558, %v1504, %v1557
      %vm1560 = vcmask 58368
      %1561 = vst.msk [vmem:[%s355] sm:$0x3] %vm1560, %v1559
      %1562 = vst.msk [vmem:[%s346] sm:$0xff] %vm483, %v1406
      %1563 = vst.msk [vmem:[%s346 + $0x8] sm:$0xff] %vm483, %v1409
      %1564 = vst.msk [vmem:[%s346 + $0x10] sm:$0xff] %vm483, %v1414
      %1565 = vst.msk [vmem:[%s346 + $0x18] sm:$0xff] %vm483, %v1417
      %1566 = vst.msk [vmem:[%s346 + $0x20] sm:$0xff] %vm483, %v1422
      %1567 = vst.msk [vmem:[%s346 + $0x28] sm:$0xff] %vm483, %v1425
      %1568 = vst.msk [vmem:[%s346 + $0x30] sm:$0xff] %vm483, %v1430
      %1569 = vst.msk [vmem:[%s346 + $0x38] sm:$0xff] %vm483, %v1433
      %1570 = vst.msk [vmem:[%s346 + $0x40] sm:$0xff] %vm483, %v1438
      %1571 = vst.msk [vmem:[%s346 + $0x48] sm:$0xff] %vm483, %v1441
      %1572 = vst.msk [vmem:[%s346 + $0x50] sm:$0xff] %vm483, %v1446
      %1573 = vst.msk [vmem:[%s346 + $0x58] sm:$0xff] %vm483, %v1449
      %1574 = vst.msk [vmem:[%s346 + $0x60] sm:$0xff] %vm483, %v1454
      %1575 = vst.msk [vmem:[%s346 + $0x68] sm:$0xff] %vm483, %v1457
      %1576 = vst.msk [vmem:[%s346 + $0x70] sm:$0xff] %vm483, %v1462
      %1577 = vst.msk [vmem:[%s346 + $0x78] sm:$0xff] %vm483, %v1465
      %s1578 = smul.u32 8, %s23
      %p1579 = scmp.lt.s32.totalorder %s22, 1
      %s1580 = scalar_select %p1579, %s22, 1
      %p1581 = scmp.lt.s32.totalorder %s1578, 15
      %s1582 = scalar_select %p1581, %s1578, 15
      %s1583 = smul.addr %s1582, 2
      %s1584 = smul.addr %s1580, 32
      %s1585 = sadd.s32 %s1583, %s1584
      %s1586 = smul.addr %s1585, 8
      %s1587 = scalar_lea.vmem %s5, %s1586
      %p1588 = scmp.lt.s32.totalorder %s22, 1
      %s1589 = scalar_select %p1588, %s22, 1
      %p1590 = scmp.lt.s32.totalorder %s23, 1
      %s1591 = scalar_select %p1590, %s23, 1
      %s1592 = smul.addr %s1589, 2
      %s1593 = sadd.s32 %s1591, %s1592
      %s1594 = smul.addr %s1593, 2
      %s1595 = scalar_lea.vmem %s6, %s1594
      // Predicated region
      $region41: #{conv_block_forward.4} parent=39 // pred_check
        %p1596 = pneg %p169
      $region42: #{conv_block_forward.4} parent=39 // pred_check_branch
        %1598 = sbr.rel (%p1596) target = $region44
      $region43: #{conv_block_forward.4} parent=39 // pred_region
        %s1599 = smul.u32 8, %s23
      $region44: #{conv_block_forward.4} parent=39 // pred_fallthru
        _
      // Predicated region
      $region45: #{conv_block_forward.4} parent=39 // pred_check
        %p1600 = pneg %p197
      $region46: #{conv_block_forward.4} parent=39 // pred_check_branch
        %1602 = sbr.rel (%p1600) target = $region48
      $region47: #{conv_block_forward.4} parent=39 // pred_region
        _
      $region48: #{conv_block_forward.4} parent=39 // pred_fallthru
        _
    $region40: #{conv_block_forward.4} parent=5 // pred_fallthru
      _
    %p1603 = scmp.le.s32.totalorder 2, %s13
    // Predicated region
    $region49: #{conv_block_forward.4} parent=5 // pred_check
      %p1604 = pneg %p1603
    $region50: #{conv_block_forward.4} parent=5 // pred_check_branch
      %1606 = sbr.rel (%p1604) target = $region52
    $region51: #{conv_block_forward.4} parent=5 // pred_region
      %s1607 = ssub.s32 %s13, 2
      // Predicated region
      $region53: #{conv_block_forward.4} parent=51 // pred_check
        %p1608 = pneg %p175
      $region54: #{conv_block_forward.4} parent=51 // pred_check_branch
        %1610 = sbr.rel (%p1608) target = $region56
      $region55: #{conv_block_forward.4} parent=51 // pred_region
        %s1611 = smul.u32 8, %s25
        %p1612 = scmp.lt.s32.totalorder %s24, 1
        %s1613 = scalar_select %p1612, %s24, 1
        %p1614 = scmp.lt.s32.totalorder %s1611, 15
        %s1615 = scalar_select %p1614, %s1611, 15
        %s1616 = smul.addr %s1615, 2
        %s1617 = smul.addr %s1613, 32
        %s1618 = sadd.s32 %s1616, %s1617
        %s1619 = smul.addr %s1618, 8
        %s1620 = scalar_lea.vmem %s5, %s1619
      $region56: #{conv_block_forward.4} parent=51 // pred_fallthru
        _
      // Predicated region
      $region57: #{conv_block_forward.4} parent=51 // pred_check
        %p1621 = pneg %p203
      $region58: #{conv_block_forward.4} parent=51 // pred_check_branch
        %1623 = sbr.rel (%p1621) target = $region60
      $region59: #{conv_block_forward.4} parent=51 // pred_region
        %p1624 = scmp.lt.s32.totalorder %s24, 1
        %s1625 = scalar_select %p1624, %s24, 1
        %p1626 = scmp.lt.s32.totalorder %s25, 1
        %s1627 = scalar_select %p1626, %s25, 1
        %s1628 = smul.addr %s1625, 2
        %s1629 = sadd.s32 %s1627, %s1628
        %s1630 = smul.addr %s1629, 2
        %s1631 = scalar_lea.vmem %s6, %s1630
      $region60: #{conv_block_forward.4} parent=51 // pred_fallthru
        _
    $region52: #{conv_block_forward.4} parent=5 // pred_fallthru
      _
  $region6: #{conv_block_forward.4} parent=0 // loop_footer
    %s17 = sadd.s32 1, %s13
  $region7: #{conv_block_forward.4} parent=0 // loop_footer_branch
    %12 = sbr.rel target = $region3
  $region8: #{conv_block_forward.4} parent=0 // loop_exit
    _

// kernel: conv_block_forward.3
$region0: #{conv_block_forward.3}
  #allocation0 [shape = 'u32[]', space=smem, size = 0x4, offset = 0x4, fixed_abs, tag = 'smem constant byte address 0x4 - core index']
  #allocation1 [shape = 'u32[144,128]{1,0:T(1,128)}', space=vmem, size = 0x12000, scoped, tag = 'internal scratch']
  #allocation2 [shape = 'f32[10,18,4]{2,1,0:T(8,128)}', space=vmem, size = 0x1e000, scoped, tag = 'scratch operand']
  %s0 = inlined_call_operand.vmem [shape: f32[2,16,16,4], index: 0, kind: input, shape index: {}]
  %s1 = inlined_call_operand.vmem [shape: f32[2,4,16,4], index: 1, kind: input, shape index: {}]
  %s2 = inlined_call_operand.vmem [shape: bf16[36,8], index: 2, kind: input, shape index: {}]
  %s3 = inlined_call_operand.vmem [shape: f32[1,4], index: 3, kind: input, shape index: {}]
  %s4 = inlined_call_operand.vmem [shape: f32[1,4], index: 4, kind: input, shape index: {}]
  %s5 = inlined_call_operand.vmem [shape: f32[2,16,16,8], index: 5, kind: output, shape index: {0}]
  %s6 = inlined_call_operand.vmem [shape: f32[2,2,2,8], index: 6, kind: output, shape index: {1}]
  %7 = xla_tuple %s5, %s6
  %s8 = sld [smem:[#allocation0]]
  $region61: #{conv_block_forward.3} parent=0
    _
  %s10 = ssub.s32 1, %s8
  %s11 = scalar_select 0, %s10, %s8
  loop: start=0, step=1, limit=6
  $region2: #{conv_block_forward.3} parent=0 // loop_pre_header
    _
  $region3: #{conv_block_forward.3} parent=0 // loop_header
    %s13 = sphi 0, %s17
    %p14 = scmp.ge.s32.totalorder %s13, 6
    %s20 = sphi 0, %s32
    %s21 = sphi 0, %s28
    %s22 = sphi 0, %s20
    %s23 = sphi 0, %s21
    %s24 = sphi 0, %s22
    %s25 = sphi 0, %s23
    %s37 = sphi 0, %s39
    %s40 = sphi 0, %s37
    %s41 = sphi 0, %s40
    %s57 = sphi 0, %s41
    %s65 = sphi 0, %s67
    %s68 = sphi 0, %s65
    %s69 = sphi 0, %s68
    %s85 = sphi 0, %s69
    %s89 = sphi 0, %s89
    %s91 = sphi 0, %s89
    %s92 = sphi 0, %s91
    %s106 = sphi 0, %s92
    %s110 = sphi 0, %s110
    %s112 = sphi 0, %s110
    %s113 = sphi 0, %s112
    %s127 = sphi 0, %s113
    %s131 = sphi 0, %s131
    %s133 = sphi 0, %s131
    %s134 = sphi 0, %s133
    %s148 = sphi 0, %s134
    %s156 = sphi 0, %s158
    %s159 = sphi 0, %s156
    %s160 = sphi 0, %s159
    %s176 = sphi 0, %s160
    %s184 = sphi 0, %s186
    %s187 = sphi 0, %s184
    %s188 = sphi 0, %s187
    %s204 = sphi 0, %s188
  $region4: #{conv_block_forward.3} parent=0 // loop_header_branch
    %16 = sbr.rel (%p14) target = $region8
  $region5: #{conv_block_forward.3} parent=0 // loop_body
    %s18 = ssub.s32 %s13, 1
    %s19 = ssub.s32 %s13, 2
    %s26 = sadd.s32 1, %s21
    %p27 = scmp.ge.s32.totalorder %s26, 2
    %s28 = scalar_select %p27, 0, %s26
    %s29 = sadd.s32 1, %s20
    %s30 = scalar_select %p27, %s29, %s20
    %p31 = scmp.ge.s32.totalorder %s30, 2
    %s32 = scalar_select %p31, 0, %s30
    %s33 = ssub.s32 %s20, %s32
    %s34 = ssub.s32 %s21, %s28
    %s35 = sor.u32 %s33, %s34
    %p36 = scmp.eq.s32.totalorder %s35, 0
    %s38 = sadd.s32 %s37, 1
    %s39 = scalar_select %p36, %s37, %s38
    %p42 = pneg %p36
    %p43 = scmp.eq.s32.totalorder %s13, 3
    %p44 = por %p42, %p43
    %p45 = scmp.ne.s32.totalorder %s37, %s40
    %p46 = scmp.eq.s32.totalorder %s13, 0
    %p47 = por %p45, %p46
    %p48 = scmp.ne.s32.totalorder %s37, %s40
    %p49 = scmp.eq.s32.totalorder %s18, 3
    %p50 = por %p48, %p49
    %p51 = scmp.ne.s32.totalorder %s40, %s41
    %p52 = scmp.eq.s32.totalorder %s18, 0
    %p53 = por %p51, %p52
    %p54 = scmp.ne.s32.totalorder %s40, %s41
    %p55 = scmp.eq.s32.totalorder %s19, 3
    %p56 = por %p54, %p55
    %p58 = scmp.ne.s32.totalorder %s41, %s57
    %p59 = scmp.eq.s32.totalorder %s19, 0
    %p60 = por %p58, %p59
    %s61 = ssub.s32 %s20, %s32
    %s62 = ssub.s32 %s21, %s28
    %s63 = sor.u32 %s61, %s62
    %p64 = scmp.eq.s32.totalorder %s63, 0
    %s66 = sadd.s32 %s65, 1
    %s67 = scalar_select %p64, %s65, %s66
    %p70 = pneg %p64
    %p71 = scmp.eq.s32.totalorder %s13, 3
    %p72 = por %p70, %p71
    %p73 = scmp.ne.s32.totalorder %s65, %s68
    %p74 = scmp.eq.s32.totalorder %s13, 0
    %p75 = por %p73, %p74
    %p76 = scmp.ne.s32.totalorder %s65, %s68
    %p77 = scmp.eq.s32.totalorder %s18, 3
    %p78 = por %p76, %p77
    %p79 = scmp.ne.s32.totalorder %s68, %s69
    %p80 = scmp.eq.s32.totalorder %s18, 0
    %p81 = por %p79, %p80
    %p82 = scmp.ne.s32.totalorder %s68, %s69
    %p83 = scmp.eq.s32.totalorder %s19, 3
    %p84 = por %p82, %p83
    %p86 = scmp.ne.s32.totalorder %s69, %s85
    %p87 = scmp.eq.s32.totalorder %s19, 0
    %p88 = por %p86, %p87
    %s90 = sadd.s32 %s89, 1
    %p93 = scmp.eq.s32.totalorder %s13, 3
    %p94 = scmp.ne.s32.totalorder %s89, %s91
    %p95 = scmp.eq.s32.totalorder %s13, 0
    %p96 = por %p94, %p95
    %p97 = scmp.ne.s32.totalorder %s89, %s91
    %p98 = scmp.eq.s32.totalorder %s18, 3
    %p99 = por %p97, %p98
    %p100 = scmp.ne.s32.totalorder %s91, %s92
    %p101 = scmp.eq.s32.totalorder %s18, 0
    %p102 = por %p100, %p101
    %p103 = scmp.ne.s32.totalorder %s91, %s92
    %p104 = scmp.eq.s32.totalorder %s19, 3
    %p105 = por %p103, %p104
    %p107 = scmp.ne.s32.totalorder %s92, %s106
    %p108 = scmp.eq.s32.totalorder %s19, 0
    %p109 = por %p107, %p108
    %s111 = sadd.s32 %s110, 1
    %p114 = scmp.eq.s32.totalorder %s13, 3
    %p115 = scmp.ne.s32.totalorder %s110, %s112
    %p116 = scmp.eq.s32.totalorder %s13, 0
    %p117 = por %p115, %p116
    %p118 = scmp.ne.s32.totalorder %s110, %s112
    %p119 = scmp.eq.s32.totalorder %s18, 3
    %p120 = por %p118, %p119
    %p121 = scmp.ne.s32.totalorder %s112, %s113
    %p122 = scmp.eq.s32.totalorder %s18, 0
    %p123 = por %p121, %p122
    %p124 = scmp.ne.s32.totalorder %s112, %s113
    %p125 = scmp.eq.s32.totalorder %s19, 3
    %p126 = por %p124, %p125
    %p128 = scmp.ne.s32.totalorder %s113, %s127
    %p129 = scmp.eq.s32.totalorder %s19, 0
    %p130 = por %p128, %p129
    %s132 = sadd.s32 %s131, 1
    %p135 = scmp.eq.s32.totalorder %s13, 3
    %p136 = scmp.ne.s32.totalorder %s131, %s133
    %p137 = scmp.eq.s32.totalorder %s13, 0
    %p138 = por %p136, %p137
    %p139 = scmp.ne.s32.totalorder %s131, %s133
    %p140 = scmp.eq.s32.totalorder %s18, 3
    %p141 = por %p139, %p140
    %p142 = scmp.ne.s32.totalorder %s133, %s134
    %p143 = scmp.eq.s32.totalorder %s18, 0
    %p144 = por %p142, %p143
    %p145 = scmp.ne.s32.totalorder %s133, %s134
    %p146 = scmp.eq.s32.totalorder %s19, 3
    %p147 = por %p145, %p146
    %p149 = scmp.ne.s32.totalorder %s134, %s148
    %p150 = scmp.eq.s32.totalorder %s19, 0
    %p151 = por %p149, %p150
    %s152 = ssub.s32 %s20, %s32
    %s153 = ssub.s32 %s21, %s28
    %s154 = sor.u32 %s152, %s153
    %p155 = scmp.eq.s32.totalorder %s154, 0
    %s157 = sadd.s32 %s156, 1
    %s158 = scalar_select %p155, %s156, %s157
    %p161 = pneg %p155
    %p162 = scmp.eq.s32.totalorder %s13, 3
    %p163 = por %p161, %p162
    %p164 = scmp.ne.s32.totalorder %s156, %s159
    %p165 = scmp.eq.s32.totalorder %s13, 0
    %p166 = por %p164, %p165
    %p167 = scmp.ne.s32.totalorder %s156, %s159
    %p168 = scmp.eq.s32.totalorder %s18, 3
    %p169 = por %p167, %p168
    %p170 = scmp.ne.s32.totalorder %s159, %s160
    %p171 = scmp.eq.s32.totalorder %s18, 0
    %p172 = por %p170, %p171
    %p173 = scmp.ne.s32.totalorder %s159, %s160
    %p174 = scmp.eq.s32.totalorder %s19, 3
    %p175 = por %p173, %p174
    %p177 = scmp.ne.s32.totalorder %s160, %s176
    %p178 = scmp.eq.s32.totalorder %s19, 0
    %p179 = por %p177, %p178
    %s180 = ssub.s32 %s20, %s32
    %s181 = ssub.s32 %s21, %s28
    %s182 = sor.u32 %s180, %s181
    %p183 = scmp.eq.s32.totalorder %s182, 0
    %s185 = sadd.s32 %s184, 1
    %s186 = scalar_select %p183, %s184, %s185
    %p189 = pneg %p183
    %p190 = scmp.eq.s32.totalorder %s13, 3
    %p191 = por %p189, %p190
    %p192 = scmp.ne.s32.totalorder %s184, %s187
    %p193 = scmp.eq.s32.totalorder %s13, 0
    %p194 = por %p192, %p193
    %p195 = scmp.ne.s32.totalorder %s184, %s187
    %p196 = scmp.eq.s32.totalorder %s18, 3
    %p197 = por %p195, %p196
    %p198 = scmp.ne.s32.totalorder %s187, %s188
    %p199 = scmp.eq.s32.totalorder %s18, 0
    %p200 = por %p198, %p199
    %p201 = scmp.ne.s32.totalorder %s187, %s188
    %p202 = scmp.eq.s32.totalorder %s19, 3
    %p203 = por %p201, %p202
    %p205 = scmp.ne.s32.totalorder %s188, %s204
    %p206 = scmp.eq.s32.totalorder %s19, 0
    %p207 = por %p205, %p206
    %p208 = scmp.le.s32.totalorder 1, %s13
    %p209 = scmp.lt.s32.totalorder %s13, 5
    %p210 = pnand %p208, %p209
    %p211 = pneg %p210
    // Predicated region
    $region9: #{conv_block_forward.3} parent=5 // pred_check
      _
    $region10: #{conv_block_forward.3} parent=5 // pred_check_branch
      %213 = sbr.rel (%p210) target = $region12
    $region11: #{conv_block_forward.3} parent=5 // pred_region
      %s214 = ssub.s32 %s13, 1
      // Predicated region
      $region13: #{conv_block_forward.3} parent=11 // pred_check
        %p215 = pneg %p102
      $region14: #{conv_block_forward.3} parent=11 // pred_check_branch
        %217 = sbr.rel (%p215) target = $region16
      $region15: #{conv_block_forward.3} parent=11 // pred_region
        _
      $region16: #{conv_block_forward.3} parent=11 // pred_fallthru
        _
      // Predicated region
      $region17: #{conv_block_forward.3} parent=11 // pred_check
        %p218 = pneg %p123
      $region18: #{conv_block_forward.3} parent=11 // pred_check_branch
        %220 = sbr.rel (%p218) target = $region20
      $region19: #{conv_block_forward.3} parent=11 // pred_region
        _
      $region20: #{conv_block_forward.3} parent=11 // pred_fallthru
        _
      // Predicated region
      $region21: #{conv_block_forward.3} parent=11 // pred_check
        %p221 = pneg %p144
      $region22: #{conv_block_forward.3} parent=11 // pred_check_branch
        %223 = sbr.rel (%p221) target = $region24
      $region23: #{conv_block_forward.3} parent=11 // pred_region
        _
      $region24: #{conv_block_forward.3} parent=11 // pred_fallthru
        _
    $region12: #{conv_block_forward.3} parent=5 // pred_fallthru
      _
    %p224 = scmp.lt.s32.totalorder %s13, 4
    // Predicated region
    $region25: #{conv_block_forward.3} parent=5 // pred_check
      %p225 = pneg %p224
    $region26: #{conv_block_forward.3} parent=5 // pred_check_branch
      %227 = sbr.rel (%p225) target = $region28
    $region27: #{conv_block_forward.3} parent=5 // pred_region
      // Predicated region
      $region29: #{conv_block_forward.3} parent=27 // pred_check
        %p228 = pneg %p47
      $region30: #{conv_block_forward.3} parent=27 // pred_check_branch
        %230 = sbr.rel (%p228) target = $region32
      $region31: #{conv_block_forward.3} parent=27 // pred_region
        %s231 = smul.u32 8, %s21
        %p232 = scmp.lt.s32.totalorder %s20, 1
        %s233 = scalar_select %p232, %s20, 1
        %p234 = scmp.lt.s32.totalorder %s231, 15
        %s235 = scalar_select %p234, %s231, 15
        %s236 = smul.addr %s235, 2
        %s237 = smul.addr %s233, 32
        %s238 = sadd.s32 %s236, %s237
        %s239 = smul.addr %s238, 8
        %s240 = scalar_lea.vmem %s0, %s239
        %s241 = smul.u32 8, %s21
      $region32: #{conv_block_forward.3} parent=27 // pred_fallthru
        _
      // Predicated region
      $region33: #{conv_block_forward.3} parent=27 // pred_check
        %p242 = pneg %p75
      $region34: #{conv_block_forward.3} parent=27 // pred_check_branch
        %244 = sbr.rel (%p242) target = $region36
      $region35: #{conv_block_forward.3} parent=27 // pred_region
        %s245 = smul.u32 2, %s21
        %p246 = scmp.lt.s32.totalorder %s20, 1
        %s247 = scalar_select %p246, %s20, 1
        %p248 = scmp.lt.s32.totalorder %s245, 3
        %s249 = scalar_select %p248, %s245, 3
        %s250 = smul.addr %s249, 2
        %s251 = smul.addr %s247, 8
        %s252 = sadd.s32 %s250, %s251
        %s253 = smul.addr %s252, 8
        %s254 = scalar_lea.vmem %s1, %s253
        %s255 = smul.u32 2, %s21
      $region36: #{conv_block_forward.3} parent=27 // pred_fallthru
        _
    $region28: #{conv_block_forward.3} parent=5 // pred_fallthru
      _
    %p256 = scmp.le.s32.totalorder 1, %s13
    %p257 = scmp.lt.s32.totalorder %s13, 5
    %p258 = pnand %p256, %p257
    %p259 = pneg %p258
    // Predicated region
    $region37: #{conv_block_forward.3} parent=5 // pred_check
      _
    $region38: #{conv_block_forward.3} parent=5 // pred_check_branch
      %261 = sbr.rel (%p258) target = $region40
    $region39: #{conv_block_forward.3} parent=5 // pred_region
      %s262 = ssub.s32 %s13, 1
      %s263 = smul.u32 8, %s23
      %p264 = scmp.lt.s32.totalorder %s22, 1
      %s265 = scalar_select %p264, %s22, 1
      %p266 = scmp.lt.s32.totalorder %s263, 15
      %s267 = scalar_select %p266, %s263, 15
      %s268 = smul.addr %s267, 2
      %s269 = smul.addr %s265, 32
      %s270 = sadd.s32 %s268, %s269
      %s271 = smul.addr %s270, 8
      %s272 = scalar_lea.vmem %s0, %s271
      %p273 = pneg %p53
      %p274 = pneg %p50
      %s275 = smul.u32 2, %s23
      %p276 = scmp.lt.s32.totalorder %s22, 1
      %s277 = scalar_select %p276, %s22, 1
      %p278 = scmp.lt.s32.totalorder %s275, 3
      %s279 = scalar_select %p278, %s275, 3
      %s280 = smul.addr %s279, 2
      %s281 = smul.addr %s277, 8
      %s282 = sadd.s32 %s280, %s281
      %s283 = smul.addr %s282, 8
      %s284 = scalar_lea.vmem %s1, %s283
      %p285 = pneg %p81
      %p286 = pneg %p78
      %p287 = pneg %p102
      %p288 = pneg %p99
      %p289 = pneg %p123
      %p290 = pneg %p120
      %p291 = pneg %p144
      %p292 = pneg %p141
      %p293 = pneg %p172
      %p294 = pneg %p169
      %s295 = smul.u32 8, %s23
      %p296 = scmp.lt.s32.totalorder %s22, 1
      %s297 = scalar_select %p296, %s22, 1
      %p298 = scmp.lt.s32.totalorder %s295, 15
      %s299 = scalar_select %p298, %s295, 15
      %s300 = smul.addr %s299, 2
      %s301 = smul.addr %s297, 32
      %s302 = sadd.s32 %s300, %s301
      %s303 = smul.addr %s302, 8
      %s304 = scalar_lea.vmem %s5, %s303
      %p305 = pneg %p200
      %p306 = pneg %p197
      %p307 = scmp.lt.s32.totalorder %s22, 1
      %s308 = scalar_select %p307, %s22, 1
      %p309 = scmp.lt.s32.totalorder %s23, 1
      %s310 = scalar_select %p309, %s23, 1
      %s311 = smul.addr %s308, 2
      %s312 = sadd.s32 %s310, %s311
      %s313 = smul.addr %s312, 2
      %s314 = scalar_lea.vmem %s6, %s313
      %s315 = smul.u32 8, %s23
      %p316 = scmp.lt.s32.totalorder %s22, 1
      %s317 = scalar_select %p316, %s22, 1
      %p318 = scmp.lt.s32.totalorder %s315, 15
      %s319 = scalar_select %p318, %s315, 15
      %s320 = smul.addr %s319, 2
      %s321 = smul.addr %s317, 32
      %s322 = sadd.s32 %s320, %s321
      %s323 = smul.addr %s322, 8
      %s324 = scalar_lea.vmem %s0, %s323
      %s325 = smul.u32 8, %s23
      %s326 = smul.u32 2, %s23
      %p327 = scmp.lt.s32.totalorder %s22, 1
      %s328 = scalar_select %p327, %s22, 1
      %p329 = scmp.lt.s32.totalorder %s326, 3
      %s330 = scalar_select %p329, %s326, 3
      %s331 = smul.addr %s330, 2
      %s332 = smul.addr %s328, 8
      %s333 = sadd.s32 %s331, %s332
      %s334 = smul.addr %s333, 8
      %s335 = scalar_lea.vmem %s1, %s334
      %s336 = smul.u32 2, %s23
      %s337 = smul.u32 8, %s23
      %p338 = scmp.lt.s32.totalorder %s22, 1
      %s339 = scalar_select %p338, %s22, 1
      %p340 = scmp.lt.s32.totalorder %s337, 15
      %s341 = scalar_select %p340, %s337, 15
      %s342 = smul.addr %s341, 2
      %s343 = smul.addr %s339, 32
      %s344 = sadd.s32 %s342, %s343
      %s345 = smul.addr %s344, 8
      %s346 = scalar_lea.vmem %s5, %s345
      %s347 = smul.u32 8, %s23
      %p348 = scmp.lt.s32.totalorder %s22, 1
      %s349 = scalar_select %p348, %s22, 1
      %p350 = scmp.lt.s32.totalorder %s23, 1
      %s351 = scalar_select %p350, %s23, 1
      %s352 = smul.addr %s349, 2
      %s353 = sadd.s32 %s351, %s352
      %s354 = smul.addr %s353, 2
      %s355 = scalar_lea.vmem %s6, %s354
      %v357 = vld [vmem:[%s335] sm:$0xff]
      %v358 = vld [vmem:[%s335 + $0x8] sm:$0xff]
      %v359 = vld [vmem:[%s324] sm:$0xff]
      %v360 = vld [vmem:[%s324 + $0x8] sm:$0xff]
      %v361 = vld [vmem:[%s324 + $0x10] sm:$0xff]
      %v362 = vld [vmem:[%s324 + $0x18] sm:$0xff]
      %v363 = vld [vmem:[%s324 + $0x20] sm:$0xff]
      %v364 = vld [vmem:[%s324 + $0x28] sm:$0xff]
      %v365 = vld [vmem:[%s324 + $0x30] sm:$0xff]
      %v366 = vld [vmem:[%s324 + $0x38] sm:$0xff]
      %v367 = vld [vmem:[%s324 + $0x40] sm:$0xff]
      %v368 = vld [vmem:[%s324 + $0x48] sm:$0xff]
      %v369 = vld [vmem:[%s324 + $0x50] sm:$0xff]
      %v370 = vld [vmem:[%s324 + $0x58] sm:$0xff]
      %v371 = vld [vmem:[%s324 + $0x60] sm:$0xff]
      %v372 = vld [vmem:[%s324 + $0x68] sm:$0xff]
      %v373 = vld [vmem:[%s324 + $0x70] sm:$0xff]
      %v374 = vld [vmem:[%s324 + $0x78] sm:$0xff]
      %s375 = scalar_lea.vmem %s335, 16
      %v376 = vld [vmem:[%s375] sm:$0xff]
      %v377 = vld [vmem:[%s375 + $0x8] sm:$0xff]
      %vm378 = vcmask 24576
      %379 = vst.msk [vmem:[#allocation2] sm:$0x1] %vm378, 0.0
      %380 = vst.msk [vmem:[#allocation2 + $0x18] sm:$0x1] %vm378, 0.0
      %381 = vst.msk [vmem:[#allocation2 + $0x30] sm:$0x1] %vm378, 0.0
      %382 = vst.msk [vmem:[#allocation2 + $0x48] sm:$0x1] %vm378, 0.0
      %383 = vst.msk [vmem:[#allocation2 + $0x60] sm:$0x1] %vm378, 0.0
      %384 = vst.msk [vmem:[#allocation2 + $0x78] sm:$0x1] %vm378, 0.0
      %385 = vst.msk [vmem:[#allocation2 + $0x90] sm:$0x1] %vm378, 0.0
      %386 = vst.msk [vmem:[#allocation2 + $0xa8] sm:$0x1] %vm378, 0.0
      %387 = vst.msk [vmem:[#allocation2 + $0xc0] sm:$0x1] %vm378, 0.0
      %388 = vst.msk [vmem:[#allocation2 + $0xd8] sm:$0x1] %vm378, 0.0
      %389 = vst.msk [vmem:[#allocation2 + $0x11] sm:$0x1] %vm378, 0.0
      %390 = vst.msk [vmem:[#allocation2 + $0x29] sm:$0x1] %vm378, 0.0
      %391 = vst.msk [vmem:[#allocation2 + $0x41] sm:$0x1] %vm378, 0.0
      %392 = vst.msk [vmem:[#allocation2 + $0x59] sm:$0x1] %vm378, 0.0
      %393 = vst.msk [vmem:[#allocation2 + $0x71] sm:$0x1] %vm378, 0.0
      %394 = vst.msk [vmem:[#allocation2 + $0x89] sm:$0x1] %vm378, 0.0
      %395 = vst.msk [vmem:[#allocation2 + $0xa1] sm:$0x1] %vm378, 0.0
      %396 = vst.msk [vmem:[#allocation2 + $0xb9] sm:$0x1] %vm378, 0.0
      %397 = vst.msk [vmem:[#allocation2 + $0xd1] sm:$0x1] %vm378, 0.0
      %398 = vst.msk [vmem:[#allocation2 + $0xe9] sm:$0x1] %vm378, 0.0
      %vm399 = vcmask 31744
      %400 = vst.msk [vmem:[#allocation2 + $0x1] sm:$0xff] %vm399, %v357
      %401 = vst.msk [vmem:[#allocation2 + $0x9] sm:$0xff] %vm399, %v358
      %s402 = scalar_lea.vmem [#allocation2], 24
      %403 = vst.msk [vmem:[%s402 + $0x1] sm:$0xff] %vm399, %v359
      %404 = vst.msk [vmem:[%s402 + $0x9] sm:$0xff] %vm399, %v360
      %405 = vst.msk [vmem:[%s402 + $0x19] sm:$0xff] %vm399, %v361
      %406 = vst.msk [vmem:[%s402 + $0x21] sm:$0xff] %vm399, %v362
      %407 = vst.msk [vmem:[%s402 + $0x31] sm:$0xff] %vm399, %v363
      %408 = vst.msk [vmem:[%s402 + $0x39] sm:$0xff] %vm399, %v364
      %409 = vst.msk [vmem:[%s402 + $0x49] sm:$0xff] %vm399, %v365
      %410 = vst.msk [vmem:[%s402 + $0x51] sm:$0xff] %vm399, %v366
      %411 = vst.msk [vmem:[%s402 + $0x61] sm:$0xff] %vm399, %v367
      %412 = vst.msk [vmem:[%s402 + $0x69] sm:$0xff] %vm399, %v368
      %413 = vst.msk [vmem:[%s402 + $0x79] sm:$0xff] %vm399, %v369
      %414 = vst.msk [vmem:[%s402 + $0x81] sm:$0xff] %vm399, %v370
      %415 = vst.msk [vmem:[%s402 + $0x91] sm:$0xff] %vm399, %v371
      %416 = vst.msk [vmem:[%s402 + $0x99] sm:$0xff] %vm399, %v372
      %417 = vst.msk [vmem:[%s402 + $0xa9] sm:$0xff] %vm399, %v373
      %418 = vst.msk [vmem:[%s402 + $0xb1] sm:$0xff] %vm399, %v374
      %s419 = scalar_lea.vmem [#allocation2], 216
      %420 = vst.msk [vmem:[%s419 + $0x1] sm:$0xff] %vm399, %v376
      %421 = vst.msk [vmem:[%s419 + $0x9] sm:$0xff] %vm399, %v377
      %v422 = vld [vmem:[#allocation2] sm:$0xff]
      %v423 = vld [vmem:[#allocation2 + $0x8] sm:$0xff]
      %v424 = vld [vmem:[#allocation2 + $0x18] sm:$0xff]
      %v425 = vld [vmem:[#allocation2 + $0x20] sm:$0xff]
      %v426 = vld [vmem:[#allocation2 + $0x30] sm:$0xff]
      %v427 = vld [vmem:[#allocation2 + $0x38] sm:$0xff]
      %v428 = vld [vmem:[#allocation2 + $0x48] sm:$0xff]
      %v429 = vld [vmem:[#allocation2 + $0x50] sm:$0xff]
      %v430 = vld [vmem:[#allocation2 + $0x60] sm:$0xff]
      %v431 = vld [vmem:[#allocation2 + $0x68] sm:$0xff]
      %v432 = vld [vmem:[#allocation2 + $0x78] sm:$0xff]
      %v433 = vld [vmem:[#allocation2 + $0x80] sm:$0xff]
      %v434 = vld [vmem:[#allocation2 + $0x90] sm:$0xff]
      %v435 = vld [vmem:[#allocation2 + $0x98] sm:$0xff]
      %v436 = vld [vmem:[#allocation2 + $0xa8] sm:$0xff]
      %v437 = vld [vmem:[#allocation2 + $0xb0] sm:$0xff]
      %v438 = vld [vmem:[#allocation2 + $0x1] sm:$0xff]
      %v439 = vld [vmem:[#allocation2 + $0x9] sm:$0xff]
      %v440 = vld [vmem:[#allocation2 + $0x19] sm:$0xff]
      %v441 = vld [vmem:[#allocation2 + $0x21] sm:$0xff]
      %v442 = vld [vmem:[#allocation2 + $0x31] sm:$0xff]
      %v443 = vld [vmem:[#allocation2 + $0x39] sm:$0xff]
      %v444 = vld [vmem:[#allocation2 + $0x49] sm:$0xff]
      %v445 = vld [vmem:[#allocation2 + $0x51] sm:$0xff]
      %v446 = vld [vmem:[#allocation2 + $0x61] sm:$0xff]
      %v447 = vld [vmem:[#allocation2 + $0x69] sm:$0xff]
      %v448 = vld [vmem:[#allocation2 + $0x79] sm:$0xff]
      %v449 = vld [vmem:[#allocation2 + $0x81] sm:$0xff]
      %v450 = vld [vmem:[#allocation2 + $0x91] sm:$0xff]
      %v451 = vld [vmem:[#allocation2 + $0x99] sm:$0xff]
      %v452 = vld [vmem:[#allocation2 + $0xa9] sm:$0xff]
      %v453 = vld [vmem:[#allocation2 + $0xb1] sm:$0xff]
      %v454 = vld [vmem:[#allocation2 + $0x2] sm:$0xff]
      %v455 = vld [vmem:[#allocation2 + $0xa] sm:$0xff]
      %v456 = vld [vmem:[#allocation2 + $0x1a] sm:$0xff]
      %v457 = vld [vmem:[#allocation2 + $0x22] sm:$0xff]
      %v458 = vld [vmem:[#allocation2 + $0x32] sm:$0xff]
      %v459 = vld [vmem:[#allocation2 + $0x3a] sm:$0xff]
      %v460 = vld [vmem:[#allocation2 + $0x4a] sm:$0xff]
      %v461 = vld [vmem:[#allocation2 + $0x52] sm:$0xff]
      %v462 = vld [vmem:[#allocation2 + $0x62] sm:$0xff]
      %v463 = vld [vmem:[#allocation2 + $0x6a] sm:$0xff]
      %v464 = vld [vmem:[#allocation2 + $0x7a] sm:$0xff]
      %v465 = vld [vmem:[#allocation2 + $0x82] sm:$0xff]
      %v466 = vld [vmem:[#allocation2 + $0x92] sm:$0xff]
      %v467 = vld [vmem:[#allocation2 + $0x9a] sm:$0xff]
      %v468 = vld [vmem:[#allocation2 + $0xaa] sm:$0xff]
      %v469 = vld [vmem:[#allocation2 + $0xb2] sm:$0xff]
      %v470 = vld [vmem:[%s402] sm:$0xff]
      %v471 = vld [vmem:[%s402 + $0x8] sm:$0xff]
      %v472 = vld [vmem:[%s402 + $0x18] sm:$0xff]
      %v473 = vld [vmem:[%s402 + $0x20] sm:$0xff]
      %v474 = vld [vmem:[%s402 + $0x30] sm:$0xff]
      %v475 = vld [vmem:[%s402 + $0x38] sm:$0xff]
      %v476 = vld [vmem:[%s402 + $0x48] sm:$0xff]
      %v477 = vld [vmem:[%s402 + $0x50] sm:$0xff]
      %v478 = vld [vmem:[%s402 + $0x60] sm:$0xff]
      %v479 = vld [vmem:[%s402 + $0x68] sm:$0xff]
      %v480 = vld [vmem:[%s402 + $0x78] sm:$0xff]
      %v481 = vld [vmem:[%s402 + $0x80] sm:$0xff]
      %v482 = vld [vmem:[%s402 + $0x90] sm:$0xff]
      %v483 = vld [vmem:[%s402 + $0x98] sm:$0xff]
      %v484 = vld [vmem:[%s402 + $0xa8] sm:$0xff]
      %v485 = vld [vmem:[%s402 + $0xb0] sm:$0xff]
      %v486 = vld [vmem:[%s402 + $0x1] sm:$0xff]
      %v487 = vld [vmem:[%s402 + $0x9] sm:$0xff]
      %v488 = vld [vmem:[%s402 + $0x19] sm:$0xff]
      %v489 = vld [vmem:[%s402 + $0x21] sm:$0xff]
      %v490 = vld [vmem:[%s402 + $0x31] sm:$0xff]
      %v491 = vld [vmem:[%s402 + $0x39] sm:$0xff]
      %v492 = vld [vmem:[%s402 + $0x49] sm:$0xff]
      %v493 = vld [vmem:[%s402 + $0x51] sm:$0xff]
      %v494 = vld [vmem:[%s402 + $0x61] sm:$0xff]
      %v495 = vld [vmem:[%s402 + $0x69] sm:$0xff]
      %v496 = vld [vmem:[%s402 + $0x79] sm:$0xff]
      %v497 = vld [vmem:[%s402 + $0x81] sm:$0xff]
      %v498 = vld [vmem:[%s402 + $0x91] sm:$0xff]
      %v499 = vld [vmem:[%s402 + $0x99] sm:$0xff]
      %v500 = vld [vmem:[%s402 + $0xa9] sm:$0xff]
      %v501 = vld [vmem:[%s402 + $0xb1] sm:$0xff]
      %v502 = vld [vmem:[%s402 + $0x2] sm:$0xff]
      %v503 = vld [vmem:[%s402 + $0xa] sm:$0xff]
      %v504 = vld [vmem:[%s402 + $0x1a] sm:$0xff]
      %v505 = vld [vmem:[%s402 + $0x22] sm:$0xff]
      %v506 = vld [vmem:[%s402 + $0x32] sm:$0xff]
      %v507 = vld [vmem:[%s402 + $0x3a] sm:$0xff]
      %v508 = vld [vmem:[%s402 + $0x4a] sm:$0xff]
      %v509 = vld [vmem:[%s402 + $0x52] sm:$0xff]
      %v510 = vld [vmem:[%s402 + $0x62] sm:$0xff]
      %v511 = vld [vmem:[%s402 + $0x6a] sm:$0xff]
      %v512 = vld [vmem:[%s402 + $0x7a] sm:$0xff]
      %v513 = vld [vmem:[%s402 + $0x82] sm:$0xff]
      %v514 = vld [vmem:[%s402 + $0x92] sm:$0xff]
      %v515 = vld [vmem:[%s402 + $0x9a] sm:$0xff]
      %v516 = vld [vmem:[%s402 + $0xaa] sm:$0xff]
      %v517 = vld [vmem:[%s402 + $0xb2] sm:$0xff]
      %s518 = scalar_lea.vmem [#allocation2], 48
      %v519 = vld [vmem:[%s518] sm:$0xff]
      %v520 = vld [vmem:[%s518 + $0x8] sm:$0xff]
      %v521 = vld [vmem:[%s518 + $0x18] sm:$0xff]
      %v522 = vld [vmem:[%s518 + $0x20] sm:$0xff]
      %v523 = vld [vmem:[%s518 + $0x30] sm:$0xff]
      %v524 = vld [vmem:[%s518 + $0x38] sm:$0xff]
      %v525 = vld [vmem:[%s518 + $0x48] sm:$0xff]
      %v526 = vld [vmem:[%s518 + $0x50] sm:$0xff]
      %v527 = vld [vmem:[%s518 + $0x60] sm:$0xff]
      %v528 = vld [vmem:[%s518 + $0x68] sm:$0xff]
      %v529 = vld [vmem:[%s518 + $0x78] sm:$0xff]
      %v530 = vld [vmem:[%s518 + $0x80] sm:$0xff]
      %v531 = vld [vmem:[%s518 + $0x90] sm:$0xff]
      %v532 = vld [vmem:[%s518 + $0x98] sm:$0xff]
      %v533 = vld [vmem:[%s518 + $0xa8] sm:$0xff]
      %v534 = vld [vmem:[%s518 + $0xb0] sm:$0xff]
      %v535 = vld [vmem:[%s518 + $0x1] sm:$0xff]
      %v536 = vld [vmem:[%s518 + $0x9] sm:$0xff]
      %v537 = vld [vmem:[%s518 + $0x19] sm:$0xff]
      %v538 = vld [vmem:[%s518 + $0x21] sm:$0xff]
      %v539 = vld [vmem:[%s518 + $0x31] sm:$0xff]
      %v540 = vld [vmem:[%s518 + $0x39] sm:$0xff]
      %v541 = vld [vmem:[%s518 + $0x49] sm:$0xff]
      %v542 = vld [vmem:[%s518 + $0x51] sm:$0xff]
      %v543 = vld [vmem:[%s518 + $0x61] sm:$0xff]
      %v544 = vld [vmem:[%s518 + $0x69] sm:$0xff]
      %v545 = vld [vmem:[%s518 + $0x79] sm:$0xff]
      %v546 = vld [vmem:[%s518 + $0x81] sm:$0xff]
      %v547 = vld [vmem:[%s518 + $0x91] sm:$0xff]
      %v548 = vld [vmem:[%s518 + $0x99] sm:$0xff]
      %v549 = vld [vmem:[%s518 + $0xa9] sm:$0xff]
      %v550 = vld [vmem:[%s518 + $0xb1] sm:$0xff]
      %v551 = vld [vmem:[%s518 + $0x2] sm:$0xff]
      %v552 = vld [vmem:[%s518 + $0xa] sm:$0xff]
      %v553 = vld [vmem:[%s518 + $0x1a] sm:$0xff]
      %v554 = vld [vmem:[%s518 + $0x22] sm:$0xff]
      %v555 = vld [vmem:[%s518 + $0x32] sm:$0xff]
      %v556 = vld [vmem:[%s518 + $0x3a] sm:$0xff]
      %v557 = vld [vmem:[%s518 + $0x4a] sm:$0xff]
      %v558 = vld [vmem:[%s518 + $0x52] sm:$0xff]
      %v559 = vld [vmem:[%s518 + $0x62] sm:$0xff]
      %v560 = vld [vmem:[%s518 + $0x6a] sm:$0xff]
      %v561 = vld [vmem:[%s518 + $0x7a] sm:$0xff]
      %v562 = vld [vmem:[%s518 + $0x82] sm:$0xff]
      %v563 = vld [vmem:[%s518 + $0x92] sm:$0xff]
      %v564 = vld [vmem:[%s518 + $0x9a] sm:$0xff]
      %v565 = vld [vmem:[%s518 + $0xaa] sm:$0xff]
      %v566 = vld [vmem:[%s518 + $0xb2] sm:$0xff]
      %583 = vrot.lane.b32.xlu0 %v438, 4
      %v584 = vpop.permute.xlu0 %583
      %585 = vrot.lane.b32.xlu0 %v439, 4
      %v586 = vpop.permute.xlu0 %585
      %587 = vrot.lane.b32.xlu0 %v440, 4
      %v588 = vpop.permute.xlu0 %587
      %589 = vrot.lane.b32.xlu0 %v441, 4
      %v590 = vpop.permute.xlu0 %589
      %591 = vrot.lane.b32.xlu0 %v442, 4
      %v592 = vpop.permute.xlu0 %591
      %593 = vrot.lane.b32.xlu0 %v443, 4
      %v594 = vpop.permute.xlu0 %593
      %595 = vrot.lane.b32.xlu0 %v444, 4
      %v596 = vpop.permute.xlu0 %595
      %597 = vrot.lane.b32.xlu0 %v445, 4
      %v598 = vpop.permute.xlu0 %597
      %599 = vrot.lane.b32.xlu0 %v446, 4
      %v600 = vpop.permute.xlu0 %599
      %601 = vrot.lane.b32.xlu0 %v447, 4
      %v602 = vpop.permute.xlu0 %601
      %603 = vrot.lane.b32.xlu0 %v448, 4
      %v604 = vpop.permute.xlu0 %603
      %605 = vrot.lane.b32.xlu0 %v449, 4
      %v606 = vpop.permute.xlu0 %605
      %607 = vrot.lane.b32.xlu0 %v450, 4
      %v608 = vpop.permute.xlu0 %607
      %609 = vrot.lane.b32.xlu0 %v451, 4
      %v610 = vpop.permute.xlu0 %609
      %611 = vrot.lane.b32.xlu0 %v452, 4
      %v612 = vpop.permute.xlu0 %611
      %613 = vrot.lane.b32.xlu0 %v453, 4
      %v614 = vpop.permute.xlu0 %613
      %647 = vrot.lane.b32.xlu0 %v454, 8
      %v648 = vpop.permute.xlu0 %647
      %649 = vrot.lane.b32.xlu0 %v455, 8
      %v650 = vpop.permute.xlu0 %649
      %651 = vrot.lane.b32.xlu0 %v456, 8
      %v652 = vpop.permute.xlu0 %651
      %653 = vrot.lane.b32.xlu0 %v457, 8
      %v654 = vpop.permute.xlu0 %653
      %655 = vrot.lane.b32.xlu0 %v458, 8
      %v656 = vpop.permute.xlu0 %655
      %657 = vrot.lane.b32.xlu0 %v459, 8
      %v658 = vpop.permute.xlu0 %657
      %659 = vrot.lane.b32.xlu0 %v460, 8
      %v660 = vpop.permute.xlu0 %659
      %661 = vrot.lane.b32.xlu0 %v461, 8
      %v662 = vpop.permute.xlu0 %661
      %663 = vrot.lane.b32.xlu0 %v462, 8
      %v664 = vpop.permute.xlu0 %663
      %665 = vrot.lane.b32.xlu0 %v463, 8
      %v666 = vpop.permute.xlu0 %665
      %667 = vrot.lane.b32.xlu0 %v464, 8
      %v668 = vpop.permute.xlu0 %667
      %669 = vrot.lane.b32.xlu0 %v465, 8
      %v670 = vpop.permute.xlu0 %669
      %671 = vrot.lane.b32.xlu0 %v466, 8
      %v672 = vpop.permute.xlu0 %671
      %673 = vrot.lane.b32.xlu0 %v467, 8
      %v674 = vpop.permute.xlu0 %673
      %675 = vrot.lane.b32.xlu0 %v468, 8
      %v676 = vpop.permute.xlu0 %675
      %677 = vrot.lane.b32.xlu0 %v469, 8
      %v678 = vpop.permute.xlu0 %677
      %711 = vrot.lane.b32.xlu0 %v470, 12
      %v712 = vpop.permute.xlu0 %711
      %713 = vrot.lane.b32.xlu0 %v471, 12
      %v714 = vpop.permute.xlu0 %713
      %715 = vrot.lane.b32.xlu0 %v472, 12
      %v716 = vpop.permute.xlu0 %715
      %717 = vrot.lane.b32.xlu0 %v473, 12
      %v718 = vpop.permute.xlu0 %717
      %719 = vrot.lane.b32.xlu0 %v474, 12
      %v720 = vpop.permute.xlu0 %719
      %721 = vrot.lane.b32.xlu0 %v475, 12
      %v722 = vpop.permute.xlu0 %721
      %723 = vrot.lane.b32.xlu0 %v476, 12
      %v724 = vpop.permute.xlu0 %723
      %725 = vrot.lane.b32.xlu0 %v477, 12
      %v726 = vpop.permute.xlu0 %725
      %727 = vrot.lane.b32.xlu0 %v478, 12
      %v728 = vpop.permute.xlu0 %727
      %729 = vrot.lane.b32.xlu0 %v479, 12
      %v730 = vpop.permute.xlu0 %729
      %731 = vrot.lane.b32.xlu0 %v480, 12
      %v732 = vpop.permute.xlu0 %731
      %733 = vrot.lane.b32.xlu0 %v481, 12
      %v734 = vpop.permute.xlu0 %733
      %735 = vrot.lane.b32.xlu0 %v482, 12
      %v736 = vpop.permute.xlu0 %735
      %737 = vrot.lane.b32.xlu0 %v483, 12
      %v738 = vpop.permute.xlu0 %737
      %739 = vrot.lane.b32.xlu0 %v484, 12
      %v740 = vpop.permute.xlu0 %739
      %741 = vrot.lane.b32.xlu0 %v485, 12
      %v742 = vpop.permute.xlu0 %741
      %775 = vrot.lane.b32.xlu0 %v486, 16
      %v776 = vpop.permute.xlu0 %775
      %777 = vrot.lane.b32.xlu0 %v487, 16
      %v778 = vpop.permute.xlu0 %777
      %779 = vrot.lane.b32.xlu0 %v488, 16
      %v780 = vpop.permute.xlu0 %779
      %781 = vrot.lane.b32.xlu0 %v489, 16
      %v782 = vpop.permute.xlu0 %781
      %783 = vrot.lane.b32.xlu0 %v490, 16
      %v784 = vpop.permute.xlu0 %783
      %785 = vrot.lane.b32.xlu0 %v491, 16
      %v786 = vpop.permute.xlu0 %785
      %787 = vrot.lane.b32.xlu0 %v492, 16
      %v788 = vpop.permute.xlu0 %787
      %789 = vrot.lane.b32.xlu0 %v493, 16
      %v790 = vpop.permute.xlu0 %789
      %791 = vrot.lane.b32.xlu0 %v494, 16
      %v792 = vpop.permute.xlu0 %791
      %793 = vrot.lane.b32.xlu0 %v495, 16
      %v794 = vpop.permute.xlu0 %793
      %795 = vrot.lane.b32.xlu0 %v496, 16
      %v796 = vpop.permute.xlu0 %795
      %797 = vrot.lane.b32.xlu0 %v497, 16
      %v798 = vpop.permute.xlu0 %797
      %799 = vrot.lane.b32.xlu0 %v498, 16
      %v800 = vpop.permute.xlu0 %799
      %801 = vrot.lane.b32.xlu0 %v499, 16
      %v802 = vpop.permute.xlu0 %801
      %803 = vrot.lane.b32.xlu0 %v500, 16
      %v804 = vpop.permute.xlu0 %803
      %805 = vrot.lane.b32.xlu0 %v501, 16
      %v806 = vpop.permute.xlu0 %805
      %839 = vrot.lane.b32.xlu0 %v502, 20
      %v840 = vpop.permute.xlu0 %839
      %841 = vrot.lane.b32.xlu0 %v503, 20
      %v842 = vpop.permute.xlu0 %841
      %843 = vrot.lane.b32.xlu0 %v504, 20
      %v844 = vpop.permute.xlu0 %843
      %845 = vrot.lane.b32.xlu0 %v505, 20
      %v846 = vpop.permute.xlu0 %845
      %847 = vrot.lane.b32.xlu0 %v506, 20
      %v848 = vpop.permute.xlu0 %847
      %849 = vrot.lane.b32.xlu0 %v507, 20
      %v850 = vpop.permute.xlu0 %849
      %851 = vrot.lane.b32.xlu0 %v508, 20
      %v852 = vpop.permute.xlu0 %851
      %853 = vrot.lane.b32.xlu0 %v509, 20
      %v854 = vpop.permute.xlu0 %853
      %855 = vrot.lane.b32.xlu0 %v510, 20
      %v856 = vpop.permute.xlu0 %855
      %857 = vrot.lane.b32.xlu0 %v511, 20
      %v858 = vpop.permute.xlu0 %857
      %859 = vrot.lane.b32.xlu0 %v512, 20
      %v860 = vpop.permute.xlu0 %859
      %861 = vrot.lane.b32.xlu0 %v513, 20
      %v862 = vpop.permute.xlu0 %861
      %863 = vrot.lane.b32.xlu0 %v514, 20
      %v864 = vpop.permute.xlu0 %863
      %865 = vrot.lane.b32.xlu0 %v515, 20
      %v866 = vpop.permute.xlu0 %865
      %867 = vrot.lane.b32.xlu0 %v516, 20
      %v868 = vpop.permute.xlu0 %867
      %869 = vrot.lane.b32.xlu0 %v517, 20
      %v870 = vpop.permute.xlu0 %869
      %903 = vrot.lane.b32.xlu0 %v519, 24
      %v904 = vpop.permute.xlu0 %903
      %905 = vrot.lane.b32.xlu0 %v520, 24
      %v906 = vpop.permute.xlu0 %905
      %907 = vrot.lane.b32.xlu0 %v521, 24
      %v908 = vpop.permute.xlu0 %907
      %909 = vrot.lane.b32.xlu0 %v522, 24
      %v910 = vpop.permute.xlu0 %909
      %911 = vrot.lane.b32.xlu0 %v523, 24
      %v912 = vpop.permute.xlu0 %911
      %913 = vrot.lane.b32.xlu0 %v524, 24
      %v914 = vpop.permute.xlu0 %913
      %915 = vrot.lane.b32.xlu0 %v525, 24
      %v916 = vpop.permute.xlu0 %915
      %917 = vrot.lane.b32.xlu0 %v526, 24
      %v918 = vpop.permute.xlu0 %917
      %919 = vrot.lane.b32.xlu0 %v527, 24
      %v920 = vpop.permute.xlu0 %919
      %921 = vrot.lane.b32.xlu0 %v528, 24
      %v922 = vpop.permute.xlu0 %921
      %923 = vrot.lane.b32.xlu0 %v529, 24
      %v924 = vpop.permute.xlu0 %923
      %925 = vrot.lane.b32.xlu0 %v530, 24
      %v926 = vpop.permute.xlu0 %925
      %927 = vrot.lane.b32.xlu0 %v531, 24
      %v928 = vpop.permute.xlu0 %927
      %929 = vrot.lane.b32.xlu0 %v532, 24
      %v930 = vpop.permute.xlu0 %929
      %931 = vrot.lane.b32.xlu0 %v533, 24
      %v932 = vpop.permute.xlu0 %931
      %933 = vrot.lane.b32.xlu0 %v534, 24
      %v934 = vpop.permute.xlu0 %933
      %967 = vrot.lane.b32.xlu0 %v535, 28
      %v968 = vpop.permute.xlu0 %967
      %969 = vrot.lane.b32.xlu0 %v536, 28
      %v970 = vpop.permute.xlu0 %969
      %971 = vrot.lane.b32.xlu0 %v537, 28
      %v972 = vpop.permute.xlu0 %971
      %973 = vrot.lane.b32.xlu0 %v538, 28
      %v974 = vpop.permute.xlu0 %973
      %975 = vrot.lane.b32.xlu0 %v539, 28
      %v976 = vpop.permute.xlu0 %975
      %977 = vrot.lane.b32.xlu0 %v540, 28
      %v978 = vpop.permute.xlu0 %977
      %979 = vrot.lane.b32.xlu0 %v541, 28
      %v980 = vpop.permute.xlu0 %979
      %981 = vrot.lane.b32.xlu0 %v542, 28
      %v982 = vpop.permute.xlu0 %981
      %983 = vrot.lane.b32.xlu0 %v543, 28
      %v984 = vpop.permute.xlu0 %983
      %985 = vrot.lane.b32.xlu0 %v544, 28
      %v986 = vpop.permute.xlu0 %985
      %987 = vrot.lane.b32.xlu0 %v545, 28
      %v988 = vpop.permute.xlu0 %987
      %989 = vrot.lane.b32.xlu0 %v546, 28
      %v990 = vpop.permute.xlu0 %989
      %991 = vrot.lane.b32.xlu0 %v547, 28
      %v992 = vpop.permute.xlu0 %991
      %993 = vrot.lane.b32.xlu0 %v548, 28
      %v994 = vpop.permute.xlu0 %993
      %995 = vrot.lane.b32.xlu0 %v549, 28
      %v996 = vpop.permute.xlu0 %995
      %997 = vrot.lane.b32.xlu0 %v550, 28
      %v998 = vpop.permute.xlu0 %997
      %1031 = vrot.lane.b32.xlu0 %v551, 32
      %v1032 = vpop.permute.xlu0 %1031
      %1033 = vrot.lane.b32.xlu0 %v552, 32
      %v1034 = vpop.permute.xlu0 %1033
      %1035 = vrot.lane.b32.xlu0 %v553, 32
      %v1036 = vpop.permute.xlu0 %1035
      %1037 = vrot.lane.b32.xlu0 %v554, 32
      %v1038 = vpop.permute.xlu0 %1037
      %1039 = vrot.lane.b32.xlu0 %v555, 32
      %v1040 = vpop.permute.xlu0 %1039
      %1041 = vrot.lane.b32.xlu0 %v556, 32
      %v1042 = vpop.permute.xlu0 %1041
      %1043 = vrot.lane.b32.xlu0 %v557, 32
      %v1044 = vpop.permute.xlu0 %1043
      %1045 = vrot.lane.b32.xlu0 %v558, 32
      %v1046 = vpop.permute.xlu0 %1045
      %1047 = vrot.lane.b32.xlu0 %v559, 32
      %v1048 = vpop.permute.xlu0 %1047
      %1049 = vrot.lane.b32.xlu0 %v560, 32
      %v1050 = vpop.permute.xlu0 %1049
      %1051 = vrot.lane.b32.xlu0 %v561, 32
      %v1052 = vpop.permute.xlu0 %1051
      %1053 = vrot.lane.b32.xlu0 %v562, 32
      %v1054 = vpop.permute.xlu0 %1053
      %1055 = vrot.lane.b32.xlu0 %v563, 32
      %v1056 = vpop.permute.xlu0 %1055
      %1057 = vrot.lane.b32.xlu0 %v564, 32
      %v1058 = vpop.permute.xlu0 %1057
      %1059 = vrot.lane.b32.xlu0 %v565, 32
      %v1060 = vpop.permute.xlu0 %1059
      %1061 = vrot.lane.b32.xlu0 %v566, 32
      %v1062 = vpop.permute.xlu0 %1061
      %v1079 = vsel %vm399, %v422, %v584
      %v1080 = vsel %vm399, %v423, %v586
      %v1081 = vsel %vm399, %v424, %v588
      %v1082 = vsel %vm399, %v425, %v590
      %v1083 = vsel %vm399, %v426, %v592
      %v1084 = vsel %vm399, %v427, %v594
      %v1085 = vsel %vm399, %v428, %v596
      %v1086 = vsel %vm399, %v429, %v598
      %v1087 = vsel %vm399, %v430, %v600
      %v1088 = vsel %vm399, %v431, %v602
      %v1089 = vsel %vm399, %v432, %v604
      %v1090 = vsel %vm399, %v433, %v606
      %v1091 = vsel %vm399, %v434, %v608
      %v1092 = vsel %vm399, %v435, %v610
      %v1093 = vsel %vm399, %v436, %v612
      %v1094 = vsel %vm399, %v437, %v614
      %vm1095 = vcmask 64512
      %v1096 = vsel %vm1095, %v1079, %v648
      %v1097 = vsel %vm1095, %v1080, %v650
      %v1098 = vsel %vm1095, %v1081, %v652
      %v1099 = vsel %vm1095, %v1082, %v654
      %v1100 = vsel %vm1095, %v1083, %v656
      %v1101 = vsel %vm1095, %v1084, %v658
      %v1102 = vsel %vm1095, %v1085, %v660
      %v1103 = vsel %vm1095, %v1086, %v662
      %v1104 = vsel %vm1095, %v1087, %v664
      %v1105 = vsel %vm1095, %v1088, %v666
      %v1106 = vsel %vm1095, %v1089, %v668
      %v1107 = vsel %vm1095, %v1090, %v670
      %v1108 = vsel %vm1095, %v1091, %v672
      %v1109 = vsel %vm1095, %v1092, %v674
      %v1110 = vsel %vm1095, %v1093, %v676
      %v1111 = vsel %vm1095, %v1094, %v678
      %vm1112 = vcmask 97280
      %v1113 = vsel %vm1112, %v1096, %v712
      %v1114 = vsel %vm1112, %v1097, %v714
      %v1115 = vsel %vm1112, %v1098, %v716
      %v1116 = vsel %vm1112, %v1099, %v718
      %v1117 = vsel %vm1112, %v1100, %v720
      %v1118 = vsel %vm1112, %v1101, %v722
      %v1119 = vsel %vm1112, %v1102, %v724
      %v1120 = vsel %vm1112, %v1103, %v726
      %v1121 = vsel %vm1112, %v1104, %v728
      %v1122 = vsel %vm1112, %v1105, %v730
      %v1123 = vsel %vm1112, %v1106, %v732
      %v1124 = vsel %vm1112, %v1107, %v734
      %v1125 = vsel %vm1112, %v1108, %v736
      %v1126 = vsel %vm1112, %v1109, %v738
      %v1127 = vsel %vm1112, %v1110, %v740
      %v1128 = vsel %vm1112, %v1111, %v742
      %vm1129 = vcmask 130048
      %v1130 = vsel %vm1129, %v1113, %v776
      %v1131 = vsel %vm1129, %v1114, %v778
      %v1132 = vsel %vm1129, %v1115, %v780
      %v1133 = vsel %vm1129, %v1116, %v782
      %v1134 = vsel %vm1129, %v1117, %v784
      %v1135 = vsel %vm1129, %v1118, %v786
      %v1136 = vsel %vm1129, %v1119, %v788
      %v1137 = vsel %vm1129, %v1120, %v790
      %v1138 = vsel %vm1129, %v1121, %v792
      %v1139 = vsel %vm1129, %v1122, %v794
      %v1140 = vsel %vm1129, %v1123, %v796
      %v1141 = vsel %vm1129, %v1124, %v798
      %v1142 = vsel %vm1129, %v1125, %v800
      %v1143 = vsel %vm1129, %v1126, %v802
      %v1144 = vsel %vm1129, %v1127, %v804
      %v1145 = vsel %vm1129, %v1128, %v806
      %vm1146 = vcmask 162816
      %v1147 = vsel %vm1146, %v1130, %v840
      %v1148 = vsel %vm1146, %v1131, %v842
      %v1149 = vsel %vm1146, %v1132, %v844
      %v1150 = vsel %vm1146, %v1133, %v846
      %v1151 = vsel %vm1146, %v1134, %v848
      %v1152 = vsel %vm1146, %v1135, %v850
      %v1153 = vsel %vm1146, %v1136, %v852
      %v1154 = vsel %vm1146, %v1137, %v854
      %v1155 = vsel %vm1146, %v1138, %v856
      %v1156 = vsel %vm1146, %v1139, %v858
      %v1157 = vsel %vm1146, %v1140, %v860
      %v1158 = vsel %vm1146, %v1141, %v862
      %v1159 = vsel %vm1146, %v1142, %v864
      %v1160 = vsel %vm1146, %v1143, %v866
      %v1161 = vsel %vm1146, %v1144, %v868
      %v1162 = vsel %vm1146, %v1145, %v870
      %vm1163 = vcmask 195584
      %v1164 = vsel %vm1163, %v1147, %v904
      %v1165 = vsel %vm1163, %v1148, %v906
      %v1166 = vsel %vm1163, %v1149, %v908
      %v1167 = vsel %vm1163, %v1150, %v910
      %v1168 = vsel %vm1163, %v1151, %v912
      %v1169 = vsel %vm1163, %v1152, %v914
      %v1170 = vsel %vm1163, %v1153, %v916
      %v1171 = vsel %vm1163, %v1154, %v918
      %v1172 = vsel %vm1163, %v1155, %v920
      %v1173 = vsel %vm1163, %v1156, %v922
      %v1174 = vsel %vm1163, %v1157, %v924
      %v1175 = vsel %vm1163, %v1158, %v926
      %v1176 = vsel %vm1163, %v1159, %v928
      %v1177 = vsel %vm1163, %v1160, %v930
      %v1178 = vsel %vm1163, %v1161, %v932
      %v1179 = vsel %vm1163, %v1162, %v934
      %vm1180 = vcmask 228352
      %v1181 = vsel %vm1180, %v1164, %v968
      %v1182 = vsel %vm1180, %v1165, %v970
      %v1183 = vsel %vm1180, %v1166, %v972
      %v1184 = vsel %vm1180, %v1167, %v974
      %v1185 = vsel %vm1180, %v1168, %v976
      %v1186 = vsel %vm1180, %v1169, %v978
      %v1187 = vsel %vm1180, %v1170, %v980
      %v1188 = vsel %vm1180, %v1171, %v982
      %v1189 = vsel %vm1180, %v1172, %v984
      %v1190 = vsel %vm1180, %v1173, %v986
      %v1191 = vsel %vm1180, %v1174, %v988
      %v1192 = vsel %vm1180, %v1175, %v990
      %v1193 = vsel %vm1180, %v1176, %v992
      %v1194 = vsel %vm1180, %v1177, %v994
      %v1195 = vsel %vm1180, %v1178, %v996
      %v1196 = vsel %vm1180, %v1179, %v998
      %vm1197 = vcmask 261120
      %v1198 = vsel %vm1197, %v1181, %v1032
      %v1199 = vsel %vm1197, %v1182, %v1034
      %v1200 = vsel %vm1197, %v1183, %v1036
      %v1201 = vsel %vm1197, %v1184, %v1038
      %v1202 = vsel %vm1197, %v1185, %v1040
      %v1203 = vsel %vm1197, %v1186, %v1042
      %v1204 = vsel %vm1197, %v1187, %v1044
      %v1205 = vsel %vm1197, %v1188, %v1046
      %v1206 = vsel %vm1197, %v1189, %v1048
      %v1207 = vsel %vm1197, %v1190, %v1050
      %v1208 = vsel %vm1197, %v1191, %v1052
      %v1209 = vsel %vm1197, %v1192, %v1054
      %v1210 = vsel %vm1197, %v1193, %v1056
      %v1211 = vsel %vm1197, %v1194, %v1058
      %v1212 = vsel %vm1197, %v1195, %v1060
      %v1213 = vsel %vm1197, %v1196, %v1062
      %v1214 = vpack.c.bf16 %v1199, %v1198
      %v1215 = vpack.c.bf16 %v1201, %v1200
      %v1216 = vpack.c.bf16 %v1203, %v1202
      %v1217 = vpack.c.bf16 %v1205, %v1204
      %v1218 = vpack.c.bf16 %v1207, %v1206
      %v1219 = vpack.c.bf16 %v1209, %v1208
      %v1220 = vpack.c.bf16 %v1211, %v1210
      %v1221 = vpack.c.bf16 %v1213, %v1212
      %v1222 = vld [vmem:[%s2] sm:$0xf]
      %v1223 = vld [vmem:[%s2 + $0x4] sm:$0xf]
      %v1224 = vld [vmem:[%s2 + $0x8] sm:$0xf]
      %v1225 = vld [vmem:[%s2 + $0xc] sm:$0xf]
      %v1226 = vld [vmem:[%s2 + $0x10] sm:$0x3]
      %v1232 = vunpack.c.l.b16 %v1222
      %v1233 = vunpack.c.l.b16 %v1223
      %v1234 = vunpack.c.l.b16 %v1224
      %v1235 = vunpack.c.l.b16 %v1225
      %v1236 = vunpack.c.l.b16 %v1226
      %v1237 = vpack.c.b16 %v1233, %v1232
      %v1238 = vpack.c.b16 %v1235, %v1234
      %v1239 = vpack.c.b16 %v1236, %v1236
      %vm1242 = vcmask 293888
      %v1244 = vsel %vm1242, %v1214, 0
      %v1247 = vsel %vm1242, %v1215, 0
      %v1250 = vsel %vm1242, %v1216, 0
      %v1253 = vsel %vm1242, %v1217, 0
      %v1256 = vsel %vm1242, %v1218, 0
      %v1259 = vsel %vm1242, %v1219, 0
      %v1262 = vsel %vm1242, %v1220, 0
      %v1265 = vsel %vm1242, %v1221, 0
      %vm1267 = vcmask 1041408
      %v1269 = vsel %vm1267, %v1239, 0
      %1271 = vmatprep.subr.bf16.mxu0 0
      %1272 = vmatpush1.bf16.msra.mxu0 0
      %1273 = vmatprep.subr.bf16.mxu0 0
      %1274 = vmatpush1.bf16.msra.mxu0 0
      %1275 = vmatprep.subr.bf16.mxu0 0
      %1276 = vmatpush1.bf16.msra.mxu0 0
      %1277 = vmatprep.subr.bf16.mxu0 0
      %1278 = vmatpush1.bf16.msra.mxu0 0
      %1279 = vmatprep.subr.bf16.mxu0 0
      %1280 = vmatpush1.bf16.msra.mxu0 0
      %1281 = vmatprep.subr.bf16.mxu0 0
      %1282 = vmatpush1.bf16.msra.mxu0 %v1269
      %1283 = vmatprep.subr.bf16.mxu0 0
      %1284 = vmatpush1.bf16.msra.mxu0 %v1238
      %1285 = vmatprep.subr.bf16.mxu0 0
      %1286 = vmatpush1.bf16.msra.mxu0 %v1237
      %1287 = vmatprep.subr.bf16.mxu0 0
      %1288 = vmatpush2.bf16.msra.mxu0 0
      %1289 = vmatprep.subr.bf16.mxu0 0
      %1290 = vmatpush2.bf16.msra.mxu0 0
      %1291 = vmatprep.subr.bf16.mxu0 0
      %1292 = vmatpush2.bf16.msra.mxu0 0
      %1293 = vmatprep.subr.bf16.mxu0 0
      %1294 = vmatpush2.bf16.msra.mxu0 0
      %1295 = vmatprep.subr.bf16.mxu0 0
      %1296 = vmatpush2.bf16.msra.mxu0 0
      %1297 = vmatprep.subr.bf16.mxu0 0
      %1298 = vmatpush2.bf16.msra.mxu0 0
      %1299 = vmatprep.subr.bf16.mxu0 0
      %1300 = vmatpush2.bf16.msra.mxu0 0
      %1301 = vmatprep.subr.bf16.mxu0 0
      %1302 = vmatpush2.bf16.msra.mxu0 0
      %1303 = vmatprep.mubr.bf16.mxu0 0
      %1304 = vmatmul.mubr.bf16.gmra.mxu0 %v1244
      %v1305 = vpop.f32.mrf.mxu0
      %v1306 = vadd.f32 0.0, %v1305
      %v1307 = vpop.f32.mrf.mxu0
      %v1308 = vpop.f32.mrf.mxu0
      %v1309 = vadd.f32 0.0, %v1308
      %v1310 = vpop.f32.mrf.mxu0
      %1311 = vmatprep.mubr.bf16.mxu0 0
      %1312 = vmatmul.mubr.bf16.gmra.mxu0 %v1247
      %v1313 = vpop.f32.mrf.mxu0
      %v1314 = vadd.f32 0.0, %v1313
      %v1315 = vpop.f32.mrf.mxu0
      %v1316 = vpop.f32.mrf.mxu0
      %v1317 = vadd.f32 0.0, %v1316
      %v1318 = vpop.f32.mrf.mxu0
      %1319 = vmatprep.mubr.bf16.mxu0 0
      %1320 = vmatmul.mubr.bf16.gmra.mxu0 %v1250
      %v1321 = vpop.f32.mrf.mxu0
      %v1322 = vadd.f32 0.0, %v1321
      %v1323 = vpop.f32.mrf.mxu0
      %v1324 = vpop.f32.mrf.mxu0
      %v1325 = vadd.f32 0.0, %v1324
      %v1326 = vpop.f32.mrf.mxu0
      %1327 = vmatprep.mubr.bf16.mxu0 0
      %1328 = vmatmul.mubr.bf16.gmra.mxu0 %v1253
      %v1329 = vpop.f32.mrf.mxu0
      %v1330 = vadd.f32 0.0, %v1329
      %v1331 = vpop.f32.mrf.mxu0
      %v1332 = vpop.f32.mrf.mxu0
      %v1333 = vadd.f32 0.0, %v1332
      %v1334 = vpop.f32.mrf.mxu0
      %1335 = vmatprep.mubr.bf16.mxu0 0
      %1336 = vmatmul.mubr.bf16.gmra.mxu0 %v1256
      %v1337 = vpop.f32.mrf.mxu0
      %v1338 = vadd.f32 0.0, %v1337
      %v1339 = vpop.f32.mrf.mxu0
      %v1340 = vpop.f32.mrf.mxu0
      %v1341 = vadd.f32 0.0, %v1340
      %v1342 = vpop.f32.mrf.mxu0
      %1343 = vmatprep.mubr.bf16.mxu0 0
      %1344 = vmatmul.mubr.bf16.gmra.mxu0 %v1259
      %v1345 = vpop.f32.mrf.mxu0
      %v1346 = vadd.f32 0.0, %v1345
      %v1347 = vpop.f32.mrf.mxu0
      %v1348 = vpop.f32.mrf.mxu0
      %v1349 = vadd.f32 0.0, %v1348
      %v1350 = vpop.f32.mrf.mxu0
      %1351 = vmatprep.mubr.bf16.mxu0 0
      %1352 = vmatmul.mubr.bf16.gmra.mxu0 %v1262
      %v1353 = vpop.f32.mrf.mxu0
      %v1354 = vadd.f32 0.0, %v1353
      %v1355 = vpop.f32.mrf.mxu0
      %v1356 = vpop.f32.mrf.mxu0
      %v1357 = vadd.f32 0.0, %v1356
      %v1358 = vpop.f32.mrf.mxu0
      %1359 = vmatprep.mubr.bf16.mxu0 0
      %1360 = vmatmul.mubr.bf16.gmra.mxu0 %v1265
      %v1361 = vpop.f32.mrf.mxu0
      %v1362 = vadd.f32 0.0, %v1361
      %v1363 = vpop.f32.mrf.mxu0
      %v1364 = vpop.f32.mrf.mxu0
      %v1365 = vadd.f32 0.0, %v1364
      %v1366 = vpop.f32.mrf.mxu0
      %1367 = vdwg.mxu0
      %v1368 = vsel %vm1095, %v1306, 0.0
      %v1369 = vsel %vm1095, %v1309, 0.0
      %v1370 = vadd.f32 %v1368, %v1369
      %v1371 = vsel %vm1095, %v1314, 0.0
      %v1372 = vadd.f32 %v1370, %v1371
      %v1373 = vsel %vm1095, %v1317, 0.0
      %v1374 = vadd.f32 %v1372, %v1373
      %v1375 = vsel %vm1095, %v1322, 0.0
      %v1376 = vadd.f32 %v1374, %v1375
      %v1377 = vsel %vm1095, %v1325, 0.0
      %v1378 = vadd.f32 %v1376, %v1377
      %v1379 = vsel %vm1095, %v1330, 0.0
      %v1380 = vadd.f32 %v1378, %v1379
      %v1381 = vsel %vm1095, %v1333, 0.0
      %v1382 = vadd.f32 %v1380, %v1381
      %v1383 = vsel %vm1095, %v1338, 0.0
      %v1384 = vadd.f32 %v1382, %v1383
      %v1385 = vsel %vm1095, %v1341, 0.0
      %v1386 = vadd.f32 %v1384, %v1385
      %v1387 = vsel %vm1095, %v1346, 0.0
      %v1388 = vadd.f32 %v1386, %v1387
      %v1389 = vsel %vm1095, %v1349, 0.0
      %v1390 = vadd.f32 %v1388, %v1389
      %v1391 = vsel %vm1095, %v1354, 0.0
      %v1392 = vadd.f32 %v1390, %v1391
      %v1393 = vsel %vm1095, %v1357, 0.0
      %v1394 = vadd.f32 %v1392, %v1393
      %v1395 = vsel %vm1095, %v1362, 0.0
      %v1396 = vadd.f32 %v1394, %v1395
      %v1397 = vsel %vm1095, %v1365, 0.0
      %v1398 = vadd.f32 %v1396, %v1397
      %v1399 = vrot.slane %v1398, 4
      %v1400 = vadd.f32 %v1398, %v1399
      %v1401 = vrot.slane %v1400, 2
      %v1402 = vadd.f32 %v1400, %v1401
      %v1403 = vrot.slane %v1402, 1
      %v1404 = vadd.f32 %v1402, %v1403
      %v1405 = vmul.f32 %v1306, %v1306
      %v1406 = vmul.f32 %v1309, %v1309
      %v1407 = vmul.f32 %v1314, %v1314
      %v1408 = vmul.f32 %v1317, %v1317
      %v1409 = vmul.f32 %v1322, %v1322
      %v1410 = vmul.f32 %v1325, %v1325
      %v1411 = vmul.f32 %v1330, %v1330
      %v1412 = vmul.f32 %v1333, %v1333
      %v1413 = vmul.f32 %v1338, %v1338
      %v1414 = vmul.f32 %v1341, %v1341
      %v1415 = vmul.f32 %v1346, %v1346
      %v1416 = vmul.f32 %v1349, %v1349
      %v1417 = vmul.f32 %v1354, %v1354
      %v1418 = vmul.f32 %v1357, %v1357
      %v1419 = vmul.f32 %v1362, %v1362
      %v1420 = vmul.f32 %v1365, %v1365
      %v1421 = vsel %vm1095, %v1405, 0.0
      %v1422 = vsel %vm1095, %v1406, 0.0
      %v1423 = vadd.f32 %v1421, %v1422
      %v1424 = vsel %vm1095, %v1407, 0.0
      %v1425 = vadd.f32 %v1423, %v1424
      %v1426 = vsel %vm1095, %v1408, 0.0
      %v1427 = vadd.f32 %v1425, %v1426
      %v1428 = vsel %vm1095, %v1409, 0.0
      %v1429 = vadd.f32 %v1427, %v1428
      %v1430 = vsel %vm1095, %v1410, 0.0
      %v1431 = vadd.f32 %v1429, %v1430
      %v1432 = vsel %vm1095, %v1411, 0.0
      %v1433 = vadd.f32 %v1431, %v1432
      %v1434 = vsel %vm1095, %v1412, 0.0
      %v1435 = vadd.f32 %v1433, %v1434
      %v1436 = vsel %vm1095, %v1413, 0.0
      %v1437 = vadd.f32 %v1435, %v1436
      %v1438 = vsel %vm1095, %v1414, 0.0
      %v1439 = vadd.f32 %v1437, %v1438
      %v1440 = vsel %vm1095, %v1415, 0.0
      %v1441 = vadd.f32 %v1439, %v1440
      %v1442 = vsel %vm1095, %v1416, 0.0
      %v1443 = vadd.f32 %v1441, %v1442
      %v1444 = vsel %vm1095, %v1417, 0.0
      %v1445 = vadd.f32 %v1443, %v1444
      %v1446 = vsel %vm1095, %v1418, 0.0
      %v1447 = vadd.f32 %v1445, %v1446
      %v1448 = vsel %vm1095, %v1419, 0.0
      %v1449 = vadd.f32 %v1447, %v1448
      %v1450 = vsel %vm1095, %v1420, 0.0
      %v1451 = vadd.f32 %v1449, %v1450
      %v1452 = vrot.slane %v1451, 4
      %v1453 = vadd.f32 %v1451, %v1452
      %v1454 = vrot.slane %v1453, 2
      %v1455 = vadd.f32 %v1453, %v1454
      %v1456 = vrot.slane %v1455, 1
      %v1457 = vadd.f32 %v1455, %v1456
      %vm1458 = vcmask 1040384
      %v1459 = vsel %vm1458, %v1404, %v1457
      %vm1460 = vcmask 58368
      %1461 = vst.msk [vmem:[%s355] sm:$0x3] %vm1460, %v1459
      %1462 = vst.msk [vmem:[%s346] sm:$0xff] %vm1095, %v1306
      %1463 = vst.msk [vmem:[%s346 + $0x8] sm:$0xff] %vm1095, %v1309
      %1464 = vst.msk [vmem:[%s346 + $0x10] sm:$0xff] %vm1095, %v1314
      %1465 = vst.msk [vmem:[%s346 + $0x18] sm:$0xff] %vm1095, %v1317
      %1466 = vst.msk [vmem:[%s346 + $0x20] sm:$0xff] %vm1095, %v1322
      %1467 = vst.msk [vmem:[%s346 + $0x28] sm:$0xff] %vm1095, %v1325
      %1468 = vst.msk [vmem:[%s346 + $0x30] sm:$0xff] %vm1095, %v1330
      %1469 = vst.msk [vmem:[%s346 + $0x38] sm:$0xff] %vm1095, %v1333
      %1470 = vst.msk [vmem:[%s346 + $0x40] sm:$0xff] %vm1095, %v1338
      %1471 = vst.msk [vmem:[%s346 + $0x48] sm:$0xff] %vm1095, %v1341
      %1472 = vst.msk [vmem:[%s346 + $0x50] sm:$0xff] %vm1095, %v1346
      %1473 = vst.msk [vmem:[%s346 + $0x58] sm:$0xff] %vm1095, %v1349
      %1474 = vst.msk [vmem:[%s346 + $0x60] sm:$0xff] %vm1095, %v1354
      %1475 = vst.msk [vmem:[%s346 + $0x68] sm:$0xff] %vm1095, %v1357
      %1476 = vst.msk [vmem:[%s346 + $0x70] sm:$0xff] %vm1095, %v1362
      %1477 = vst.msk [vmem:[%s346 + $0x78] sm:$0xff] %vm1095, %v1365
      %s1478 = smul.u32 8, %s23
      %p1479 = scmp.lt.s32.totalorder %s22, 1
      %s1480 = scalar_select %p1479, %s22, 1
      %p1481 = scmp.lt.s32.totalorder %s1478, 15
      %s1482 = scalar_select %p1481, %s1478, 15
      %s1483 = smul.addr %s1482, 2
      %s1484 = smul.addr %s1480, 32
      %s1485 = sadd.s32 %s1483, %s1484
      %s1486 = smul.addr %s1485, 8
      %s1487 = scalar_lea.vmem %s5, %s1486
      %p1488 = scmp.lt.s32.totalorder %s22, 1
      %s1489 = scalar_select %p1488, %s22, 1
      %p1490 = scmp.lt.s32.totalorder %s23, 1
      %s1491 = scalar_select %p1490, %s23, 1
      %s1492 = smul.addr %s1489, 2
      %s1493 = sadd.s32 %s1491, %s1492
      %s1494 = smul.addr %s1493, 2
      %s1495 = scalar_lea.vmem %s6, %s1494
      // Predicated region
      $region41: #{conv_block_forward.3} parent=39 // pred_check
        %p1496 = pneg %p169
      $region42: #{conv_block_forward.3} parent=39 // pred_check_branch
        %1498 = sbr.rel (%p1496) target = $region44
      $region43: #{conv_block_forward.3} parent=39 // pred_region
        %s1499 = smul.u32 8, %s23
      $region44: #{conv_block_forward.3} parent=39 // pred_fallthru
        _
      // Predicated region
      $region45: #{conv_block_forward.3} parent=39 // pred_check
        %p1500 = pneg %p197
      $region46: #{conv_block_forward.3} parent=39 // pred_check_branch
        %1502 = sbr.rel (%p1500) target = $region48
      $region47: #{conv_block_forward.3} parent=39 // pred_region
        _
      $region48: #{conv_block_forward.3} parent=39 // pred_fallthru
        _
    $region40: #{conv_block_forward.3} parent=5 // pred_fallthru
      _
    %p1503 = scmp.le.s32.totalorder 2, %s13
    // Predicated region
    $region49: #{conv_block_forward.3} parent=5 // pred_check
      %p1504 = pneg %p1503
    $region50: #{conv_block_forward.3} parent=5 // pred_check_branch
      %1506 = sbr.rel (%p1504) target = $region52
    $region51: #{conv_block_forward.3} parent=5 // pred_region
      %s1507 = ssub.s32 %s13, 2
      // Predicated region
      $region53: #{conv_block_forward.3} parent=51 // pred_check
        %p1508 = pneg %p175
      $region54: #{conv_block_forward.3} parent=51 // pred_check_branch
        %1510 = sbr.rel (%p1508) target = $region56
      $region55: #{conv_block_forward.3} parent=51 // pred_region
        %s1511 = smul.u32 8, %s25
        %p1512 = scmp.lt.s32.totalorder %s24, 1
        %s1513 = scalar_select %p1512, %s24, 1
        %p1514 = scmp.lt.s32.totalorder %s1511, 15
        %s1515 = scalar_select %p1514, %s1511, 15
        %s1516 = smul.addr %s1515, 2
        %s1517 = smul.addr %s1513, 32
        %s1518 = sadd.s32 %s1516, %s1517
        %s1519 = smul.addr %s1518, 8
        %s1520 = scalar_lea.vmem %s5, %s1519
      $region56: #{conv_block_forward.3} parent=51 // pred_fallthru
        _
      // Predicated region
      $region57: #{conv_block_forward.3} parent=51 // pred_check
        %p1521 = pneg %p203
      $region58: #{conv_block_forward.3} parent=51 // pred_check_branch
        %1523 = sbr.rel (%p1521) target = $region60
      $region59: #{conv_block_forward.3} parent=51 // pred_region
        %p1524 = scmp.lt.s32.totalorder %s24, 1
        %s1525 = scalar_select %p1524, %s24, 1
        %p1526 = scmp.lt.s32.totalorder %s25, 1
        %s1527 = scalar_select %p1526, %s25, 1
        %s1528 = smul.addr %s1525, 2
        %s1529 = sadd.s32 %s1527, %s1528
        %s1530 = smul.addr %s1529, 2
        %s1531 = scalar_lea.vmem %s6, %s1530
      $region60: #{conv_block_forward.3} parent=51 // pred_fallthru
        _
    $region52: #{conv_block_forward.3} parent=5 // pred_fallthru
      _
  $region6: #{conv_block_forward.3} parent=0 // loop_footer
    %s17 = sadd.s32 1, %s13
  $region7: #{conv_block_forward.3} parent=0 // loop_footer_branch
    %12 = sbr.rel target = $region3
  $region8: #{conv_block_forward.3} parent=0 // loop_exit
    _

</llo_original>
